<compile_context>
chip_gen: v5e
topology: v5e:2x2
jax: 0.10.0
libtpu: 0.0.40
codegen_flags: <defaults>
</compile_context>

<pallas_src>
import math
import functools

import numpy as np
import jax
import jax.numpy as jnp
from jax.experimental import pallas as pl
from jax.experimental.pallas import tpu as pltpu


_VMEM_LIMIT = 48 * 1024 * 1024   # below v7x's 64 MiB physical VMEM


# ----------------------------- kernel helpers -----------------------------

def _layernorm(x, g, b, eps=1e-5):
    mu = jnp.mean(x, axis=-1, keepdims=True)
    var = jnp.mean((x - mu) ** 2, axis=-1, keepdims=True)
    return (x - mu) * jax.lax.rsqrt(var + eps) * g + b


def _gelu_exact(x):
    # torch.nn.GELU() default (erf-based, not tanh approximation)
    return 0.5 * x * (1.0 + jax.lax.erf(x * 0.7071067811865476))


def _seq_tile(S):
    for ts in (256, 128, 64, 32, 16, 8):
        if S % ts == 0:
            return ts
    return S


def _vocab_tile(Vp, target):
    """Largest multiple of 128 <= target that divides the padded vocab."""
    assert Vp % 128 == 0
    ts = max(128, (min(target, Vp) // 128) * 128)
    while Vp % ts:
        ts -= 128
    return ts


def _num_head_groups(heads, dk, target_gw=256):
    """Number of head-groups per attention grid step.  The group width G*dk
    is kept a multiple of 128 (MXU-friendly; 256 matches v6e/v7x's 2x256^2
    MXU) or the full D for tiny models."""
    D = heads * dk
    best_ng = 1
    for ng in range(1, heads + 1):
        if heads % ng:
            continue
        gw = D // ng
        if gw != D and gw % 128 != 0:
            continue
        if gw >= min(target_gw, D):
            best_ng = ng          # ng ascending -> smallest group width >= target
    return best_ng


# ----------------------------- Pallas kernels -----------------------------

def attn_layer_kernel(scale, dk,
                      x_ref, bias_ref,
                      wq_ref, bq_ref, wk_ref, bk_ref, wv_ref, bv_ref,
                      wo_ref, bo_ref, g_ref, b_ref,
                      o_ref, acc_ref):
    """Grid = (batch, head_groups).  Per step: full-width Q/K/V projections
    for a group of G heads (N = G*dk), per-head masked softmax attention on
    static lane slices, and the group's slice of the output projection
    (contraction K = G*dk), accumulated into an (S, D) f32 scratch.
    Residual + LayerNorm on the last group."""
    grp = pl.program_id(1)

    @pl.when(grp == 0)
    def _():
        acc_ref[...] = jnp.zeros_like(acc_ref)

    x = x_ref[0]          # (S, D)  bf16
    bias = bias_ref[0]    # (1, S)  f32 additive mask bias (0 or -1e9)

    # group projections: contraction K = D, output N = G*dk (full MXU width)
    q = jnp.dot(x, wq_ref[...], preferred_element_type=jnp.float32) + bq_ref[...]
    k = jnp.dot(x, wk_ref[...], preferred_element_type=jnp.float32) + bk_ref[...]
    v = jnp.dot(x, wv_ref[...], preferred_element_type=jnp.float32) + bv_ref[...]
    # fold 1/sqrt(dk) into q (S x G*dk elements) instead of the (S,S) scores
    q = (q * scale).astype(jnp.bfloat16)
    k = k.astype(jnp.bfloat16)
    v = v.astype(jnp.bfloat16)

    n_heads = q.shape[-1] // dk
    ctxs = []
    for h in range(n_heads):               # static unrolled per-head loop
        sl = slice(h * dk, (h + 1) * dk)
        s = jnp.einsum('qd,kd->qk', q[:, sl], k[:, sl],
                       preferred_element_type=jnp.float32) + bias
        m = jnp.max(s, axis=-1, keepdims=True)
        e = jnp.exp(s - m)
        # approx reciprocal on EUP: ~1e-3 rel deviation vs exact softmax
        p = e * pl.reciprocal(jnp.sum(e, axis=-1, keepdims=True), approx=True)
        ctxs.append(jnp.dot(p.astype(jnp.bfloat16), v[:, sl],
                            preferred_element_type=jnp.float32))
    ctx = jnp.concatenate(ctxs, axis=-1) if n_heads > 1 else ctxs[0]

    # this group's slice of the output projection: contraction K = G*dk
    acc_ref[...] += jnp.dot(ctx.astype(jnp.bfloat16), wo_ref[...],
                            preferred_element_type=jnp.float32)

    @pl.when(grp == pl.num_programs(1) - 1)
    def _():
        attn = acc_ref[...] + bo_ref[...] + x.astype(jnp.float32)
        o_ref[0] = _layernorm(attn, g_ref[...], b_ref[...]).astype(o_ref.dtype)


def ffn_layer_kernel(h_ref, w1_ref, b1_ref, w2_ref, b2_ref, g_ref, b_ref,
                     o_ref):
    """Grid = (batch, seq-tiles).  GELU MLP + residual + LayerNorm."""
    h1 = h_ref[0]                                         # (TS, D) bf16
    f = jnp.dot(h1, w1_ref[...],
                preferred_element_type=jnp.float32) + b1_ref[...]
    f = _gelu_exact(f)
    f = jnp.dot(f.astype(jnp.bfloat16), w2_ref[...],
                preferred_element_type=jnp.float32) + b2_ref[...]
    out = f + h1.astype(jnp.float32)
    o_ref[0] = _layernorm(out, g_ref[...], b_ref[...]).astype(o_ref.dtype)


def mlm_lse_kernel(x_ref, w_ref, b_ref, lse_ref, m_sc, l_sc):
    """Grid = (batch, vocab-tiles).  Streams vocab tiles and keeps only an
    online (max, sum-exp) running in VMEM scratch; emits the log-sum-exp at
    the last tile.  Logits are NOT written to HBM."""
    vt = pl.program_id(1)

    @pl.when(vt == 0)
    def _():
        m_sc[...] = jnp.full_like(m_sc, -jnp.inf)
        l_sc[...] = jnp.zeros_like(l_sc)

    logits = jnp.dot(x_ref[0], w_ref[...],
                     preferred_element_type=jnp.float32) + b_ref[...]
    m_prev = m_sc[...]
    m_new = jnp.maximum(m_prev, jnp.max(logits, axis=-1, keepdims=True))
    l_sc[...] = (l_sc[...] * jnp.exp(m_prev - m_new)
                 + jnp.sum(jnp.exp(logits - m_new), axis=-1, keepdims=True))
    m_sc[...] = m_new

    @pl.when(vt == pl.num_programs(1) - 1)
    def _():
        lse_ref[0] = m_sc[...] + jnp.log(l_sc[...])


def mlm_logprob_kernel(x_ref, w_ref, b_ref, lse_ref, o_ref):
    """Grid = (batch, vocab-tiles).  Recomputes the logits for one vocab tile
    and writes normalized log-probs once (single HBM pass over B*S*V)."""
    logits = jnp.dot(x_ref[0], w_ref[...],
                     preferred_element_type=jnp.float32) + b_ref[...]
    o_ref[0] = logits - lse_ref[0]


# ----------------------------- wrappers ------------------------------------

def encoder_layer(x, att_bias, lp, heads):
    B, S, D = x.shape
    assert D % heads == 0
    dk = D // heads
    FF = lp['w1'].shape[1]
    scale = 1.0 / math.sqrt(dk)

    ng = _num_head_groups(heads, dk)      # head-groups streamed per batch row
    gw = D // ng                          # group width = G*dk

    batch_blk = lambda b, g: (b, 0, 0)
    grp_cols = lambda b, g: (0, g)        # columns of the original (D,D) weight
    grp_rows = lambda b, g: (g, 0)        # rows of the original (D,D) weight
    const2 = lambda b, g: (0, 0)

    h1 = pl.pallas_call(
        functools.partial(attn_layer_kernel, scale, dk),
        out_shape=jax.ShapeDtypeStruct((B, S, D), jnp.bfloat16),
        grid=(B, ng),
        in_specs=[
            pl.BlockSpec((1, S, D), batch_blk),     # x
            pl.BlockSpec((1, 1, S), batch_blk),     # additive mask bias
            pl.BlockSpec((D, gw), grp_cols),        # wq (group columns)
            pl.BlockSpec((1, gw), grp_cols),        # bq
            pl.BlockSpec((D, gw), grp_cols),        # wk
            pl.BlockSpec((1, gw), grp_cols),        # bk
            pl.BlockSpec((D, gw), grp_cols),        # wv
            pl.BlockSpec((1, gw), grp_cols),        # bv
            pl.BlockSpec((gw, D), grp_rows),        # wo (group rows)
            pl.BlockSpec((1, D), const2),           # bo
            pl.BlockSpec((1, D), const2),           # ln_g
            pl.BlockSpec((1, D), const2),           # ln_b
        ],
        out_specs=pl.BlockSpec((1, S, D), batch_blk),
        scratch_shapes=[pltpu.VMEM((S, D), jnp.float32)],
        compiler_params=pltpu.CompilerParams(
            dimension_semantics=("parallel", "arbitrary")),
    )(x, att_bias, lp['wq'], lp['bq'], lp['wk'], lp['bk'], lp['wv'], lp['bv'],
      lp['wo'], lp['bo'], lp['ln_g'], lp['ln_b'])

    TS = _seq_tile(S)
    seq_blk = lambda b, s: (b, s, 0)
    const2s = lambda b, s: (0, 0)

    # (B, S-tiles) are both "parallel" -> plenty of megacore steps on v7x.
    return pl.pallas_call(
        ffn_layer_kernel,
        out_shape=jax.ShapeDtypeStruct((B, S, D), jnp.bfloat16),
        grid=(B, S // TS),
        in_specs=[
            pl.BlockSpec((1, TS, D), seq_blk),      # h1
            pl.BlockSpec((D, FF), const2s),         # w1
            pl.BlockSpec((1, FF), const2s),         # b1
            pl.BlockSpec((FF, D), const2s),         # w2
            pl.BlockSpec((1, D), const2s),          # b2
            pl.BlockSpec((1, D), const2s),          # ln_g
            pl.BlockSpec((1, D), const2s),          # ln_b
        ],
        out_specs=pl.BlockSpec((1, TS, D), seq_blk),
        compiler_params=pltpu.CompilerParams(
            dimension_semantics=("parallel", "parallel"),
            vmem_limit_bytes=_VMEM_LIMIT),
    )(h1, lp['w1'], lp['b1'], lp['w2'], lp['b2'], lp['ln_g'], lp['ln_b'])


def mlm_head(x, w, b, v_tile=None):
    """LSE-first log-softmax MLM head over the 128-padded vocabulary."""
    B, S, D = x.shape
    Vp = w.shape[1]                               # padded to a multiple of 128
    TV = _vocab_tile(Vp, v_tile or 2048)
    nvt = Vp // TV

    x_blk = pl.BlockSpec((1, S, D), lambda bi, vi: (bi, 0, 0))
    w_blk = pl.BlockSpec((D, TV), lambda bi, vi: (0, vi))
    b_blk = pl.BlockSpec((1, TV), lambda bi, vi: (0, vi))
    lse_blk = pl.BlockSpec((1, S, 1), lambda bi, vi: (bi, 0, 0))

    # Pass 1: online (max, sum-exp) only -- no logits HBM traffic.
    lse = pl.pallas_call(
        mlm_lse_kernel,
        out_shape=jax.ShapeDtypeStruct((B, S, 1), jnp.float32),
        grid=(B, nvt),
        in_specs=[x_blk, w_blk, b_blk],
        out_specs=lse_blk,
        scratch_shapes=[pltpu.VMEM((S, 1), jnp.float32),
                        pltpu.VMEM((S, 1), jnp.float32)],
        compiler_params=pltpu.CompilerParams(
            dimension_semantics=("parallel", "arbitrary"),
            vmem_limit_bytes=_VMEM_LIMIT),
    )(x, w, b)

    # Pass 2: recompute logits per tile, write normalized log-probs once.
    # TODO(synk): on v5e (197 TF/s) a single-matmul scheme with bf16 logits
    #             may beat recompute; keep LSE-first as the default (v6e/v7x).
    return pl.pallas_call(
        mlm_logprob_kernel,
        out_shape=jax.ShapeDtypeStruct((B, S, Vp), jnp.float32),
        grid=(B, nvt),
        in_specs=[x_blk, w_blk, b_blk, lse_blk],
        out_specs=pl.BlockSpec((1, S, TV), lambda bi, vi: (bi, 0, vi)),
        compiler_params=pltpu.CompilerParams(
            dimension_semantics=("parallel", "parallel"),
            vmem_limit_bytes=_VMEM_LIMIT),
    )(x, w, b, lse)


# ----------------------------- parameters ----------------------------------

def positional_embedding(d_model, max_len):
    # Exact port of the (unusual) PyTorch PositionalEmbedding formula.
    pe = np.zeros((max_len, d_model), dtype=np.float32)
    for pos in range(max_len):
        for i in range(0, d_model, 2):
            pe[pos, i] = math.sin(pos / 10000 ** (2 * i / d_model))
            pe[pos, i + 1] = math.cos(pos / 10000 ** (2 * (i + 1) / d_model))
    return jnp.asarray(pe)


def init_params(key, vocab_size, d_model, n_layers, ff_hidden, seq_len):
    keys = iter(jax.random.split(key, 12 * n_layers + 8))

    def wgt(shape):   # matmul weights -> bf16 (MXU-native inputs)
        w = 0.02 * jax.random.normal(next(keys), shape, jnp.float32)
        return w.astype(jnp.bfloat16)

    def bias(shape):  # biases stay f32 (added after f32 accumulation)
        return 0.02 * jax.random.normal(next(keys), shape, jnp.float32)

    tok = bias((vocab_size, d_model)).at[0].set(0.0)   # padding_idx=0
    seg = bias((3, d_model)).at[0].set(0.0)            # padding_idx=0
    pe = positional_embedding(d_model, seq_len)

    layers = []
    for _ in range(n_layers):
        layers.append(dict(
            wq=wgt((d_model, d_model)), bq=bias((1, d_model)),
            wk=wgt((d_model, d_model)), bk=bias((1, d_model)),
            wv=wgt((d_model, d_model)), bv=bias((1, d_model)),
            wo=wgt((d_model, d_model)), bo=bias((1, d_model)),
            ln_g=jnp.ones((1, d_model), jnp.float32),
            ln_b=jnp.zeros((1, d_model), jnp.float32),
            w1=wgt((d_model, ff_hidden)), b1=bias((1, ff_hidden)),
            w2=wgt((ff_hidden, d_model)), b2=bias((1, d_model)),
        ))

    # MLM weight/bias padded once at init to a multiple of 128 so the vocab
    # is always tiled; padded bias columns are -1e9 (contribute ~0 to LSE).
    v_pad = ((vocab_size + 127) // 128) * 128
    mlm_w = wgt((d_model, vocab_size))
    mlm_b = bias((1, vocab_size))
    if v_pad != vocab_size:
        mlm_w = jnp.pad(mlm_w, ((0, 0), (0, v_pad - vocab_size)))
        mlm_b = jnp.pad(mlm_b, ((0, 0), (0, v_pad - vocab_size)),
                        constant_values=-1e9)

    return dict(
        tok=tok, seg=seg, pe=pe, layers=layers,
        nsp_w=wgt((d_model, 2)), nsp_b=bias((1, 2)),
        mlm_w=mlm_w, mlm_b=mlm_b,
    )


# ----------------------------- forward --------------------------------------

def bertlm_forward(tokens, segments, params, heads, vocab_size,
                   mlm_v_tile=None):
    B, S = tokens.shape
    # PyTorch: mask = (x > 0).unsqueeze(1).repeat(1, S, 1).unsqueeze(1), used
    # as masked_fill(mask == 0, -1e9).  Equivalent additive key-bias (B,1,S):
    att_bias = jnp.where(tokens > 0, 0.0, -1e9).astype(jnp.float32)[:, None, :]

    # BERTEmbedding (glue): token + positional + segment; dropout = identity.
    x = (jnp.take(params['tok'], tokens, axis=0)
         + params['pe'][None, :, :]
         + jnp.take(params['seg'], segments, axis=0))
    x = x.astype(jnp.bfloat16)

    for lp in params['layers']:
        x = encoder_layer(x, att_bias, lp, heads)

    # NSP head in plain XLA: output width 2 (< 128 lanes) makes a dedicated
    # pallas_call all overhead (masked stores + pipeline setup).
    x0 = x[:, 0, :].astype(jnp.float32)
    nsp = jax.nn.log_softmax(
        jnp.dot(x0, params['nsp_w'].astype(jnp.float32)) + params['nsp_b'],
        axis=-1)

    mlm = mlm_head(x, params['mlm_w'], params['mlm_b'], v_tile=mlm_v_tile)
    return nsp, mlm[:, :, :vocab_size]       # drop padded vocab columns


# ----------------------------- main ------------------------------------------

if __name__ == "__main__":
    # small shapes consistent with the module's forward
    B, S, D = 2, 8, 32
    HEADS, N_LAYERS = 4, 2
    FF = 4 * D
    VOCAB = 512

    key = jax.random.PRNGKey(0)
    k_tok, k_seg, k_param = jax.random.split(key, 3)

    tokens = jax.random.randint(k_tok, (B, S), 1, VOCAB, dtype=jnp.int32)
    tokens = tokens.at[:, -2:].set(0)          # some padding to exercise mask
    segments = jax.random.randint(k_seg, (B, S), 0, 3, dtype=jnp.int32)

    params = init_params(k_param, VOCAB, D, N_LAYERS, FF, S)

    # mlm_v_tile=128 -> 4 vocab tiles, exercising the online log-sum-exp path
    fwd = jax.jit(functools.partial(bertlm_forward, heads=HEADS,
                                    vocab_size=VOCAB, mlm_v_tile=128))
    nsp_out, mlm_out = fwd(tokens, segments, params)
    jax.block_until_ready((nsp_out, mlm_out))

    assert nsp_out.shape == (B, 2)
    assert mlm_out.shape == (B, S, VOCAB)
    # log-softmax rows must sum to ~1 in probability space
    assert np.allclose(np.exp(np.asarray(nsp_out)).sum(-1), 1.0, atol=1e-4)
    assert np.allclose(np.exp(np.asarray(mlm_out)).sum(-1), 1.0, atol=1e-4)

    print("KERNEL_OK")
</pallas_src>

<mosaic_0001>
module attributes {stable_mosaic.version = 11 : i64} {
  func.func @mlm_logprob_kernel(%arg0: i32, %arg1: i32, %arg2: memref<1x8x32xbf16, #tpu.memory_space<vmem>>, %arg3: memref<32x128xbf16, #tpu.memory_space<vmem>>, %arg4: memref<1x128xf32, #tpu.memory_space<vmem>>, %arg5: memref<1x8x1xf32, #tpu.memory_space<vmem>>, %arg6: memref<1x8x128xf32, #tpu.memory_space<vmem>>) attributes {dimension_semantics = [#tpu.dimension_semantics<parallel>, #tpu.dimension_semantics<parallel>], iteration_bounds = array<i64: 2, 4>, scalar_prefetch = 0 : i64, scratch_operands = 0 : i64, tpu.core_type = #tpu.core_type<tc>, window_params = [{transform_indices = @transform_0, window_bounds = array<i64: 1, 8, 32>}, {transform_indices = @transform_1, window_bounds = array<i64: 32, 128>}, {transform_indices = @transform_2, window_bounds = array<i64: 1, 128>}, {transform_indices = @transform_3, window_bounds = array<i64: 1, 8, 1>}, {transform_indices = @transform_4, window_bounds = array<i64: 1, 8, 128>}]} {
    %c0 = arith.constant 0 : index
    %c0_0 = arith.constant 0 : index
    %c0_1 = arith.constant 0 : index
    %0 = vector.load %arg2[%c0, %c0_0, %c0_1] : memref<1x8x32xbf16, #tpu.memory_space<vmem>>, vector<1x8x32xbf16>
    %1 = vector.shape_cast %0 : vector<1x8x32xbf16> to vector<8x32xbf16>
    %c0_2 = arith.constant 0 : index
    %c0_3 = arith.constant 0 : index
    %2 = vector.load %arg3[%c0_2, %c0_3] : memref<32x128xbf16, #tpu.memory_space<vmem>>, vector<32x128xbf16>
    %cst = arith.constant dense<0.000000e+00> : vector<8x128xf32>
    %3 = tpu.matmul %1, %2, %cst {dimension_numbers = #tpu.dot_dimension_numbers<[1], [0], [0], [1], [0, 0, 1, 1], [], []>} : vector<8x32xbf16>, vector<32x128xbf16>, vector<8x128xf32> -> vector<8x128xf32>
    %c0_4 = arith.constant 0 : index
    %c0_5 = arith.constant 0 : index
    %4 = vector.load %arg4[%c0_4, %c0_5] : memref<1x128xf32, #tpu.memory_space<vmem>>, vector<1x128xf32>
    %5 = vector.broadcast %4 : vector<1x128xf32> to vector<8x128xf32>
    %6 = arith.addf %3, %5 : vector<8x128xf32>
    %c0_6 = arith.constant 0 : index
    %c0_7 = arith.constant 0 : index
    %c0_8 = arith.constant 0 : index
    %7 = vector.load %arg5[%c0_6, %c0_7, %c0_8] : memref<1x8x1xf32, #tpu.memory_space<vmem>>, vector<1x8x1xf32>
    %8 = vector.shape_cast %7 : vector<1x8x1xf32> to vector<8x1xf32>
    %9 = vector.broadcast %8 : vector<8x1xf32> to vector<8x128xf32>
    %10 = arith.subf %6, %9 : vector<8x128xf32>
    %c0_9 = arith.constant 0 : index
    %c0_10 = arith.constant 0 : index
    %c0_11 = arith.constant 0 : index
    %11 = vector.load %arg6[%c0_9, %c0_10, %c0_11] : memref<1x8x128xf32, #tpu.memory_space<vmem>>, vector<1x8x128xf32>
    %12 = vector.shape_cast %11 : vector<1x8x128xf32> to vector<8x128xf32>
    %13 = vector.shape_cast %10 : vector<8x128xf32> to vector<1x8x128xf32>
    tpu.vector_store %arg6[%c0_9, %c0_10, %c0_11], %13 {strides = array<i32>} : memref<1x8x128xf32, #tpu.memory_space<vmem>>, vector<1x8x128xf32>,
    return
  }
  func.func @transform_0(%arg0: i32, %arg1: i32) -> (i32, i32, i32) {
    %c0_i32 = arith.constant 0 : i32
    %c0_i32_0 = arith.constant 0 : i32
    %c0_i32_1 = arith.constant 0 : i32
    return %arg0, %c0_i32, %c0_i32_0 : i32, i32, i32
  }
  func.func @transform_1(%arg0: i32, %arg1: i32) -> (i32, i32) {
    %c0_i32 = arith.constant 0 : i32
    %c0_i32_0 = arith.constant 0 : i32
    return %c0_i32, %arg1 : i32, i32
  }
  func.func @transform_2(%arg0: i32, %arg1: i32) -> (i32, i32) {
    %c0_i32 = arith.constant 0 : i32
    %c0_i32_0 = arith.constant 0 : i32
    return %c0_i32, %arg1 : i32, i32
  }
  func.func @transform_3(%arg0: i32, %arg1: i32) -> (i32, i32, i32) {
    %c0_i32 = arith.constant 0 : i32
    %c0_i32_0 = arith.constant 0 : i32
    %c0_i32_1 = arith.constant 0 : i32
    return %arg0, %c0_i32, %c0_i32_0 : i32, i32, i32
  }
  func.func @transform_4(%arg0: i32, %arg1: i32) -> (i32, i32, i32) {
    %c0_i32 = arith.constant 0 : i32
    %c0_i32_0 = arith.constant 0 : i32
    return %arg0, %c0_i32, %arg1 : i32, i32, i32
  }
}

module attributes {stable_mosaic.version = 11 : i64} {
  func.func @ffn_layer_kernel(%arg0: i32, %arg1: i32, %arg2: memref<1x8x32xbf16, #tpu.memory_space<vmem>>, %arg3: memref<32x128xbf16, #tpu.memory_space<vmem>>, %arg4: memref<1x128xf32, #tpu.memory_space<vmem>>, %arg5: memref<128x32xbf16, #tpu.memory_space<vmem>>, %arg6: memref<1x32xf32, #tpu.memory_space<vmem>>, %arg7: memref<1x32xf32, #tpu.memory_space<vmem>>, %arg8: memref<1x32xf32, #tpu.memory_space<vmem>>, %arg9: memref<1x8x32xbf16, #tpu.memory_space<vmem>>) attributes {dimension_semantics = [#tpu.dimension_semantics<parallel>, #tpu.dimension_semantics<parallel>], iteration_bounds = array<i64: 2, 1>, scalar_prefetch = 0 : i64, scratch_operands = 0 : i64, tpu.core_type = #tpu.core_type<tc>, window_params = [{transform_indices = @transform_0, window_bounds = array<i64: 1, 8, 32>}, {pipeline_mode = #tpu.pipeline_mode<synchronous>, transform_indices = @transform_1, window_bounds = array<i64: 32, 128>}, {pipeline_mode = #tpu.pipeline_mode<synchronous>, transform_indices = @transform_2, window_bounds = array<i64: 1, 128>}, {pipeline_mode = #tpu.pipeline_mode<synchronous>, transform_indices = @transform_3, window_bounds = array<i64: 128, 32>}, {pipeline_mode = #tpu.pipeline_mode<synchronous>, transform_indices = @transform_4, window_bounds = array<i64: 1, 32>}, {pipeline_mode = #tpu.pipeline_mode<synchronous>, transform_indices = @transform_5, window_bounds = array<i64: 1, 32>}, {pipeline_mode = #tpu.pipeline_mode<synchronous>, transform_indices = @transform_6, window_bounds = array<i64: 1, 32>}, {transform_indices = @transform_7, window_bounds = array<i64: 1, 8, 32>}]} {
    %c0 = arith.constant 0 : index
    %c0_0 = arith.constant 0 : index
    %c0_1 = arith.constant 0 : index
    %0 = vector.load %arg2[%c0, %c0_0, %c0_1] : memref<1x8x32xbf16, #tpu.memory_space<vmem>>, vector<1x8x32xbf16>
    %1 = vector.shape_cast %0 : vector<1x8x32xbf16> to vector<8x32xbf16>
    %c0_2 = arith.constant 0 : index
    %c0_3 = arith.constant 0 : index
    %2 = vector.load %arg3[%c0_2, %c0_3] : memref<32x128xbf16, #tpu.memory_space<vmem>>, vector<32x128xbf16>
    %cst = arith.constant dense<0.000000e+00> : vector<8x128xf32>
    %3 = tpu.matmul %1, %2, %cst {dimension_numbers = #tpu.dot_dimension_numbers<[1], [0], [0], [1], [0, 0, 1, 1], [], []>} : vector<8x32xbf16>, vector<32x128xbf16>, vector<8x128xf32> -> vector<8x128xf32>
    %c0_4 = arith.constant 0 : index
    %c0_5 = arith.constant 0 : index
    %4 = vector.load %arg4[%c0_4, %c0_5] : memref<1x128xf32, #tpu.memory_space<vmem>>, vector<1x128xf32>
    %5 = vector.broadcast %4 : vector<1x128xf32> to vector<8x128xf32>
    %6 = arith.addf %3, %5 : vector<8x128xf32>
    %cst_6 = arith.constant 5.000000e-01 : f32
    %7 = vector.broadcast %cst_6 : f32 to vector<8x128xf32>
    %8 = arith.mulf %7, %6 : vector<8x128xf32>
    %cst_7 = arith.constant 0.707106769 : f32
    %9 = vector.broadcast %cst_7 : f32 to vector<8x128xf32>
    %10 = arith.mulf %6, %9 : vector<8x128xf32>
    %11 = math.erf %10 : vector<8x128xf32>
    %cst_8 = arith.constant 1.000000e+00 : f32
    %12 = vector.broadcast %cst_8 : f32 to vector<8x128xf32>
    %13 = arith.addf %12, %11 : vector<8x128xf32>
    %14 = arith.mulf %8, %13 : vector<8x128xf32>
    %15 = arith.truncf %14 : vector<8x128xf32> to vector<8x128xbf16>
    %c0_9 = arith.constant 0 : index
    %c0_10 = arith.constant 0 : index
    %16 = vector.load %arg5[%c0_9, %c0_10] : memref<128x32xbf16, #tpu.memory_space<vmem>>, vector<128x32xbf16>
    %cst_11 = arith.constant dense<0.000000e+00> : vector<8x32xf32>
    %17 = tpu.matmul %15, %16, %cst_11 {dimension_numbers = #tpu.dot_dimension_numbers<[1], [0], [0], [1], [0, 0, 1, 1], [], []>} : vector<8x128xbf16>, vector<128x32xbf16>, vector<8x32xf32> -> vector<8x32xf32>
    %c0_12 = arith.constant 0 : index
    %c0_13 = arith.constant 0 : index
    %18 = vector.load %arg6[%c0_12, %c0_13] : memref<1x32xf32, #tpu.memory_space<vmem>>, vector<1x32xf32>
    %19 = vector.broadcast %18 : vector<1x32xf32> to vector<8x32xf32>
    %20 = arith.addf %17, %19 : vector<8x32xf32>
    %21 = arith.extf %1 : vector<8x32xbf16> to vector<8x32xf32>
    %22 = arith.addf %20, %21 : vector<8x32xf32>
    %c0_14 = arith.constant 0 : index
    %c0_15 = arith.constant 0 : index
    %23 = vector.load %arg7[%c0_14, %c0_15] : memref<1x32xf32, #tpu.memory_space<vmem>>, vector<1x32xf32>
    %c0_16 = arith.constant 0 : index
    %c0_17 = arith.constant 0 : index
    %24 = vector.load %arg8[%c0_16, %c0_17] : memref<1x32xf32, #tpu.memory_space<vmem>>, vector<1x32xf32>
    %cst_18 = arith.constant dense<0.000000e+00> : vector<8xf32>
    %25 = vector.multi_reduction <add>, %22, %cst_18 [1] : vector<8x32xf32> to vector<8xf32>
    %26 = vector.shape_cast %25 : vector<8xf32> to vector<8x1xf32>
    %cst_19 = arith.constant 3.200000e+01 : f32
    %27 = vector.broadcast %cst_19 : f32 to vector<8x1xf32>
    %28 = arith.divf %26, %27 : vector<8x1xf32>
    %29 = vector.broadcast %28 : vector<8x1xf32> to vector<8x32xf32>
    %30 = arith.subf %22, %29 : vector<8x32xf32>
    %31 = arith.mulf %30, %30 : vector<8x32xf32>
    %cst_20 = arith.constant dense<0.000000e+00> : vector<8xf32>
    %32 = vector.multi_reduction <add>, %31, %cst_20 [1] : vector<8x32xf32> to vector<8xf32>
    %33 = vector.shape_cast %32 : vector<8xf32> to vector<8x1xf32>
    %cst_21 = arith.constant 3.200000e+01 : f32
    %34 = vector.broadcast %cst_21 : f32 to vector<8x1xf32>
    %35 = arith.divf %33, %34 : vector<8x1xf32>
    %36 = vector.broadcast %28 : vector<8x1xf32> to vector<8x32xf32>
    %37 = arith.subf %22, %36 : vector<8x32xf32>
    %cst_22 = arith.constant 9.99999974E-6 : f32
    %38 = vector.broadcast %cst_22 : f32 to vector<8x1xf32>
    %39 = arith.addf %35, %38 : vector<8x1xf32>
    %40 = math.rsqrt %39 : vector<8x1xf32>
    %41 = vector.broadcast %40 : vector<8x1xf32> to vector<8x32xf32>
    %42 = arith.mulf %37, %41 : vector<8x32xf32>
    %43 = vector.broadcast %23 : vector<1x32xf32> to vector<8x32xf32>
    %44 = arith.mulf %42, %43 : vector<8x32xf32>
    %45 = vector.broadcast %24 : vector<1x32xf32> to vector<8x32xf32>
    %46 = arith.addf %44, %45 : vector<8x32xf32>
    %47 = arith.truncf %46 : vector<8x32xf32> to vector<8x32xbf16>
    %c0_23 = arith.constant 0 : index
    %c0_24 = arith.constant 0 : index
    %c0_25 = arith.constant 0 : index
    %48 = vector.load %arg9[%c0_23, %c0_24, %c0_25] : memref<1x8x32xbf16, #tpu.memory_space<vmem>>, vector<1x8x32xbf16>
    %49 = vector.shape_cast %48 : vector<1x8x32xbf16> to vector<8x32xbf16>
    %50 = vector.shape_cast %47 : vector<8x32xbf16> to vector<1x8x32xbf16>
    tpu.vector_store %arg9[%c0_23, %c0_24, %c0_25], %50 {strides = array<i32>} : memref<1x8x32xbf16, #tpu.memory_space<vmem>>, vector<1x8x32xbf16>,
    return
  }
  func.func @transform_0(%arg0: i32, %arg1: i32) -> (i32, i32, i32) {
    %c0_i32 = arith.constant 0 : i32
    %c0_i32_0 = arith.constant 0 : i32
    return %arg0, %arg1, %c0_i32 : i32, i32, i32
  }
  func.func @transform_1(%arg0: i32, %arg1: i32) -> (i32, i32) {
    %c0_i32 = arith.constant 0 : i32
    %c0_i32_0 = arith.constant 0 : i32
    %c0_i32_1 = arith.constant 0 : i32
    return %c0_i32, %c0_i32_0 : i32, i32
  }
  func.func @transform_2(%arg0: i32, %arg1: i32) -> (i32, i32) {
    %c0_i32 = arith.constant 0 : i32
    %c0_i32_0 = arith.constant 0 : i32
    %c0_i32_1 = arith.constant 0 : i32
    return %c0_i32, %c0_i32_0 : i32, i32
  }
  func.func @transform_3(%arg0: i32, %arg1: i32) -> (i32, i32) {
    %c0_i32 = arith.constant 0 : i32
    %c0_i32_0 = arith.constant 0 : i32
    %c0_i32_1 = arith.constant 0 : i32
    return %c0_i32, %c0_i32_0 : i32, i32
  }
  func.func @transform_4(%arg0: i32, %arg1: i32) -> (i32, i32) {
    %c0_i32 = arith.constant 0 : i32
    %c0_i32_0 = arith.constant 0 : i32
    %c0_i32_1 = arith.constant 0 : i32
    return %c0_i32, %c0_i32_0 : i32, i32
  }
  func.func @transform_5(%arg0: i32, %arg1: i32) -> (i32, i32) {
    %c0_i32 = arith.constant 0 : i32
    %c0_i32_0 = arith.constant 0 : i32
    %c0_i32_1 = arith.constant 0 : i32
    return %c0_i32, %c0_i32_0 : i32, i32
  }
  func.func @transform_6(%arg0: i32, %arg1: i32) -> (i32, i32) {
    %c0_i32 = arith.constant 0 : i32
    %c0_i32_0 = arith.constant 0 : i32
    %c0_i32_1 = arith.constant 0 : i32
    return %c0_i32, %c0_i32_0 : i32, i32
  }
  func.func @transform_7(%arg0: i32, %arg1: i32) -> (i32, i32, i32) {
    %c0_i32 = arith.constant 0 : i32
    %c0_i32_0 = arith.constant 0 : i32
    return %arg0, %arg1, %c0_i32 : i32, i32, i32
  }
}

module attributes {stable_mosaic.version = 11 : i64} {
  func.func @attn_layer_kernel(%arg0: i32, %arg1: i32, %arg2: memref<1x8x32xbf16, #tpu.memory_space<vmem>>, %arg3: memref<1x1x8xf32, #tpu.memory_space<vmem>>, %arg4: memref<32x32xbf16, #tpu.memory_space<vmem>>, %arg5: memref<1x32xf32, #tpu.memory_space<vmem>>, %arg6: memref<32x32xbf16, #tpu.memory_space<vmem>>, %arg7: memref<1x32xf32, #tpu.memory_space<vmem>>, %arg8: memref<32x32xbf16, #tpu.memory_space<vmem>>, %arg9: memref<1x32xf32, #tpu.memory_space<vmem>>, %arg10: memref<32x32xbf16, #tpu.memory_space<vmem>>, %arg11: memref<1x32xf32, #tpu.memory_space<vmem>>, %arg12: memref<1x32xf32, #tpu.memory_space<vmem>>, %arg13: memref<1x32xf32, #tpu.memory_space<vmem>>, %arg14: memref<1x8x32xbf16, #tpu.memory_space<vmem>>, %arg15: memref<8x32xf32, #tpu.memory_space<vmem>>) attributes {dimension_semantics = [#tpu.dimension_semantics<parallel>, #tpu.dimension_semantics<arbitrary>], iteration_bounds = array<i64: 2, 1>, scalar_prefetch = 0 : i64, scratch_operands = 1 : i64, tpu.core_type = #tpu.core_type<tc>, window_params = [{transform_indices = @transform_0, window_bounds = array<i64: 1, 8, 32>}, {transform_indices = @transform_1, window_bounds = array<i64: 1, 1, 8>}, {transform_indices = @transform_2, window_bounds = array<i64: 32, 32>}, {transform_indices = @transform_3, window_bounds = array<i64: 1, 32>}, {transform_indices = @transform_4, window_bounds = array<i64: 32, 32>}, {transform_indices = @transform_5, window_bounds = array<i64: 1, 32>}, {transform_indices = @transform_6, window_bounds = array<i64: 32, 32>}, {transform_indices = @transform_7, window_bounds = array<i64: 1, 32>}, {transform_indices = @transform_8, window_bounds = array<i64: 32, 32>}, {pipeline_mode = #tpu.pipeline_mode<synchronous>, transform_indices = @transform_9, window_bounds = array<i64: 1, 32>}, {pipeline_mode = #tpu.pipeline_mode<synchronous>, transform_indices = @transform_10, window_bounds = array<i64: 1, 32>}, {pipeline_mode = #tpu.pipeline_mode<synchronous>, transform_indices = @transform_11, window_bounds = array<i64: 1, 32>}, {transform_indices = @transform_12, window_bounds = array<i64: 1, 8, 32>}]} {
    %c0_i32 = arith.constant 0 : i32
    %0 = arith.cmpi eq, %arg1, %c0_i32 : i32
    %1 = arith.extui %0 : i1 to i32
    %c0_i32_0 = arith.constant 0 : i32
    %2 = arith.cmpi ne, %1, %c0_i32_0 : i32
    scf.if %2 {
      %cst_46 = arith.constant 0.000000e+00 : f32
      %109 = vector.broadcast %cst_46 : f32 to vector<8x32xf32>
      %c0_47 = arith.constant 0 : index
      %c0_48 = arith.constant 0 : index
      %110 = vector.load %arg15[%c0_47, %c0_48] : memref<8x32xf32, #tpu.memory_space<vmem>>, vector<8x32xf32>
      tpu.vector_store %arg15[%c0_47, %c0_48], %109 {strides = array<i32>} : memref<8x32xf32, #tpu.memory_space<vmem>>, vector<8x32xf32>,
    } else {
    }
    %c0 = arith.constant 0 : index
    %c0_1 = arith.constant 0 : index
    %c0_2 = arith.constant 0 : index
    %3 = vector.load %arg2[%c0, %c0_1, %c0_2] : memref<1x8x32xbf16, #tpu.memory_space<vmem>>, vector<1x8x32xbf16>
    %4 = vector.shape_cast %3 : vector<1x8x32xbf16> to vector<8x32xbf16>
    %c0_3 = arith.constant 0 : index
    %c0_4 = arith.constant 0 : index
    %c0_5 = arith.constant 0 : index
    %5 = vector.load %arg3[%c0_3, %c0_4, %c0_5] : memref<1x1x8xf32, #tpu.memory_space<vmem>>, vector<1x1x8xf32>
    %6 = vector.shape_cast %5 : vector<1x1x8xf32> to vector<1x8xf32>
    %c0_6 = arith.constant 0 : index
    %c0_7 = arith.constant 0 : index
    %7 = vector.load %arg4[%c0_6, %c0_7] : memref<32x32xbf16, #tpu.memory_space<vmem>>, vector<32x32xbf16>
    %cst = arith.constant dense<0.000000e+00> : vector<8x32xf32>
    %8 = tpu.matmul %4, %7, %cst {dimension_numbers = #tpu.dot_dimension_numbers<[1], [0], [0], [1], [0, 0, 1, 1], [], []>} : vector<8x32xbf16>, vector<32x32xbf16>, vector<8x32xf32> -> vector<8x32xf32>
    %c0_8 = arith.constant 0 : index
    %c0_9 = arith.constant 0 : index
    %9 = vector.load %arg5[%c0_8, %c0_9] : memref<1x32xf32, #tpu.memory_space<vmem>>, vector<1x32xf32>
    %10 = vector.broadcast %9 : vector<1x32xf32> to vector<8x32xf32>
    %11 = arith.addf %8, %10 : vector<8x32xf32>
    %c0_10 = arith.constant 0 : index
    %c0_11 = arith.constant 0 : index
    %12 = vector.load %arg6[%c0_10, %c0_11] : memref<32x32xbf16, #tpu.memory_space<vmem>>, vector<32x32xbf16>
    %cst_12 = arith.constant dense<0.000000e+00> : vector<8x32xf32>
    %13 = tpu.matmul %4, %12, %cst_12 {dimension_numbers = #tpu.dot_dimension_numbers<[1], [0], [0], [1], [0, 0, 1, 1], [], []>} : vector<8x32xbf16>, vector<32x32xbf16>, vector<8x32xf32> -> vector<8x32xf32>
    %c0_13 = arith.constant 0 : index
    %c0_14 = arith.constant 0 : index
    %14 = vector.load %arg7[%c0_13, %c0_14] : memref<1x32xf32, #tpu.memory_space<vmem>>, vector<1x32xf32>
    %15 = vector.broadcast %14 : vector<1x32xf32> to vector<8x32xf32>
    %16 = arith.addf %13, %15 : vector<8x32xf32>
    %c0_15 = arith.constant 0 : index
    %c0_16 = arith.constant 0 : index
    %17 = vector.load %arg8[%c0_15, %c0_16] : memref<32x32xbf16, #tpu.memory_space<vmem>>, vector<32x32xbf16>
    %cst_17 = arith.constant dense<0.000000e+00> : vector<8x32xf32>
    %18 = tpu.matmul %4, %17, %cst_17 {dimension_numbers = #tpu.dot_dimension_numbers<[1], [0], [0], [1], [0, 0, 1, 1], [], []>} : vector<8x32xbf16>, vector<32x32xbf16>, vector<8x32xf32> -> vector<8x32xf32>
    %c0_18 = arith.constant 0 : index
    %c0_19 = arith.constant 0 : index
    %19 = vector.load %arg9[%c0_18, %c0_19] : memref<1x32xf32, #tpu.memory_space<vmem>>, vector<1x32xf32>
    %20 = vector.broadcast %19 : vector<1x32xf32> to vector<8x32xf32>
    %21 = arith.addf %18, %20 : vector<8x32xf32>
    %cst_20 = arith.constant 0.353553385 : f32
    %22 = vector.broadcast %cst_20 : f32 to vector<8x32xf32>
    %23 = arith.mulf %11, %22 : vector<8x32xf32>
    %24 = arith.truncf %23 : vector<8x32xf32> to vector<8x32xbf16>
    %25 = arith.truncf %16 : vector<8x32xf32> to vector<8x32xbf16>
    %26 = arith.truncf %21 : vector<8x32xf32> to vector<8x32xbf16>
    %27 = vector.extract_strided_slice %24 {offsets = [0, 0], sizes = [8, 8], strides = [1, 1]} : vector<8x32xbf16> to vector<8x8xbf16>
    %28 = vector.extract_strided_slice %25 {offsets = [0, 0], sizes = [8, 8], strides = [1, 1]} : vector<8x32xbf16> to vector<8x8xbf16>
    "tpu.trace_start"() <{level = 10 : i32, message = "qd,kd->qk"}> : () -> ()
    %cst_21 = arith.constant dense<0.000000e+00> : vector<8x8xf32>
    %29 = tpu.matmul %27, %28, %cst_21 {dimension_numbers = #tpu.dot_dimension_numbers<[1], [1], [0], [0], [0, 0, 1, 0], [], []>} : vector<8x8xbf16>, vector<8x8xbf16>, vector<8x8xf32> -> vector<8x8xf32>
    "tpu.trace_stop"() : () -> ()
    %30 = vector.broadcast %6 : vector<1x8xf32> to vector<8x8xf32>
    %31 = arith.addf %29, %30 : vector<8x8xf32>
    %cst_22 = arith.constant dense<0xFF800000> : vector<8xf32>
    %32 = vector.multi_reduction <maximumf>, %31, %cst_22 [1] : vector<8x8xf32> to vector<8xf32>
    %33 = vector.shape_cast %32 : vector<8xf32> to vector<8x1xf32>
    %34 = vector.broadcast %33 : vector<8x1xf32> to vector<8x8xf32>
    %35 = arith.subf %31, %34 : vector<8x8xf32>
    %36 = math.exp %35 : vector<8x8xf32>
    %cst_23 = arith.constant dense<0.000000e+00> : vector<8xf32>
    %37 = vector.multi_reduction <add>, %36, %cst_23 [1] : vector<8x8xf32> to vector<8xf32>
    %38 = vector.shape_cast %37 : vector<8xf32> to vector<8x1xf32>
    %39 = tpu.reciprocal %38 {approx = true} : vector<8x1xf32> -> vector<8x1xf32>
    %40 = vector.broadcast %39 : vector<8x1xf32> to vector<8x8xf32>
    %41 = arith.mulf %36, %40 : vector<8x8xf32>
    %42 = arith.truncf %41 : vector<8x8xf32> to vector<8x8xbf16>
    %43 = vector.extract_strided_slice %26 {offsets = [0, 0], sizes = [8, 8], strides = [1, 1]} : vector<8x32xbf16> to vector<8x8xbf16>
    %cst_24 = arith.constant dense<0.000000e+00> : vector<8x8xf32>
    %44 = tpu.matmul %42, %43, %cst_24 {dimension_numbers = #tpu.dot_dimension_numbers<[1], [0], [0], [1], [0, 0, 1, 1], [], []>} : vector<8x8xbf16>, vector<8x8xbf16>, vector<8x8xf32> -> vector<8x8xf32>
    %45 = vector.extract_strided_slice %24 {offsets = [0, 8], sizes = [8, 8], strides = [1, 1]} : vector<8x32xbf16> to vector<8x8xbf16>
    %46 = vector.extract_strided_slice %25 {offsets = [0, 8], sizes = [8, 8], strides = [1, 1]} : vector<8x32xbf16> to vector<8x8xbf16>
    "tpu.trace_start"() <{level = 10 : i32, message = "qd,kd->qk"}> : () -> ()
    %cst_25 = arith.constant dense<0.000000e+00> : vector<8x8xf32>
    %47 = tpu.matmul %45, %46, %cst_25 {dimension_numbers = #tpu.dot_dimension_numbers<[1], [1], [0], [0], [0, 0, 1, 0], [], []>} : vector<8x8xbf16>, vector<8x8xbf16>, vector<8x8xf32> -> vector<8x8xf32>
    "tpu.trace_stop"() : () -> ()
    %48 = vector.broadcast %6 : vector<1x8xf32> to vector<8x8xf32>
    %49 = arith.addf %47, %48 : vector<8x8xf32>
    %cst_26 = arith.constant dense<0xFF800000> : vector<8xf32>
    %50 = vector.multi_reduction <maximumf>, %49, %cst_26 [1] : vector<8x8xf32> to vector<8xf32>
    %51 = vector.shape_cast %50 : vector<8xf32> to vector<8x1xf32>
    %52 = vector.broadcast %51 : vector<8x1xf32> to vector<8x8xf32>
    %53 = arith.subf %49, %52 : vector<8x8xf32>
    %54 = math.exp %53 : vector<8x8xf32>
    %cst_27 = arith.constant dense<0.000000e+00> : vector<8xf32>
    %55 = vector.multi_reduction <add>, %54, %cst_27 [1] : vector<8x8xf32> to vector<8xf32>
    %56 = vector.shape_cast %55 : vector<8xf32> to vector<8x1xf32>
    %57 = tpu.reciprocal %56 {approx = true} : vector<8x1xf32> -> vector<8x1xf32>
    %58 = vector.broadcast %57 : vector<8x1xf32> to vector<8x8xf32>
    %59 = arith.mulf %54, %58 : vector<8x8xf32>
    %60 = arith.truncf %59 : vector<8x8xf32> to vector<8x8xbf16>
    %61 = vector.extract_strided_slice %26 {offsets = [0, 8], sizes = [8, 8], strides = [1, 1]} : vector<8x32xbf16> to vector<8x8xbf16>
    %cst_28 = arith.constant dense<0.000000e+00> : vector<8x8xf32>
    %62 = tpu.matmul %60, %61, %cst_28 {dimension_numbers = #tpu.dot_dimension_numbers<[1], [0], [0], [1], [0, 0, 1, 1], [], []>} : vector<8x8xbf16>, vector<8x8xbf16>, vector<8x8xf32> -> vector<8x8xf32>
    %63 = vector.extract_strided_slice %24 {offsets = [0, 16], sizes = [8, 8], strides = [1, 1]} : vector<8x32xbf16> to vector<8x8xbf16>
    %64 = vector.extract_strided_slice %25 {offsets = [0, 16], sizes = [8, 8], strides = [1, 1]} : vector<8x32xbf16> to vector<8x8xbf16>
    "tpu.trace_start"() <{level = 10 : i32, message = "qd,kd->qk"}> : () -> ()
    %cst_29 = arith.constant dense<0.000000e+00> : vector<8x8xf32>
    %65 = tpu.matmul %63, %64, %cst_29 {dimension_numbers = #tpu.dot_dimension_numbers<[1], [1], [0], [0], [0, 0, 1, 0], [], []>} : vector<8x8xbf16>, vector<8x8xbf16>, vector<8x8xf32> -> vector<8x8xf32>
    "tpu.trace_stop"() : () -> ()
    %66 = vector.broadcast %6 : vector<1x8xf32> to vector<8x8xf32>
    %67 = arith.addf %65, %66 : vector<8x8xf32>
    %cst_30 = arith.constant dense<0xFF800000> : vector<8xf32>
    %68 = vector.multi_reduction <maximumf>, %67, %cst_30 [1] : vector<8x8xf32> to vector<8xf32>
    %69 = vector.shape_cast %68 : vector<8xf32> to vector<8x1xf32>
    %70 = vector.broadcast %69 : vector<8x1xf32> to vector<8x8xf32>
    %71 = arith.subf %67, %70 : vector<8x8xf32>
    %72 = math.exp %71 : vector<8x8xf32>
    %cst_31 = arith.constant dense<0.000000e+00> : vector<8xf32>
    %73 = vector.multi_reduction <add>, %72, %cst_31 [1] : vector<8x8xf32> to vector<8xf32>
    %74 = vector.shape_cast %73 : vector<8xf32> to vector<8x1xf32>
    %75 = tpu.reciprocal %74 {approx = true} : vector<8x1xf32> -> vector<8x1xf32>
    %76 = vector.broadcast %75 : vector<8x1xf32> to vector<8x8xf32>
    %77 = arith.mulf %72, %76 : vector<8x8xf32>
    %78 = arith.truncf %77 : vector<8x8xf32> to vector<8x8xbf16>
    %79 = vector.extract_strided_slice %26 {offsets = [0, 16], sizes = [8, 8], strides = [1, 1]} : vector<8x32xbf16> to vector<8x8xbf16>
    %cst_32 = arith.constant dense<0.000000e+00> : vector<8x8xf32>
    %80 = tpu.matmul %78, %79, %cst_32 {dimension_numbers = #tpu.dot_dimension_numbers<[1], [0], [0], [1], [0, 0, 1, 1], [], []>} : vector<8x8xbf16>, vector<8x8xbf16>, vector<8x8xf32> -> vector<8x8xf32>
    %81 = vector.extract_strided_slice %24 {offsets = [0, 24], sizes = [8, 8], strides = [1, 1]} : vector<8x32xbf16> to vector<8x8xbf16>
    %82 = vector.extract_strided_slice %25 {offsets = [0, 24], sizes = [8, 8], strides = [1, 1]} : vector<8x32xbf16> to vector<8x8xbf16>
    "tpu.trace_start"() <{level = 10 : i32, message = "qd,kd->qk"}> : () -> ()
    %cst_33 = arith.constant dense<0.000000e+00> : vector<8x8xf32>
    %83 = tpu.matmul %81, %82, %cst_33 {dimension_numbers = #tpu.dot_dimension_numbers<[1], [1], [0], [0], [0, 0, 1, 0], [], []>} : vector<8x8xbf16>, vector<8x8xbf16>, vector<8x8xf32> -> vector<8x8xf32>
    "tpu.trace_stop"() : () -> ()
    %84 = vector.broadcast %6 : vector<1x8xf32> to vector<8x8xf32>
    %85 = arith.addf %83, %84 : vector<8x8xf32>
    %cst_34 = arith.constant dense<0xFF800000> : vector<8xf32>
    %86 = vector.multi_reduction <maximumf>, %85, %cst_34 [1] : vector<8x8xf32> to vector<8xf32>
    %87 = vector.shape_cast %86 : vector<8xf32> to vector<8x1xf32>
    %88 = vector.broadcast %87 : vector<8x1xf32> to vector<8x8xf32>
    %89 = arith.subf %85, %88 : vector<8x8xf32>
    %90 = math.exp %89 : vector<8x8xf32>
    %cst_35 = arith.constant dense<0.000000e+00> : vector<8xf32>
    %91 = vector.multi_reduction <add>, %90, %cst_35 [1] : vector<8x8xf32> to vector<8xf32>
    %92 = vector.shape_cast %91 : vector<8xf32> to vector<8x1xf32>
    %93 = tpu.reciprocal %92 {approx = true} : vector<8x1xf32> -> vector<8x1xf32>
    %94 = vector.broadcast %93 : vector<8x1xf32> to vector<8x8xf32>
    %95 = arith.mulf %90, %94 : vector<8x8xf32>
    %96 = arith.truncf %95 : vector<8x8xf32> to vector<8x8xbf16>
    %97 = vector.extract_strided_slice %26 {offsets = [0, 24], sizes = [8, 8], strides = [1, 1]} : vector<8x32xbf16> to vector<8x8xbf16>
    %cst_36 = arith.constant dense<0.000000e+00> : vector<8x8xf32>
    %98 = tpu.matmul %96, %97, %cst_36 {dimension_numbers = #tpu.dot_dimension_numbers<[1], [0], [0], [1], [0, 0, 1, 1], [], []>} : vector<8x8xbf16>, vector<8x8xbf16>, vector<8x8xf32> -> vector<8x8xf32>
    %99 = tpu.concatenate %44, %62, %80, %98 in 1 : vector<8x8xf32>, vector<8x8xf32>, vector<8x8xf32>, vector<8x8xf32> -> vector<8x32xf32>
    %c0_37 = arith.constant 0 : index
    %c0_38 = arith.constant 0 : index
    %100 = vector.load %arg15[%c0_37, %c0_38] : memref<8x32xf32, #tpu.memory_space<vmem>>, vector<8x32xf32>
    %101 = arith.truncf %99 : vector<8x32xf32> to vector<8x32xbf16>
    %c0_39 = arith.constant 0 : index
    %c0_40 = arith.constant 0 : index
    %102 = vector.load %arg10[%c0_39, %c0_40] : memref<32x32xbf16, #tpu.memory_space<vmem>>, vector<32x32xbf16>
    %cst_41 = arith.constant dense<0.000000e+00> : vector<8x32xf32>
    %103 = tpu.matmul %101, %102, %cst_41 {dimension_numbers = #tpu.dot_dimension_numbers<[1], [0], [0], [1], [0, 0, 1, 1], [], []>} : vector<8x32xbf16>, vector<32x32xbf16>, vector<8x32xf32> -> vector<8x32xf32>
    %104 = arith.addf %100, %103 : vector<8x32xf32>
    %c0_42 = arith.constant 0 : index
    %c0_43 = arith.constant 0 : index
    %105 = vector.load %arg15[%c0_42, %c0_43] : memref<8x32xf32, #tpu.memory_space<vmem>>, vector<8x32xf32>
    tpu.vector_store %arg15[%c0_42, %c0_43], %104 {strides = array<i32>} : memref<8x32xf32, #tpu.memory_space<vmem>>, vector<8x32xf32>,
    %c0_i32_44 = arith.constant 0 : i32
    %106 = arith.cmpi eq, %arg1, %c0_i32_44 : i32
    %107 = arith.extui %106 : i1 to i32
    %c0_i32_45 = arith.constant 0 : i32
    %108 = arith.cmpi ne, %107, %c0_i32_45 : i32
    scf.if %108 {
      %c0_46 = arith.constant 0 : index
      %c0_47 = arith.constant 0 : index
      %109 = vector.load %arg15[%c0_46, %c0_47] : memref<8x32xf32, #tpu.memory_space<vmem>>, vector<8x32xf32>
      %c0_48 = arith.constant 0 : index
      %c0_49 = arith.constant 0 : index
      %110 = vector.load %arg11[%c0_48, %c0_49] : memref<1x32xf32, #tpu.memory_space<vmem>>, vector<1x32xf32>
      %111 = vector.broadcast %110 : vector<1x32xf32> to vector<8x32xf32>
      %112 = arith.addf %109, %111 : vector<8x32xf32>
      %113 = arith.extf %4 : vector<8x32xbf16> to vector<8x32xf32>
      %114 = arith.addf %112, %113 : vector<8x32xf32>
      %c0_50 = arith.constant 0 : index
      %c0_51 = arith.constant 0 : index
      %115 = vector.load %arg12[%c0_50, %c0_51] : memref<1x32xf32, #tpu.memory_space<vmem>>, vector<1x32xf32>
      %c0_52 = arith.constant 0 : index
      %c0_53 = arith.constant 0 : index
      %116 = vector.load %arg13[%c0_52, %c0_53] : memref<1x32xf32, #tpu.memory_space<vmem>>, vector<1x32xf32>
      %cst_54 = arith.constant dense<0.000000e+00> : vector<8xf32>
      %117 = vector.multi_reduction <add>, %114, %cst_54 [1] : vector<8x32xf32> to vector<8xf32>
      %118 = vector.shape_cast %117 : vector<8xf32> to vector<8x1xf32>
      %cst_55 = arith.constant 3.200000e+01 : f32
      %119 = vector.broadcast %cst_55 : f32 to vector<8x1xf32>
      %120 = arith.divf %118, %119 : vector<8x1xf32>
      %121 = vector.broadcast %120 : vector<8x1xf32> to vector<8x32xf32>
      %122 = arith.subf %114, %121 : vector<8x32xf32>
      %123 = arith.mulf %122, %122 : vector<8x32xf32>
      %cst_56 = arith.constant dense<0.000000e+00> : vector<8xf32>
      %124 = vector.multi_reduction <add>, %123, %cst_56 [1] : vector<8x32xf32> to vector<8xf32>
      %125 = vector.shape_cast %124 : vector<8xf32> to vector<8x1xf32>
      %cst_57 = arith.constant 3.200000e+01 : f32
      %126 = vector.broadcast %cst_57 : f32 to vector<8x1xf32>
      %127 = arith.divf %125, %126 : vector<8x1xf32>
      %128 = vector.broadcast %120 : vector<8x1xf32> to vector<8x32xf32>
      %129 = arith.subf %114, %128 : vector<8x32xf32>
      %cst_58 = arith.constant 9.99999974E-6 : f32
      %130 = vector.broadcast %cst_58 : f32 to vector<8x1xf32>
      %131 = arith.addf %127, %130 : vector<8x1xf32>
      %132 = math.rsqrt %131 : vector<8x1xf32>
      %133 = vector.broadcast %132 : vector<8x1xf32> to vector<8x32xf32>
      %134 = arith.mulf %129, %133 : vector<8x32xf32>
      %135 = vector.broadcast %115 : vector<1x32xf32> to vector<8x32xf32>
      %136 = arith.mulf %134, %135 : vector<8x32xf32>
      %137 = vector.broadcast %116 : vector<1x32xf32> to vector<8x32xf32>
      %138 = arith.addf %136, %137 : vector<8x32xf32>
      %139 = arith.truncf %138 : vector<8x32xf32> to vector<8x32xbf16>
      %c0_59 = arith.constant 0 : index
      %c0_60 = arith.constant 0 : index
      %c0_61 = arith.constant 0 : index
      %140 = vector.load %arg14[%c0_59, %c0_60, %c0_61] : memref<1x8x32xbf16, #tpu.memory_space<vmem>>, vector<1x8x32xbf16>
      %141 = vector.shape_cast %140 : vector<1x8x32xbf16> to vector<8x32xbf16>
      %142 = vector.shape_cast %139 : vector<8x32xbf16> to vector<1x8x32xbf16>
      tpu.vector_store %arg14[%c0_59, %c0_60, %c0_61], %142 {strides = array<i32>} : memref<1x8x32xbf16, #tpu.memory_space<vmem>>, vector<1x8x32xbf16>,
    } else {
    }
    return
  }
  func.func @transform_0(%arg0: i32, %arg1: i32) -> (i32, i32, i32) {
    %c0_i32 = arith.constant 0 : i32
    %c0_i32_0 = arith.constant 0 : i32
    %c0_i32_1 = arith.constant 0 : i32
    return %arg0, %c0_i32, %c0_i32_0 : i32, i32, i32
  }
  func.func @transform_1(%arg0: i32, %arg1: i32) -> (i32, i32, i32) {
    %c0_i32 = arith.constant 0 : i32
    %c0_i32_0 = arith.constant 0 : i32
    %c0_i32_1 = arith.constant 0 : i32
    return %arg0, %c0_i32, %c0_i32_0 : i32, i32, i32
  }
  func.func @transform_2(%arg0: i32, %arg1: i32) -> (i32, i32) {
    %c0_i32 = arith.constant 0 : i32
    %c0_i32_0 = arith.constant 0 : i32
    return %c0_i32, %arg1 : i32, i32
  }
  func.func @transform_3(%arg0: i32, %arg1: i32) -> (i32, i32) {
    %c0_i32 = arith.constant 0 : i32
    %c0_i32_0 = arith.constant 0 : i32
    return %c0_i32, %arg1 : i32, i32
  }
  func.func @transform_4(%arg0: i32, %arg1: i32) -> (i32, i32) {
    %c0_i32 = arith.constant 0 : i32
    %c0_i32_0 = arith.constant 0 : i32
    return %c0_i32, %arg1 : i32, i32
  }
  func.func @transform_5(%arg0: i32, %arg1: i32) -> (i32, i32) {
    %c0_i32 = arith.constant 0 : i32
    %c0_i32_0 = arith.constant 0 : i32
    return %c0_i32, %arg1 : i32, i32
  }
  func.func @transform_6(%arg0: i32, %arg1: i32) -> (i32, i32) {
    %c0_i32 = arith.constant 0 : i32
    %c0_i32_0 = arith.constant 0 : i32
    return %c0_i32, %arg1 : i32, i32
  }
  func.func @transform_7(%arg0: i32, %arg1: i32) -> (i32, i32) {
    %c0_i32 = arith.constant 0 : i32
    %c0_i32_0 = arith.constant 0 : i32
    return %c0_i32, %arg1 : i32, i32
  }
  func.func @transform_8(%arg0: i32, %arg1: i32) -> (i32, i32) {
    %c0_i32 = arith.constant 0 : i32
    %c0_i32_0 = arith.constant 0 : i32
    return %arg1, %c0_i32 : i32, i32
  }
  func.func @transform_9(%arg0: i32, %arg1: i32) -> (i32, i32) {
    %c0_i32 = arith.constant 0 : i32
    %c0_i32_0 = arith.constant 0 : i32
    %c0_i32_1 = arith.constant 0 : i32
    return %c0_i32, %c0_i32_0 : i32, i32
  }
  func.func @transform_10(%arg0: i32, %arg1: i32) -> (i32, i32) {
    %c0_i32 = arith.constant 0 : i32
    %c0_i32_0 = arith.constant 0 : i32
    %c0_i32_1 = arith.constant 0 : i32
    return %c0_i32, %c0_i32_0 : i32, i32
  }
  func.func @transform_11(%arg0: i32, %arg1: i32) -> (i32, i32) {
    %c0_i32 = arith.constant 0 : i32
    %c0_i32_0 = arith.constant 0 : i32
    %c0_i32_1 = arith.constant 0 : i32
    return %c0_i32, %c0_i32_0 : i32, i32
  }
  func.func @transform_12(%arg0: i32, %arg1: i32) -> (i32, i32, i32) {
    %c0_i32 = arith.constant 0 : i32
    %c0_i32_0 = arith.constant 0 : i32
    %c0_i32_1 = arith.constant 0 : i32
    return %arg0, %c0_i32, %c0_i32_0 : i32, i32, i32
  }
}

module attributes {stable_mosaic.version = 11 : i64} {
  func.func @mlm_lse_kernel(%arg0: i32, %arg1: i32, %arg2: memref<1x8x32xbf16, #tpu.memory_space<vmem>>, %arg3: memref<32x128xbf16, #tpu.memory_space<vmem>>, %arg4: memref<1x128xf32, #tpu.memory_space<vmem>>, %arg5: memref<1x8x1xf32, #tpu.memory_space<vmem>>, %arg6: memref<8x1xf32, #tpu.memory_space<vmem>>, %arg7: memref<8x1xf32, #tpu.memory_space<vmem>>) attributes {dimension_semantics = [#tpu.dimension_semantics<parallel>, #tpu.dimension_semantics<arbitrary>], iteration_bounds = array<i64: 2, 4>, scalar_prefetch = 0 : i64, scratch_operands = 2 : i64, tpu.core_type = #tpu.core_type<tc>, window_params = [{transform_indices = @transform_0, window_bounds = array<i64: 1, 8, 32>}, {transform_indices = @transform_1, window_bounds = array<i64: 32, 128>}, {transform_indices = @transform_2, window_bounds = array<i64: 1, 128>}, {transform_indices = @transform_3, window_bounds = array<i64: 1, 8, 1>}]} {
    %c0_i32 = arith.constant 0 : i32
    %0 = arith.cmpi eq, %arg1, %c0_i32 : i32
    %1 = arith.extui %0 : i1 to i32
    %c0_i32_0 = arith.constant 0 : i32
    %2 = arith.cmpi ne, %1, %c0_i32_0 : i32
    scf.if %2 {
      %cst_18 = arith.constant 0xFF800000 : f32
      %29 = vector.broadcast %cst_18 : f32 to vector<8x1xf32>
      %c0_19 = arith.constant 0 : index
      %c0_20 = arith.constant 0 : index
      %30 = vector.load %arg6[%c0_19, %c0_20] : memref<8x1xf32, #tpu.memory_space<vmem>>, vector<8x1xf32>
      tpu.vector_store %arg6[%c0_19, %c0_20], %29 {strides = array<i32>} : memref<8x1xf32, #tpu.memory_space<vmem>>, vector<8x1xf32>,
      %cst_21 = arith.constant 0.000000e+00 : f32
      %31 = vector.broadcast %cst_21 : f32 to vector<8x1xf32>
      %c0_22 = arith.constant 0 : index
      %c0_23 = arith.constant 0 : index
      %32 = vector.load %arg7[%c0_22, %c0_23] : memref<8x1xf32, #tpu.memory_space<vmem>>, vector<8x1xf32>
      tpu.vector_store %arg7[%c0_22, %c0_23], %31 {strides = array<i32>} : memref<8x1xf32, #tpu.memory_space<vmem>>, vector<8x1xf32>,
    } else {
    }
    %c0 = arith.constant 0 : index
    %c0_1 = arith.constant 0 : index
    %c0_2 = arith.constant 0 : index
    %3 = vector.load %arg2[%c0, %c0_1, %c0_2] : memref<1x8x32xbf16, #tpu.memory_space<vmem>>, vector<1x8x32xbf16>
    %4 = vector.shape_cast %3 : vector<1x8x32xbf16> to vector<8x32xbf16>
    %c0_3 = arith.constant 0 : index
    %c0_4 = arith.constant 0 : index
    %5 = vector.load %arg3[%c0_3, %c0_4] : memref<32x128xbf16, #tpu.memory_space<vmem>>, vector<32x128xbf16>
    %cst = arith.constant dense<0.000000e+00> : vector<8x128xf32>
    %6 = tpu.matmul %4, %5, %cst {dimension_numbers = #tpu.dot_dimension_numbers<[1], [0], [0], [1], [0, 0, 1, 1], [], []>} : vector<8x32xbf16>, vector<32x128xbf16>, vector<8x128xf32> -> vector<8x128xf32>
    %c0_5 = arith.constant 0 : index
    %c0_6 = arith.constant 0 : index
    %7 = vector.load %arg4[%c0_5, %c0_6] : memref<1x128xf32, #tpu.memory_space<vmem>>, vector<1x128xf32>
    %8 = vector.broadcast %7 : vector<1x128xf32> to vector<8x128xf32>
    %9 = arith.addf %6, %8 : vector<8x128xf32>
    %c0_7 = arith.constant 0 : index
    %c0_8 = arith.constant 0 : index
    %10 = vector.load %arg6[%c0_7, %c0_8] : memref<8x1xf32, #tpu.memory_space<vmem>>, vector<8x1xf32>
    %cst_9 = arith.constant dense<0xFF800000> : vector<8xf32>
    %11 = vector.multi_reduction <maximumf>, %9, %cst_9 [1] : vector<8x128xf32> to vector<8xf32>
    %12 = vector.shape_cast %11 : vector<8xf32> to vector<8x1xf32>
    %13 = arith.maximumf %10, %12 : vector<8x1xf32>
    %c0_10 = arith.constant 0 : index
    %c0_11 = arith.constant 0 : index
    %14 = vector.load %arg7[%c0_10, %c0_11] : memref<8x1xf32, #tpu.memory_space<vmem>>, vector<8x1xf32>
    %15 = arith.subf %10, %13 : vector<8x1xf32>
    %16 = math.exp %15 : vector<8x1xf32>
    %17 = arith.mulf %14, %16 : vector<8x1xf32>
    %18 = vector.broadcast %13 : vector<8x1xf32> to vector<8x128xf32>
    %19 = arith.subf %9, %18 : vector<8x128xf32>
    %20 = math.exp %19 : vector<8x128xf32>
    %cst_12 = arith.constant dense<0.000000e+00> : vector<8xf32>
    %21 = vector.multi_reduction <add>, %20, %cst_12 [1] : vector<8x128xf32> to vector<8xf32>
    %22 = vector.shape_cast %21 : vector<8xf32> to vector<8x1xf32>
    %23 = arith.addf %17, %22 : vector<8x1xf32>
    %c0_13 = arith.constant 0 : index
    %c0_14 = arith.constant 0 : index
    %24 = vector.load %arg7[%c0_13, %c0_14] : memref<8x1xf32, #tpu.memory_space<vmem>>, vector<8x1xf32>
    tpu.vector_store %arg7[%c0_13, %c0_14], %23 {strides = array<i32>} : memref<8x1xf32, #tpu.memory_space<vmem>>, vector<8x1xf32>,
    %c0_15 = arith.constant 0 : index
    %c0_16 = arith.constant 0 : index
    %25 = vector.load %arg6[%c0_15, %c0_16] : memref<8x1xf32, #tpu.memory_space<vmem>>, vector<8x1xf32>
    tpu.vector_store %arg6[%c0_15, %c0_16], %13 {strides = array<i32>} : memref<8x1xf32, #tpu.memory_space<vmem>>, vector<8x1xf32>,
    %c3_i32 = arith.constant 3 : i32
    %26 = arith.cmpi eq, %arg1, %c3_i32 : i32
    %27 = arith.extui %26 : i1 to i32
    %c0_i32_17 = arith.constant 0 : i32
    %28 = arith.cmpi ne, %27, %c0_i32_17 : i32
    scf.if %28 {
      %c0_18 = arith.constant 0 : index
      %c0_19 = arith.constant 0 : index
      %29 = vector.load %arg6[%c0_18, %c0_19] : memref<8x1xf32, #tpu.memory_space<vmem>>, vector<8x1xf32>
      %c0_20 = arith.constant 0 : index
      %c0_21 = arith.constant 0 : index
      %30 = vector.load %arg7[%c0_20, %c0_21] : memref<8x1xf32, #tpu.memory_space<vmem>>, vector<8x1xf32>
      %31 = math.log %30 : vector<8x1xf32>
      %32 = arith.addf %29, %31 : vector<8x1xf32>
      %c0_22 = arith.constant 0 : index
      %c0_23 = arith.constant 0 : index
      %c0_24 = arith.constant 0 : index
      %33 = vector.load %arg5[%c0_22, %c0_23, %c0_24] : memref<1x8x1xf32, #tpu.memory_space<vmem>>, vector<1x8x1xf32>
      %34 = vector.shape_cast %33 : vector<1x8x1xf32> to vector<8x1xf32>
      %35 = vector.shape_cast %32 : vector<8x1xf32> to vector<1x8x1xf32>
      tpu.vector_store %arg5[%c0_22, %c0_23, %c0_24], %35 {strides = array<i32>} : memref<1x8x1xf32, #tpu.memory_space<vmem>>, vector<1x8x1xf32>,
    } else {
    }
    return
  }
  func.func @transform_0(%arg0: i32, %arg1: i32) -> (i32, i32, i32) {
    %c0_i32 = arith.constant 0 : i32
    %c0_i32_0 = arith.constant 0 : i32
    %c0_i32_1 = arith.constant 0 : i32
    return %arg0, %c0_i32, %c0_i32_0 : i32, i32, i32
  }
  func.func @transform_1(%arg0: i32, %arg1: i32) -> (i32, i32) {
    %c0_i32 = arith.constant 0 : i32
    %c0_i32_0 = arith.constant 0 : i32
    return %c0_i32, %arg1 : i32, i32
  }
  func.func @transform_2(%arg0: i32, %arg1: i32) -> (i32, i32) {
    %c0_i32 = arith.constant 0 : i32
    %c0_i32_0 = arith.constant 0 : i32
    return %c0_i32, %arg1 : i32, i32
  }
  func.func @transform_3(%arg0: i32, %arg1: i32) -> (i32, i32, i32) {
    %c0_i32 = arith.constant 0 : i32
    %c0_i32_0 = arith.constant 0 : i32
    %c0_i32_1 = arith.constant 0 : i32
    return %arg0, %c0_i32, %c0_i32_0 : i32, i32, i32
  }
}

</mosaic_0001>

<llo_original>
// kernel: bertlm_forward.11
$region0: #{bertlm_forward.11}
  #allocation0 [shape = 'u32[]', space=smem, size = 0x4, offset = 0x4, fixed_abs, tag = 'smem constant byte address 0x4 - core index']
  #allocation1 [shape = 'u32[72,128]{1,0:T(1,128)}', space=vmem, size = 0x9000, scoped, tag = 'internal scratch']
  %s0 = inlined_call_operand.vmem [shape: bf16[2,8,32], index: 0, kind: input, shape index: {}]
  %s1 = inlined_call_operand.vmem [shape: bf16[32,512], index: 1, kind: input, shape index: {}]
  %s2 = inlined_call_operand.vmem [shape: f32[1,512], index: 2, kind: input, shape index: {}]
  %s3 = inlined_call_operand.vmem [shape: f32[2,8,1], index: 3, kind: input, shape index: {}]
  %s4 = inlined_call_operand.hbm [shape: f32[2,8,512], index: 4, kind: output, shape index: {}]
  %s5 = sld [smem:[#allocation0]]
  $region90: #{bertlm_forward.11} parent=0
    _
  %s7 = ssub.s32 1, %s5
  %s8 = scalar_select 0, %s7, %s5
  $region1: #{bertlm_forward.11} parent=0
    #allocation2 [shape = 'u8[16384]{0}', space=vmem, size = 0x4000, scoped, tag = 'input window, operand 1']
    #allocation3 [shape = 'u8[8192]{0}', space=vmem, size = 0x2000, scoped, tag = 'output window, operand 0']
    #allocation4 [shape = 's32[2]{0}', space=sflag, size = 0x8, scoped, tag = 'scoped memory for bertlm_forward.11']
    %9 = vsyncpa [#allocation4], 0
    %s10 = scalar_lea.sflag [#allocation4], 1
    %11 = vsyncpa %s10, 0
    loop: start=0, step=1, limit=10
    $region2: #{bertlm_forward.11} parent=1 // loop_pre_header
      _
    $region3: #{bertlm_forward.11} parent=1 // loop_header
      %s13 = sphi 0, %s17
      %p14 = scmp.ge.s32.totalorder %s13, 10
      %s20 = sphi 0, %s32
      %s21 = sphi 0, %s28
      %s22 = sphi 0, %s20
      %s23 = sphi 0, %s21
      %s24 = sphi 0, %s22
      %s25 = sphi 0, %s23
      %s35 = sphi 0, %s37
      %s38 = sphi 0, %s35
      %s39 = sphi 0, %s38
      %s55 = sphi 0, %s39
      %s61 = sphi 0, %s63
      %s64 = sphi 0, %s61
      %s65 = sphi 0, %s64
      %s81 = sphi 0, %s65
      %s87 = sphi 0, %s89
      %s90 = sphi 0, %s87
      %s91 = sphi 0, %s90
      %s107 = sphi 0, %s91
      %s113 = sphi 0, %s115
      %s116 = sphi 0, %s113
      %s117 = sphi 0, %s116
      %s133 = sphi 0, %s117
      %s141 = sphi 0, %s143
      %s144 = sphi 0, %s141
      %s145 = sphi 0, %s144
      %s161 = sphi 0, %s145
    $region4: #{bertlm_forward.11} parent=1 // loop_header_branch
      %16 = sbr.rel (%p14) target = $region8
    $region5: #{bertlm_forward.11} parent=1 // loop_body
      %s18 = ssub.s32 %s13, 1
      %s19 = ssub.s32 %s13, 2
      %s26 = sadd.s32 1, %s21
      %p27 = scmp.ge.s32.totalorder %s26, 4
      %s28 = scalar_select %p27, 0, %s26
      %s29 = sadd.s32 1, %s20
      %s30 = scalar_select %p27, %s29, %s20
      %p31 = scmp.ge.s32.totalorder %s30, 2
      %s32 = scalar_select %p31, 0, %s30
      %s33 = ssub.s32 %s20, %s32
      %p34 = scmp.eq.s32.totalorder %s33, 0
      %s36 = sadd.s32 %s35, 1
      %s37 = scalar_select %p34, %s35, %s36
      %p40 = pneg %p34
      %p41 = scmp.eq.s32.totalorder %s13, 7
      %p42 = por %p40, %p41
      %p43 = scmp.ne.s32.totalorder %s35, %s38
      %p44 = scmp.eq.s32.totalorder %s13, 0
      %p45 = por %p43, %p44
      %p46 = scmp.ne.s32.totalorder %s35, %s38
      %p47 = scmp.eq.s32.totalorder %s18, 7
      %p48 = por %p46, %p47
      %p49 = scmp.ne.s32.totalorder %s38, %s39
      %p50 = scmp.eq.s32.totalorder %s18, 0
      %p51 = por %p49, %p50
      %p52 = scmp.ne.s32.totalorder %s38, %s39
      %p53 = scmp.eq.s32.totalorder %s19, 7
      %p54 = por %p52, %p53
      %p56 = scmp.ne.s32.totalorder %s39, %s55
      %p57 = scmp.eq.s32.totalorder %s19, 0
      %p58 = por %p56, %p57
      %s59 = ssub.s32 %s21, %s28
      %p60 = scmp.eq.s32.totalorder %s59, 0
      %s62 = sadd.s32 %s61, 1
      %s63 = scalar_select %p60, %s61, %s62
      %p66 = pneg %p60
      %p67 = scmp.eq.s32.totalorder %s13, 7
      %p68 = por %p66, %p67
      %p69 = scmp.ne.s32.totalorder %s61, %s64
      %p70 = scmp.eq.s32.totalorder %s13, 0
      %p71 = por %p69, %p70
      %p72 = scmp.ne.s32.totalorder %s61, %s64
      %p73 = scmp.eq.s32.totalorder %s18, 7
      %p74 = por %p72, %p73
      %p75 = scmp.ne.s32.totalorder %s64, %s65
      %p76 = scmp.eq.s32.totalorder %s18, 0
      %p77 = por %p75, %p76
      %p78 = scmp.ne.s32.totalorder %s64, %s65
      %p79 = scmp.eq.s32.totalorder %s19, 7
      %p80 = por %p78, %p79
      %p82 = scmp.ne.s32.totalorder %s65, %s81
      %p83 = scmp.eq.s32.totalorder %s19, 0
      %p84 = por %p82, %p83
      %s85 = ssub.s32 %s21, %s28
      %p86 = scmp.eq.s32.totalorder %s85, 0
      %s88 = sadd.s32 %s87, 1
      %s89 = scalar_select %p86, %s87, %s88
      %p92 = pneg %p86
      %p93 = scmp.eq.s32.totalorder %s13, 7
      %p94 = por %p92, %p93
      %p95 = scmp.ne.s32.totalorder %s87, %s90
      %p96 = scmp.eq.s32.totalorder %s13, 0
      %p97 = por %p95, %p96
      %p98 = scmp.ne.s32.totalorder %s87, %s90
      %p99 = scmp.eq.s32.totalorder %s18, 7
      %p100 = por %p98, %p99
      %p101 = scmp.ne.s32.totalorder %s90, %s91
      %p102 = scmp.eq.s32.totalorder %s18, 0
      %p103 = por %p101, %p102
      %p104 = scmp.ne.s32.totalorder %s90, %s91
      %p105 = scmp.eq.s32.totalorder %s19, 7
      %p106 = por %p104, %p105
      %p108 = scmp.ne.s32.totalorder %s91, %s107
      %p109 = scmp.eq.s32.totalorder %s19, 0
      %p110 = por %p108, %p109
      %s111 = ssub.s32 %s20, %s32
      %p112 = scmp.eq.s32.totalorder %s111, 0
      %s114 = sadd.s32 %s113, 1
      %s115 = scalar_select %p112, %s113, %s114
      %p118 = pneg %p112
      %p119 = scmp.eq.s32.totalorder %s13, 7
      %p120 = por %p118, %p119
      %p121 = scmp.ne.s32.totalorder %s113, %s116
      %p122 = scmp.eq.s32.totalorder %s13, 0
      %p123 = por %p121, %p122
      %p124 = scmp.ne.s32.totalorder %s113, %s116
      %p125 = scmp.eq.s32.totalorder %s18, 7
      %p126 = por %p124, %p125
      %p127 = scmp.ne.s32.totalorder %s116, %s117
      %p128 = scmp.eq.s32.totalorder %s18, 0
      %p129 = por %p127, %p128
      %p130 = scmp.ne.s32.totalorder %s116, %s117
      %p131 = scmp.eq.s32.totalorder %s19, 7
      %p132 = por %p130, %p131
      %p134 = scmp.ne.s32.totalorder %s117, %s133
      %p135 = scmp.eq.s32.totalorder %s19, 0
      %p136 = por %p134, %p135
      %s137 = ssub.s32 %s20, %s32
      %s138 = ssub.s32 %s21, %s28
      %s139 = sor.u32 %s137, %s138
      %p140 = scmp.eq.s32.totalorder %s139, 0
      %s142 = sadd.s32 %s141, 1
      %s143 = scalar_select %p140, %s141, %s142
      %p146 = pneg %p140
      %p147 = scmp.eq.s32.totalorder %s13, 7
      %p148 = por %p146, %p147
      %p149 = scmp.ne.s32.totalorder %s141, %s144
      %p150 = scmp.eq.s32.totalorder %s13, 0
      %p151 = por %p149, %p150
      %p152 = scmp.ne.s32.totalorder %s141, %s144
      %p153 = scmp.eq.s32.totalorder %s18, 7
      %p154 = por %p152, %p153
      %p155 = scmp.ne.s32.totalorder %s144, %s145
      %p156 = scmp.eq.s32.totalorder %s18, 0
      %p157 = por %p155, %p156
      %p158 = scmp.ne.s32.totalorder %s144, %s145
      %p159 = scmp.eq.s32.totalorder %s19, 7
      %p160 = por %p158, %p159
      %p162 = scmp.ne.s32.totalorder %s145, %s161
      %p163 = scmp.eq.s32.totalorder %s19, 0
      %p164 = por %p162, %p163
      %p165 = scmp.le.s32.totalorder 1, %s13
      %p166 = scmp.lt.s32.totalorder %s13, 9
      %p167 = pnand %p165, %p166
      %p168 = pneg %p167
      // Predicated region
      $region9: #{bertlm_forward.11} parent=5 // pred_check
        _
      $region10: #{bertlm_forward.11} parent=5 // pred_check_branch
        %170 = sbr.rel (%p167) target = $region12
      $region11: #{bertlm_forward.11} parent=5 // pred_region
        %s171 = ssub.s32 %s13, 1
      $region12: #{bertlm_forward.11} parent=5 // pred_fallthru
        _
      %p172 = scmp.lt.s32.totalorder %s13, 8
      // Predicated region
      $region13: #{bertlm_forward.11} parent=5 // pred_check
        %p173 = pneg %p172
      $region14: #{bertlm_forward.11} parent=5 // pred_check_branch
        %175 = sbr.rel (%p173) target = $region16
      $region15: #{bertlm_forward.11} parent=5 // pred_region
        // Predicated region
        $region17: #{bertlm_forward.11} parent=15 // pred_check
          %p176 = pneg %p45
        $region18: #{bertlm_forward.11} parent=15 // pred_check_branch
          %178 = sbr.rel (%p176) target = $region20
        $region19: #{bertlm_forward.11} parent=15 // pred_region
          %p179 = scmp.lt.s32.totalorder %s20, 1
          %s180 = scalar_select %p179, %s20, 1
          %s181 = smul.addr %s180, 4
          %s182 = scalar_lea.vmem %s0, %s181
        $region20: #{bertlm_forward.11} parent=15 // pred_fallthru
          _
        // Predicated region
        $region21: #{bertlm_forward.11} parent=15 // pred_check
          %p183 = pneg %p71
        $region22: #{bertlm_forward.11} parent=15 // pred_check_branch
          %185 = sbr.rel (%p183) target = $region24
        $region23: #{bertlm_forward.11} parent=15 // pred_region
          %s186 = sand.u32 %s61, 1
          %s187 = sand.u32 %s61, 1
          %s188 = smul.addr %s187, 16
          %s189 = scalar_lea.vmem [#allocation2], %s188
          %s190 = smul.addr %s21, 4
          %s191 = scalar_lea.vmem %s1, %s190
          // Predicated region
          $region25: #{bertlm_forward.11} parent=23 // pred_check
            _
          $region26: #{bertlm_forward.11} parent=23 // pred_check_branch
            %193 = sbr.rel (0) target = $region28
          $region27: #{bertlm_forward.11} parent=23 // pred_region
            // Predicated region
            $region29: #{bertlm_forward.11} parent=27 // pred_check
              _
            $region30: #{bertlm_forward.11} parent=27 // pred_check_branch
              %195 = sbr.rel target = $region32
            $region31: #{bertlm_forward.11} parent=27 // pred_region
              // Predicated region
              $region44: #{bertlm_forward.11} parent=31 // pred_check
                _
              $region45: #{bertlm_forward.11} parent=31 // pred_check_branch
                %217 = sbr.rel (0) target = $region47
              $region46: #{bertlm_forward.11} parent=31 // pred_region
                loop: start=0, step=1, limit=1
                $region48: #{bertlm_forward.11} parent=46 // loop_pre_header
                  _
                $region49: #{bertlm_forward.11} parent=46 // loop_header
                  %s219 = sphi 0, %s223
                  %p220 = scmp.ge.s32.totalorder %s219, 1
                  %s224 = sphi %s191, %s191
                  %s225 = sphi %s189, %s189
                $region50: #{bertlm_forward.11} parent=46 // loop_header_branch
                  %222 = sbr.rel (%p220) target = $region54
                $region51: #{bertlm_forward.11} parent=46 // loop_body
                  _
                $region52: #{bertlm_forward.11} parent=46 // loop_footer
                  %s223 = sadd.s32 1, %s219
                $region53: #{bertlm_forward.11} parent=46 // loop_footer_branch
                  %218 = sbr.rel target = $region49
                $region54: #{bertlm_forward.11} parent=46 // loop_exit
                  _
                %s227 = ssub.s32 16, 1
                loop: start=0, step=1, limit=1
                $region55: #{bertlm_forward.11} parent=46 // loop_pre_header
                  _
                $region56: #{bertlm_forward.11} parent=46 // loop_header
                  %s229 = sphi 0, %s233
                  %p230 = scmp.ge.s32.totalorder %s229, 1
                  %s234 = sphi %s191, %s191
                  %s235 = sphi %s189, %s189
                $region57: #{bertlm_forward.11} parent=46 // loop_header_branch
                  %232 = sbr.rel (%p230) target = $region61
                $region58: #{bertlm_forward.11} parent=46 // loop_body
                  %v236 = vld [vmem:[%s234] sm:%s227]
                  %237 = vst [vmem:[%s235] sm:%s227] %v236
                  %v238 = vld [vmem:[%s234 + $0x10] sm:%s227]
                  %239 = vst [vmem:[%s235 + $0x4] sm:%s227] %v238
                  %v240 = vld [vmem:[%s234 + $0x20] sm:%s227]
                  %241 = vst [vmem:[%s235 + $0x8] sm:%s227] %v240
                  %v242 = vld [vmem:[%s234 + $0x30] sm:%s227]
                  %243 = vst [vmem:[%s235 + $0xc] sm:%s227] %v242
                $region59: #{bertlm_forward.11} parent=46 // loop_footer
                  %s233 = sadd.s32 1, %s229
                $region60: #{bertlm_forward.11} parent=46 // loop_footer_branch
                  %228 = sbr.rel target = $region56
                $region61: #{bertlm_forward.11} parent=46 // loop_exit
                  _
              $region47: #{bertlm_forward.11} parent=31 // pred_fallthru
                _
            $region32: #{bertlm_forward.11} parent=27 // pred_fallthru
              _
            // Predicated region
            $region33: #{bertlm_forward.11} parent=27 // pred_check
              _
            $region34: #{bertlm_forward.11} parent=27 // pred_check_branch
              %197 = sbr.rel (0) target = $region36
            $region35: #{bertlm_forward.11} parent=27 // pred_region
              %s199 = ssub.s32 16, 1
              loop: start=0, step=1, limit=1
              $region37: #{bertlm_forward.11} parent=35 // loop_pre_header
                _
              $region38: #{bertlm_forward.11} parent=35 // loop_header
                %s201 = sphi 0, %s205
                %p202 = scmp.ge.s32.totalorder %s201, 1
                %s206 = sphi %s191, %s191
                %s207 = sphi %s189, %s189
              $region39: #{bertlm_forward.11} parent=35 // loop_header_branch
                %204 = sbr.rel (%p202) target = $region43
              $region40: #{bertlm_forward.11} parent=35 // loop_body
                %v208 = vld [vmem:[%s206] sm:%s199]
                %209 = vst [vmem:[%s207] sm:%s199] %v208
                %v210 = vld [vmem:[%s206 + $0x10] sm:%s199]
                %211 = vst [vmem:[%s207 + $0x4] sm:%s199] %v210
                %v212 = vld [vmem:[%s206 + $0x20] sm:%s199]
                %213 = vst [vmem:[%s207 + $0x8] sm:%s199] %v212
                %v214 = vld [vmem:[%s206 + $0x30] sm:%s199]
                %215 = vst [vmem:[%s207 + $0xc] sm:%s199] %v214
              $region41: #{bertlm_forward.11} parent=35 // loop_footer
                %s205 = sadd.s32 1, %s201
              $region42: #{bertlm_forward.11} parent=35 // loop_footer_branch
                %200 = sbr.rel target = $region38
              $region43: #{bertlm_forward.11} parent=35 // loop_exit
                _
            $region36: #{bertlm_forward.11} parent=27 // pred_fallthru
              _
          $region28: #{bertlm_forward.11} parent=23 // pred_fallthru
            _
          %244 = vnop
        $region24: #{bertlm_forward.11} parent=15 // pred_fallthru
          _
        // Predicated region
        $region62: #{bertlm_forward.11} parent=15 // pred_check
          %p245 = pneg %p97
        $region63: #{bertlm_forward.11} parent=15 // pred_check_branch
          %247 = sbr.rel (%p245) target = $region65
        $region64: #{bertlm_forward.11} parent=15 // pred_region
          %p248 = scmp.lt.s32.totalorder %s21, 3
          %s249 = scalar_select %p248, %s21, 3
          %s250 = scalar_lea.vmem %s2, %s249
        $region65: #{bertlm_forward.11} parent=15 // pred_fallthru
          _
        // Predicated region
        $region66: #{bertlm_forward.11} parent=15 // pred_check
          %p251 = pneg %p123
        $region67: #{bertlm_forward.11} parent=15 // pred_check_branch
          %253 = sbr.rel (%p251) target = $region69
        $region68: #{bertlm_forward.11} parent=15 // pred_region
          %p254 = scmp.lt.s32.totalorder %s20, 1
          %s255 = scalar_select %p254, %s20, 1
          %s256 = smul.addr %s255, 8
          %s257 = scalar_lea.vmem %s3, %s256
        $region69: #{bertlm_forward.11} parent=15 // pred_fallthru
          _
      $region16: #{bertlm_forward.11} parent=5 // pred_fallthru
        _
      %p258 = scmp.le.s32.totalorder 1, %s13
      %p259 = scmp.lt.s32.totalorder %s13, 9
      %p260 = pnand %p258, %p259
      %p261 = pneg %p260
      // Predicated region
      $region70: #{bertlm_forward.11} parent=5 // pred_check
        _
      $region71: #{bertlm_forward.11} parent=5 // pred_check_branch
        %263 = sbr.rel (%p260) target = $region73
      $region72: #{bertlm_forward.11} parent=5 // pred_region
        %s264 = ssub.s32 %s13, 1
        %s265 = sand.u32 %s64, 1
        %s266 = sand.u32 %s64, 1
        %s267 = smul.addr %s266, 16
        %s268 = scalar_lea.vmem [#allocation2], %s267
        // Predicated region
        $region74: #{bertlm_forward.11} parent=72 // pred_check
          %p269 = pneg %p77
        $region75: #{bertlm_forward.11} parent=72 // pred_check_branch
          %271 = sbr.rel (%p269) target = $region77
        $region76: #{bertlm_forward.11} parent=72 // pred_region
          _
        $region77: #{bertlm_forward.11} parent=72 // pred_fallthru
          _
        %p272 = scmp.lt.s32.totalorder %s22, 1
        %s273 = scalar_select %p272, %s22, 1
        %s274 = smul.addr %s273, 4
        %s275 = scalar_lea.vmem %s0, %s274
        %p276 = pneg %p51
        %p277 = pneg %p48
        %s278 = sand.u32 %s64, 1
        %s279 = sand.u32 %s64, 1
        %s280 = smul.addr %s279, 16
        %s281 = scalar_lea.vmem [#allocation2], %s280
        %p282 = pneg %p77
        %p283 = pneg %p74
        %p284 = scmp.lt.s32.totalorder %s23, 3
        %s285 = scalar_select %p284, %s23, 3
        %s286 = scalar_lea.vmem %s2, %s285
        %p287 = pneg %p103
        %p288 = pneg %p100
        %p289 = scmp.lt.s32.totalorder %s22, 1
        %s290 = scalar_select %p289, %s22, 1
        %s291 = smul.addr %s290, 8
        %s292 = scalar_lea.vmem %s3, %s291
        %p293 = pneg %p129
        %p294 = pneg %p126
        %p295 = pneg %p157
        %p296 = pneg %p154
        %s297 = sand.u32 %s144, 1
        %s298 = scalar_lea.sflag [#allocation4], %s297
        %s299 = sand.u32 %s144, 1
        %s300 = smul.addr %s299, 8
        %s301 = scalar_lea.vmem [#allocation3], %s300
        %p302 = scmp.lt.s32.totalorder %s22, 1
        %s303 = scalar_select %p302, %s22, 1
        %s304 = smul.addr %s303, 4
        %s305 = scalar_lea.vmem %s0, %s304
        %p306 = scmp.lt.s32.totalorder %s23, 3
        %s307 = scalar_select %p306, %s23, 3
        %s308 = scalar_lea.vmem %s2, %s307
        %p309 = scmp.lt.s32.totalorder %s22, 1
        %s310 = scalar_select %p309, %s22, 1
        %s311 = smul.addr %s310, 8
        %s312 = scalar_lea.vmem %s3, %s311
        %v314 = vld [vmem:[%s305] sm:$0xf]
        %v315 = vld [vmem:[%s268] sm:$0xf]
        %v316 = vld [vmem:[%s268 + $0x4] sm:$0xf]
        %v317 = vld [vmem:[%s268 + $0x8] sm:$0xf]
        %v318 = vld [vmem:[%s268 + $0xc] sm:$0xf]
        %v319 = vld [vmem:[%s308] sm:$0x1]
        %v321 = vperm.slane %v319, 0
        %v327 = vunpack.c.l.b16 %v315
        %v328 = vunpack.c.l.b16 %v316
        %v329 = vunpack.c.l.b16 %v317
        %v330 = vunpack.c.l.b16 %v318
        %v331 = vpack.c.b16 %v328, %v327
        %v332 = vpack.c.b16 %v330, %v329
        %vm335 = vcmask 261120
        %v337 = vsel %vm335, %v314, 0
        %339 = vmatpush.bf16.msra.mxu0 0
        %340 = vmatpush.bf16.msra.mxu0 0
        %341 = vmatpush.bf16.msra.mxu0 0
        %342 = vmatpush.bf16.msra.mxu0 0
        %343 = vmatpush.bf16.msra.mxu0 0
        %344 = vmatpush.bf16.msra.mxu0 0
        %345 = vmatpush.bf16.msra.mxu0 %v332
        %346 = vmatpush.bf16.msra.mxu0 %v331
        %347 = vmatmul.bf16.gmra.mxu0 %v337
        %v348 = vpop.f32.mrf.mxu0
        %v349 = vadd.f32 %v321, %v348
        %v350 = vpop.f32.mrf.mxu0
        %351 = vdwg.mxu0
        %v352 = vld [vmem:[%s312] sm:$0xff]
        %354 = vset.pattern.permute.xlu0 0
        %355 = vperm.xlu0 %354, %v352
        %v356 = vpop.permute.xlu0 %355
        %v358 = vsub.f32 %v349, %v356
        %359 = vst [vmem:[%s301] sm:$0xff] %v358
        %s360 = sand.u32 %s144, 1
        %s361 = scalar_lea.sflag [#allocation4], %s360
        %s362 = sand.u32 %s144, 1
        %s363 = smul.addr %s362, 8
        %s364 = scalar_lea.vmem [#allocation3], %s363
        // Predicated region
        $region78: #{bertlm_forward.11} parent=72 // pred_check
          %p365 = pneg %p154
        $region79: #{bertlm_forward.11} parent=72 // pred_check_branch
          %367 = sbr.rel (%p365) target = $region81
        $region80: #{bertlm_forward.11} parent=72 // pred_region
          %369 = vsyncadd %s361, 0
          %s370 = smul.addr %s22, 4
          %s371 = sadd.s32 %s23, %s370
          %s372 = smul.addr %s371, 8
          %s373 = scalar_lea.hbm %s4, %s372
          %s375 = sshll.u32 %s364, 4
          %s376 = int_to_ptr.vmem [resolvable:$true] %s375
          %s377 = sshll.u32 %s373, 4
          %s378 = int_to_ptr.hbm [resolvable:$true] %s377
          %380 = dma.vmem_to_hbm [thread:$0]  %s376, 128, %s378, %s361
        $region81: #{bertlm_forward.11} parent=72 // pred_fallthru
          _
      $region73: #{bertlm_forward.11} parent=5 // pred_fallthru
        _
      %p381 = scmp.le.s32.totalorder 2, %s13
      // Predicated region
      $region82: #{bertlm_forward.11} parent=5 // pred_check
        %p382 = pneg %p381
      $region83: #{bertlm_forward.11} parent=5 // pred_check_branch
        %384 = sbr.rel (%p382) target = $region85
      $region84: #{bertlm_forward.11} parent=5 // pred_region
        %s385 = ssub.s32 %s13, 2
        // Predicated region
        $region86: #{bertlm_forward.11} parent=84 // pred_check
          %p386 = pneg %p160
        $region87: #{bertlm_forward.11} parent=84 // pred_check_branch
          %388 = sbr.rel (%p386) target = $region89
        $region88: #{bertlm_forward.11} parent=84 // pred_region
          %s389 = sand.u32 %s145, 1
          %s390 = scalar_lea.sflag [#allocation4], %s389
          %s391 = sand.u32 %s145, 1
          %s392 = smul.addr %s391, 8
          %s393 = scalar_lea.vmem [#allocation3], %s392
          %395 = dma.done %s390, 128
        $region89: #{bertlm_forward.11} parent=84 // pred_fallthru
          _
      $region85: #{bertlm_forward.11} parent=5 // pred_fallthru
        _
    $region6: #{bertlm_forward.11} parent=1 // loop_footer
      %s17 = sadd.s32 1, %s13
    $region7: #{bertlm_forward.11} parent=1 // loop_footer_branch
      %12 = sbr.rel target = $region3
    $region8: #{bertlm_forward.11} parent=1 // loop_exit
      _
    %396 = vsyncpa [#allocation4], 1
    %s397 = scalar_lea.sflag [#allocation4], 1
    %398 = vsyncpa %s397, 1

// kernel: bertlm_forward.7
$region0: #{bertlm_forward.7}
  #allocation0 [shape = 'u32[]', space=smem, size = 0x4, offset = 0x4, fixed_abs, tag = 'smem constant byte address 0x4 - core index']
  #allocation1 [shape = 'u32[72,128]{1,0:T(1,128)}', space=vmem, size = 0x9000, scoped, tag = 'internal scratch']
  %s0 = inlined_call_operand.vmem [shape: bf16[2,8,32], index: 0, kind: input, shape index: {}]
  %s1 = inlined_call_operand.vmem [shape: bf16[32,128], index: 1, kind: input, shape index: {}]
  %s2 = inlined_call_operand.vmem [shape: f32[1,128], index: 2, kind: input, shape index: {}]
  %s3 = inlined_call_operand.vmem [shape: bf16[128,32], index: 3, kind: input, shape index: {}]
  %s4 = inlined_call_operand.vmem [shape: f32[1,32], index: 4, kind: input, shape index: {}]
  %s5 = inlined_call_operand.vmem [shape: f32[1,32], index: 5, kind: input, shape index: {}]
  %s6 = inlined_call_operand.vmem [shape: f32[1,32], index: 6, kind: input, shape index: {}]
  %s7 = inlined_call_operand.vmem [shape: bf16[2,8,32], index: 7, kind: output, shape index: {}]
  %s8 = sld [smem:[#allocation0]]
  $region61: #{bertlm_forward.7} parent=0
    _
  %s10 = ssub.s32 1, %s8
  %s11 = scalar_select 0, %s10, %s8
  loop: start=0, step=1, limit=4
  $region2: #{bertlm_forward.7} parent=0 // loop_pre_header
    _
  $region3: #{bertlm_forward.7} parent=0 // loop_header
    %s13 = sphi 0, %s17
    %p14 = scmp.ge.s32.totalorder %s13, 4
    %s20 = sphi 0, %s32
    %s21 = sphi 0, %s28
    %s22 = sphi 0, %s20
    %s23 = sphi 0, %s21
    %s24 = sphi 0, %s22
    %s25 = sphi 0, %s23
    %s37 = sphi 0, %s39
    %s40 = sphi 0, %s37
    %s41 = sphi 0, %s40
    %s57 = sphi 0, %s41
    %s61 = sphi 0, %s61
    %s63 = sphi 0, %s61
    %s64 = sphi 0, %s63
    %s78 = sphi 0, %s64
    %s82 = sphi 0, %s82
    %s84 = sphi 0, %s82
    %s85 = sphi 0, %s84
    %s99 = sphi 0, %s85
    %s103 = sphi 0, %s103
    %s105 = sphi 0, %s103
    %s106 = sphi 0, %s105
    %s120 = sphi 0, %s106
    %s124 = sphi 0, %s124
    %s126 = sphi 0, %s124
    %s127 = sphi 0, %s126
    %s141 = sphi 0, %s127
    %s145 = sphi 0, %s145
    %s147 = sphi 0, %s145
    %s148 = sphi 0, %s147
    %s162 = sphi 0, %s148
    %s166 = sphi 0, %s166
    %s168 = sphi 0, %s166
    %s169 = sphi 0, %s168
    %s183 = sphi 0, %s169
    %s191 = sphi 0, %s193
    %s194 = sphi 0, %s191
    %s195 = sphi 0, %s194
    %s211 = sphi 0, %s195
  $region4: #{bertlm_forward.7} parent=0 // loop_header_branch
    %16 = sbr.rel (%p14) target = $region8
  $region5: #{bertlm_forward.7} parent=0 // loop_body
    %s18 = ssub.s32 %s13, 1
    %s19 = ssub.s32 %s13, 2
    %s26 = sadd.s32 1, %s21
    %p27 = scmp.ge.s32.totalorder %s26, 1
    %s28 = scalar_select %p27, 0, %s26
    %s29 = sadd.s32 1, %s20
    %s30 = scalar_select %p27, %s29, %s20
    %p31 = scmp.ge.s32.totalorder %s30, 2
    %s32 = scalar_select %p31, 0, %s30
    %s33 = ssub.s32 %s20, %s32
    %s34 = ssub.s32 %s21, %s28
    %s35 = sor.u32 %s33, %s34
    %p36 = scmp.eq.s32.totalorder %s35, 0
    %s38 = sadd.s32 %s37, 1
    %s39 = scalar_select %p36, %s37, %s38
    %p42 = pneg %p36
    %p43 = scmp.eq.s32.totalorder %s13, 1
    %p44 = por %p42, %p43
    %p45 = scmp.ne.s32.totalorder %s37, %s40
    %p46 = scmp.eq.s32.totalorder %s13, 0
    %p47 = por %p45, %p46
    %p48 = scmp.ne.s32.totalorder %s37, %s40
    %p49 = scmp.eq.s32.totalorder %s18, 1
    %p50 = por %p48, %p49
    %p51 = scmp.ne.s32.totalorder %s40, %s41
    %p52 = scmp.eq.s32.totalorder %s18, 0
    %p53 = por %p51, %p52
    %p54 = scmp.ne.s32.totalorder %s40, %s41
    %p55 = scmp.eq.s32.totalorder %s19, 1
    %p56 = por %p54, %p55
    %p58 = scmp.ne.s32.totalorder %s41, %s57
    %p59 = scmp.eq.s32.totalorder %s19, 0
    %p60 = por %p58, %p59
    %s62 = sadd.s32 %s61, 1
    %p65 = scmp.eq.s32.totalorder %s13, 1
    %p66 = scmp.ne.s32.totalorder %s61, %s63
    %p67 = scmp.eq.s32.totalorder %s13, 0
    %p68 = por %p66, %p67
    %p69 = scmp.ne.s32.totalorder %s61, %s63
    %p70 = scmp.eq.s32.totalorder %s18, 1
    %p71 = por %p69, %p70
    %p72 = scmp.ne.s32.totalorder %s63, %s64
    %p73 = scmp.eq.s32.totalorder %s18, 0
    %p74 = por %p72, %p73
    %p75 = scmp.ne.s32.totalorder %s63, %s64
    %p76 = scmp.eq.s32.totalorder %s19, 1
    %p77 = por %p75, %p76
    %p79 = scmp.ne.s32.totalorder %s64, %s78
    %p80 = scmp.eq.s32.totalorder %s19, 0
    %p81 = por %p79, %p80
    %s83 = sadd.s32 %s82, 1
    %p86 = scmp.eq.s32.totalorder %s13, 1
    %p87 = scmp.ne.s32.totalorder %s82, %s84
    %p88 = scmp.eq.s32.totalorder %s13, 0
    %p89 = por %p87, %p88
    %p90 = scmp.ne.s32.totalorder %s82, %s84
    %p91 = scmp.eq.s32.totalorder %s18, 1
    %p92 = por %p90, %p91
    %p93 = scmp.ne.s32.totalorder %s84, %s85
    %p94 = scmp.eq.s32.totalorder %s18, 0
    %p95 = por %p93, %p94
    %p96 = scmp.ne.s32.totalorder %s84, %s85
    %p97 = scmp.eq.s32.totalorder %s19, 1
    %p98 = por %p96, %p97
    %p100 = scmp.ne.s32.totalorder %s85, %s99
    %p101 = scmp.eq.s32.totalorder %s19, 0
    %p102 = por %p100, %p101
    %s104 = sadd.s32 %s103, 1
    %p107 = scmp.eq.s32.totalorder %s13, 1
    %p108 = scmp.ne.s32.totalorder %s103, %s105
    %p109 = scmp.eq.s32.totalorder %s13, 0
    %p110 = por %p108, %p109
    %p111 = scmp.ne.s32.totalorder %s103, %s105
    %p112 = scmp.eq.s32.totalorder %s18, 1
    %p113 = por %p111, %p112
    %p114 = scmp.ne.s32.totalorder %s105, %s106
    %p115 = scmp.eq.s32.totalorder %s18, 0
    %p116 = por %p114, %p115
    %p117 = scmp.ne.s32.totalorder %s105, %s106
    %p118 = scmp.eq.s32.totalorder %s19, 1
    %p119 = por %p117, %p118
    %p121 = scmp.ne.s32.totalorder %s106, %s120
    %p122 = scmp.eq.s32.totalorder %s19, 0
    %p123 = por %p121, %p122
    %s125 = sadd.s32 %s124, 1
    %p128 = scmp.eq.s32.totalorder %s13, 1
    %p129 = scmp.ne.s32.totalorder %s124, %s126
    %p130 = scmp.eq.s32.totalorder %s13, 0
    %p131 = por %p129, %p130
    %p132 = scmp.ne.s32.totalorder %s124, %s126
    %p133 = scmp.eq.s32.totalorder %s18, 1
    %p134 = por %p132, %p133
    %p135 = scmp.ne.s32.totalorder %s126, %s127
    %p136 = scmp.eq.s32.totalorder %s18, 0
    %p137 = por %p135, %p136
    %p138 = scmp.ne.s32.totalorder %s126, %s127
    %p139 = scmp.eq.s32.totalorder %s19, 1
    %p140 = por %p138, %p139
    %p142 = scmp.ne.s32.totalorder %s127, %s141
    %p143 = scmp.eq.s32.totalorder %s19, 0
    %p144 = por %p142, %p143
    %s146 = sadd.s32 %s145, 1
    %p149 = scmp.eq.s32.totalorder %s13, 1
    %p150 = scmp.ne.s32.totalorder %s145, %s147
    %p151 = scmp.eq.s32.totalorder %s13, 0
    %p152 = por %p150, %p151
    %p153 = scmp.ne.s32.totalorder %s145, %s147
    %p154 = scmp.eq.s32.totalorder %s18, 1
    %p155 = por %p153, %p154
    %p156 = scmp.ne.s32.totalorder %s147, %s148
    %p157 = scmp.eq.s32.totalorder %s18, 0
    %p158 = por %p156, %p157
    %p159 = scmp.ne.s32.totalorder %s147, %s148
    %p160 = scmp.eq.s32.totalorder %s19, 1
    %p161 = por %p159, %p160
    %p163 = scmp.ne.s32.totalorder %s148, %s162
    %p164 = scmp.eq.s32.totalorder %s19, 0
    %p165 = por %p163, %p164
    %s167 = sadd.s32 %s166, 1
    %p170 = scmp.eq.s32.totalorder %s13, 1
    %p171 = scmp.ne.s32.totalorder %s166, %s168
    %p172 = scmp.eq.s32.totalorder %s13, 0
    %p173 = por %p171, %p172
    %p174 = scmp.ne.s32.totalorder %s166, %s168
    %p175 = scmp.eq.s32.totalorder %s18, 1
    %p176 = por %p174, %p175
    %p177 = scmp.ne.s32.totalorder %s168, %s169
    %p178 = scmp.eq.s32.totalorder %s18, 0
    %p179 = por %p177, %p178
    %p180 = scmp.ne.s32.totalorder %s168, %s169
    %p181 = scmp.eq.s32.totalorder %s19, 1
    %p182 = por %p180, %p181
    %p184 = scmp.ne.s32.totalorder %s169, %s183
    %p185 = scmp.eq.s32.totalorder %s19, 0
    %p186 = por %p184, %p185
    %s187 = ssub.s32 %s20, %s32
    %s188 = ssub.s32 %s21, %s28
    %s189 = sor.u32 %s187, %s188
    %p190 = scmp.eq.s32.totalorder %s189, 0
    %s192 = sadd.s32 %s191, 1
    %s193 = scalar_select %p190, %s191, %s192
    %p196 = pneg %p190
    %p197 = scmp.eq.s32.totalorder %s13, 1
    %p198 = por %p196, %p197
    %p199 = scmp.ne.s32.totalorder %s191, %s194
    %p200 = scmp.eq.s32.totalorder %s13, 0
    %p201 = por %p199, %p200
    %p202 = scmp.ne.s32.totalorder %s191, %s194
    %p203 = scmp.eq.s32.totalorder %s18, 1
    %p204 = por %p202, %p203
    %p205 = scmp.ne.s32.totalorder %s194, %s195
    %p206 = scmp.eq.s32.totalorder %s18, 0
    %p207 = por %p205, %p206
    %p208 = scmp.ne.s32.totalorder %s194, %s195
    %p209 = scmp.eq.s32.totalorder %s19, 1
    %p210 = por %p208, %p209
    %p212 = scmp.ne.s32.totalorder %s195, %s211
    %p213 = scmp.eq.s32.totalorder %s19, 0
    %p214 = por %p212, %p213
    %p215 = scmp.le.s32.totalorder 1, %s13
    %p216 = scmp.lt.s32.totalorder %s13, 3
    %p217 = pnand %p215, %p216
    %p218 = pneg %p217
    // Predicated region
    $region9: #{bertlm_forward.7} parent=5 // pred_check
      _
    $region10: #{bertlm_forward.7} parent=5 // pred_check_branch
      %220 = sbr.rel (%p217) target = $region12
    $region11: #{bertlm_forward.7} parent=5 // pred_region
      %s221 = ssub.s32 %s13, 1
      // Predicated region
      $region13: #{bertlm_forward.7} parent=11 // pred_check
        %p222 = pneg %p74
      $region14: #{bertlm_forward.7} parent=11 // pred_check_branch
        %224 = sbr.rel (%p222) target = $region16
      $region15: #{bertlm_forward.7} parent=11 // pred_region
        _
      $region16: #{bertlm_forward.7} parent=11 // pred_fallthru
        _
      // Predicated region
      $region17: #{bertlm_forward.7} parent=11 // pred_check
        %p225 = pneg %p95
      $region18: #{bertlm_forward.7} parent=11 // pred_check_branch
        %227 = sbr.rel (%p225) target = $region20
      $region19: #{bertlm_forward.7} parent=11 // pred_region
        _
      $region20: #{bertlm_forward.7} parent=11 // pred_fallthru
        _
      // Predicated region
      $region21: #{bertlm_forward.7} parent=11 // pred_check
        %p228 = pneg %p116
      $region22: #{bertlm_forward.7} parent=11 // pred_check_branch
        %230 = sbr.rel (%p228) target = $region24
      $region23: #{bertlm_forward.7} parent=11 // pred_region
        _
      $region24: #{bertlm_forward.7} parent=11 // pred_fallthru
        _
      // Predicated region
      $region25: #{bertlm_forward.7} parent=11 // pred_check
        %p231 = pneg %p137
      $region26: #{bertlm_forward.7} parent=11 // pred_check_branch
        %233 = sbr.rel (%p231) target = $region28
      $region27: #{bertlm_forward.7} parent=11 // pred_region
        _
      $region28: #{bertlm_forward.7} parent=11 // pred_fallthru
        _
      // Predicated region
      $region29: #{bertlm_forward.7} parent=11 // pred_check
        %p234 = pneg %p158
      $region30: #{bertlm_forward.7} parent=11 // pred_check_branch
        %236 = sbr.rel (%p234) target = $region32
      $region31: #{bertlm_forward.7} parent=11 // pred_region
        _
      $region32: #{bertlm_forward.7} parent=11 // pred_fallthru
        _
      // Predicated region
      $region33: #{bertlm_forward.7} parent=11 // pred_check
        %p237 = pneg %p179
      $region34: #{bertlm_forward.7} parent=11 // pred_check_branch
        %239 = sbr.rel (%p237) target = $region36
      $region35: #{bertlm_forward.7} parent=11 // pred_region
        _
      $region36: #{bertlm_forward.7} parent=11 // pred_fallthru
        _
    $region12: #{bertlm_forward.7} parent=5 // pred_fallthru
      _
    %p240 = scmp.lt.s32.totalorder %s13, 2
    // Predicated region
    $region37: #{bertlm_forward.7} parent=5 // pred_check
      %p241 = pneg %p240
    $region38: #{bertlm_forward.7} parent=5 // pred_check_branch
      %243 = sbr.rel (%p241) target = $region40
    $region39: #{bertlm_forward.7} parent=5 // pred_region
      // Predicated region
      $region41: #{bertlm_forward.7} parent=39 // pred_check
        %p244 = pneg %p47
      $region42: #{bertlm_forward.7} parent=39 // pred_check_branch
        %246 = sbr.rel (%p244) target = $region44
      $region43: #{bertlm_forward.7} parent=39 // pred_region
        %p247 = scmp.lt.s32.totalorder %s20, 1
        %s248 = scalar_select %p247, %s20, 1
        %p249 = scmp.lt.s32.totalorder %s21, 0
        %s250 = scalar_select %p249, %s21, 0
        %s251 = sadd.s32 %s250, %s248
        %s252 = smul.addr %s251, 4
        %s253 = scalar_lea.vmem %s0, %s252
      $region44: #{bertlm_forward.7} parent=39 // pred_fallthru
        _
    $region40: #{bertlm_forward.7} parent=5 // pred_fallthru
      _
    %p254 = scmp.le.s32.totalorder 1, %s13
    %p255 = scmp.lt.s32.totalorder %s13, 3
    %p256 = pnand %p254, %p255
    %p257 = pneg %p256
    // Predicated region
    $region45: #{bertlm_forward.7} parent=5 // pred_check
      _
    $region46: #{bertlm_forward.7} parent=5 // pred_check_branch
      %259 = sbr.rel (%p256) target = $region48
    $region47: #{bertlm_forward.7} parent=5 // pred_region
      %s260 = ssub.s32 %s13, 1
      %p261 = scmp.lt.s32.totalorder %s22, 1
      %s262 = scalar_select %p261, %s22, 1
      %p263 = scmp.lt.s32.totalorder %s23, 0
      %s264 = scalar_select %p263, %s23, 0
      %s265 = sadd.s32 %s264, %s262
      %s266 = smul.addr %s265, 4
      %s267 = scalar_lea.vmem %s0, %s266
      %p268 = pneg %p53
      %p269 = pneg %p50
      %p270 = pneg %p74
      %p271 = pneg %p71
      %p272 = pneg %p95
      %p273 = pneg %p92
      %p274 = pneg %p116
      %p275 = pneg %p113
      %p276 = pneg %p137
      %p277 = pneg %p134
      %p278 = pneg %p158
      %p279 = pneg %p155
      %p280 = pneg %p179
      %p281 = pneg %p176
      %p282 = pneg %p207
      %p283 = pneg %p204
      %p284 = scmp.lt.s32.totalorder %s22, 1
      %s285 = scalar_select %p284, %s22, 1
      %p286 = scmp.lt.s32.totalorder %s23, 0
      %s287 = scalar_select %p286, %s23, 0
      %s288 = sadd.s32 %s287, %s285
      %s289 = smul.addr %s288, 4
      %s290 = scalar_lea.vmem %s7, %s289
      %p291 = scmp.lt.s32.totalorder %s22, 1
      %s292 = scalar_select %p291, %s22, 1
      %p293 = scmp.lt.s32.totalorder %s23, 0
      %s294 = scalar_select %p293, %s23, 0
      %s295 = sadd.s32 %s294, %s292
      %s296 = smul.addr %s295, 4
      %s297 = scalar_lea.vmem %s0, %s296
      %p298 = scmp.lt.s32.totalorder %s22, 1
      %s299 = scalar_select %p298, %s22, 1
      %p300 = scmp.lt.s32.totalorder %s23, 0
      %s301 = scalar_select %p300, %s23, 0
      %s302 = sadd.s32 %s301, %s299
      %s303 = smul.addr %s302, 4
      %s304 = scalar_lea.vmem %s7, %s303
      %v306 = vld [vmem:[%s297] sm:$0xf]
      %v307 = vld [vmem:[%s1] sm:$0xf]
      %v308 = vld [vmem:[%s1 + $0x4] sm:$0xf]
      %v309 = vld [vmem:[%s1 + $0x8] sm:$0xf]
      %v310 = vld [vmem:[%s1 + $0xc] sm:$0xf]
      %v311 = vld [vmem:[%s2] sm:$0x1]
      %v313 = vperm.slane %v311, 0
      %v319 = vunpack.c.l.b16 %v307
      %v320 = vunpack.c.l.b16 %v308
      %v321 = vunpack.c.l.b16 %v309
      %v322 = vunpack.c.l.b16 %v310
      %v323 = vpack.c.b16 %v320, %v319
      %v324 = vpack.c.b16 %v322, %v321
      %vm327 = vcmask 261120
      %v329 = vsel %vm327, %v306, 0
      %331 = vmatpush.bf16.msra.mxu0 0
      %332 = vmatpush.bf16.msra.mxu0 0
      %333 = vmatpush.bf16.msra.mxu0 0
      %334 = vmatpush.bf16.msra.mxu0 0
      %335 = vmatpush.bf16.msra.mxu0 0
      %336 = vmatpush.bf16.msra.mxu0 0
      %337 = vmatpush.bf16.msra.mxu0 %v324
      %338 = vmatpush.bf16.msra.mxu0 %v323
      %339 = vmatmul.bf16.gmra.mxu0 %v329
      %v340 = vpop.f32.mrf.mxu0
      %v341 = vadd.f32 %v313, %v340
      %v342 = vpop.f32.mrf.mxu0
      %343 = vdwg.mxu0
      %v344 = vmul.f32 %v341, 0.5
      %v345 = vmul.f32 %v341, 0.70710677
      %v346 = vmul.f32 %v345, %v345
      %v347 = vmin.f32 16.0, %v346
      %v348 = vmul.f32 %v347, 2.1237322e-06
      %v349 = vadd.f32 %v348, 0.00028619796
      %v350 = vmul.f32 %v347, %v349
      %v351 = vadd.f32 %v350, 0.0036580483
      %v352 = vmul.f32 %v347, %v351
      %v353 = vadd.f32 %v352, 0.05243302
      %v354 = vmul.f32 %v347, %v353
      %v355 = vadd.f32 %v354, 0.18741608
      %v356 = vmul.f32 %v347, %v355
      %v357 = vadd.f32 %v356, 1.1283791
      %v358 = vmul.f32 %v345, %v357
      %v359 = vmul.f32 %v347, 3.8918573e-05
      %v360 = vadd.f32 %v359, 0.001143296
      %v361 = vmul.f32 %v347, %v360
      %v362 = vadd.f32 %v361, 0.014752088
      %v363 = vmul.f32 %v347, %v362
      %v364 = vadd.f32 %v363, 0.112945676
      %v365 = vmul.f32 %v347, %v364
      %v366 = vadd.f32 %v365, 0.4994258
      %v367 = vmul.f32 %v347, %v366
      %v368 = vadd.f32 %v367, 1.0
      %v369 = vrcp.pop %v368
      %v370 = vmul.f32 %v368, %v369
      %v371 = vsub.f32 1.0, %v370
      %v372 = vmul.f32 %v369, %v371
      %v373 = vadd.f32 %v369, %v372
      %vm374 = vweird.f32 %v368
      %vm375 = vweird.f32 %v369
      %vm376 = vmor %vm374, %vm375
      %v377 = vsel %vm376, %v369, %v373
      %v378 = vand.u32 2147483647, %v368
      %vm379 = vcmp.eq.f32.partialorder %v378, 8.507059e+37
      %v380 = vand.u32 %v368, 2147483648
      %v381 = vor.u32 1.1754944e-38, %v380
      %v382 = vsel %vm379, %v381, %v377
      %v383 = vmul.f32 %v358, %v382
      %v384 = vmin.f32 %v383, 1.0
      %v385 = vmax.f32 %v384, -1.0
      %v386 = vadd.f32 %v385, 1.0
      %v387 = vmul.f32 %v344, %v386
      %v388 = vpack.c.bf16 %v387, %v387
      %v389 = vld [vmem:[%s3] sm:$0xf]
      %v390 = vld [vmem:[%s3 + $0x4] sm:$0xf]
      %v391 = vld [vmem:[%s3 + $0x8] sm:$0xf]
      %v392 = vld [vmem:[%s3 + $0xc] sm:$0xf]
      %v393 = vld [vmem:[%s3 + $0x10] sm:$0xf]
      %v394 = vld [vmem:[%s3 + $0x14] sm:$0xf]
      %v395 = vld [vmem:[%s3 + $0x18] sm:$0xf]
      %v396 = vld [vmem:[%s3 + $0x1c] sm:$0xf]
      %v397 = vld [vmem:[%s3 + $0x20] sm:$0xf]
      %v398 = vld [vmem:[%s3 + $0x24] sm:$0xf]
      %v399 = vld [vmem:[%s3 + $0x28] sm:$0xf]
      %v400 = vld [vmem:[%s3 + $0x2c] sm:$0xf]
      %v401 = vld [vmem:[%s3 + $0x30] sm:$0xf]
      %v402 = vld [vmem:[%s3 + $0x34] sm:$0xf]
      %v403 = vld [vmem:[%s3 + $0x38] sm:$0xf]
      %v404 = vld [vmem:[%s3 + $0x3c] sm:$0xf]
      %v405 = vld [vmem:[%s4] sm:$0x1]
      %v407 = vperm.slane %v405, 0
      %v425 = vunpack.c.l.b16 %v389
      %v426 = vunpack.c.l.b16 %v390
      %v427 = vunpack.c.l.b16 %v391
      %v428 = vunpack.c.l.b16 %v392
      %v429 = vunpack.c.l.b16 %v393
      %v430 = vunpack.c.l.b16 %v394
      %v431 = vunpack.c.l.b16 %v395
      %v432 = vunpack.c.l.b16 %v396
      %v433 = vunpack.c.l.b16 %v397
      %v434 = vunpack.c.l.b16 %v398
      %v435 = vunpack.c.l.b16 %v399
      %v436 = vunpack.c.l.b16 %v400
      %v437 = vunpack.c.l.b16 %v401
      %v438 = vunpack.c.l.b16 %v402
      %v439 = vunpack.c.l.b16 %v403
      %v440 = vunpack.c.l.b16 %v404
      %v441 = vpack.c.b16 %v426, %v425
      %v442 = vpack.c.b16 %v428, %v427
      %v443 = vpack.c.b16 %v430, %v429
      %v444 = vpack.c.b16 %v432, %v431
      %v445 = vpack.c.b16 %v434, %v433
      %v446 = vpack.c.b16 %v436, %v435
      %v447 = vpack.c.b16 %v438, %v437
      %v448 = vpack.c.b16 %v440, %v439
      %457 = vmatpush.bf16.msra.mxu0 %v448
      %458 = vmatpush.bf16.msra.mxu0 %v447
      %459 = vmatpush.bf16.msra.mxu0 %v446
      %460 = vmatpush.bf16.msra.mxu0 %v445
      %461 = vmatpush.bf16.msra.mxu0 %v444
      %462 = vmatpush.bf16.msra.mxu0 %v443
      %463 = vmatpush.bf16.msra.mxu0 %v442
      %464 = vmatpush.bf16.msra.mxu0 %v441
      %465 = vmatmul.bf16.gmra.mxu0 %v388
      %v466 = vpop.f32.mrf.mxu0
      %v467 = vadd.f32 %v407, %v466
      %v468 = vpop.f32.mrf.mxu0
      %469 = vdwg.mxu0
      %v470 = vunpack.c.l.bf16 %v306
      %v471 = vadd.f32 %v467, %v470
      %v472 = vld [vmem:[%s5] sm:$0x1]
      %v473 = vld [vmem:[%s6] sm:$0x1]
      %v474 = vsel %vm327, %v471, 0.0
      %475 = vadd.xlane.f32.xlu0 %v474
      %v476 = vpop.xlane.xlu0 %475
      %v477 = vrcp.pop 32.0
      %v478 = vmul.f32 32.0, %v477
      %v479 = vsub.f32 1.0, %v478
      %v480 = vmul.f32 %v477, %v479
      %v481 = vadd.f32 %v477, %v480
      %vm482 = vweird.f32 %v477
      %v483 = vsel %vm482, %v477, %v481
      %v484 = vmul.f32 %v476, %v483
      %v485 = vsub.f32 %v471, %v484
      %v486 = vmul.f32 %v485, %v485
      %v487 = vsel %vm327, %v486, 0.0
      %488 = vadd.xlane.f32.xlu0 %v487
      %v489 = vpop.xlane.xlu0 %488
      %v490 = vmul.f32 %v489, %v483
      %v491 = vadd.f32 %v490, 1e-05
      %v492 = vrsqrt.pop %v491
      %v493 = vmul.f32 %v492, %v491
      %v494 = vmul.f32 %v493, %v492
      %v495 = vmul.f32 0.5, %v494
      %v496 = vsub.f32 1.5, %v495
      %v497 = vmul.f32 %v492, %v496
      %vm498 = vweird.f32 %v491
      %vm499 = vweird.f32 %v492
      %vm500 = vmor %vm498, %vm499
      %v501 = vsel %vm500, %v492, %v497
      %v502 = vmul.f32 %v485, %v501
      %v504 = vperm.slane %v472, 0
      %v506 = vmul.f32 %v502, %v504
      %v508 = vperm.slane %v473, 0
      %v510 = vadd.f32 %v506, %v508
      %v511 = vpack.c.bf16 %v510, %v510
      %vm512 = vcmask 257024
      %513 = vst.msk [vmem:[%s304] sm:$0xf] %vm512, %v511
      %p514 = scmp.lt.s32.totalorder %s22, 1
      %s515 = scalar_select %p514, %s22, 1
      %p516 = scmp.lt.s32.totalorder %s23, 0
      %s517 = scalar_select %p516, %s23, 0
      %s518 = sadd.s32 %s517, %s515
      %s519 = smul.addr %s518, 4
      %s520 = scalar_lea.vmem %s7, %s519
      // Predicated region
      $region49: #{bertlm_forward.7} parent=47 // pred_check
        %p521 = pneg %p204
      $region50: #{bertlm_forward.7} parent=47 // pred_check_branch
        %523 = sbr.rel (%p521) target = $region52
      $region51: #{bertlm_forward.7} parent=47 // pred_region
        _
      $region52: #{bertlm_forward.7} parent=47 // pred_fallthru
        _
    $region48: #{bertlm_forward.7} parent=5 // pred_fallthru
      _
    %p524 = scmp.le.s32.totalorder 2, %s13
    // Predicated region
    $region53: #{bertlm_forward.7} parent=5 // pred_check
      %p525 = pneg %p524
    $region54: #{bertlm_forward.7} parent=5 // pred_check_branch
      %527 = sbr.rel (%p525) target = $region56
    $region55: #{bertlm_forward.7} parent=5 // pred_region
      %s528 = ssub.s32 %s13, 2
      // Predicated region
      $region57: #{bertlm_forward.7} parent=55 // pred_check
        %p529 = pneg %p210
      $region58: #{bertlm_forward.7} parent=55 // pred_check_branch
        %531 = sbr.rel (%p529) target = $region60
      $region59: #{bertlm_forward.7} parent=55 // pred_region
        %p532 = scmp.lt.s32.totalorder %s24, 1
        %s533 = scalar_select %p532, %s24, 1
        %p534 = scmp.lt.s32.totalorder %s25, 0
        %s535 = scalar_select %p534, %s25, 0
        %s536 = sadd.s32 %s535, %s533
        %s537 = smul.addr %s536, 4
        %s538 = scalar_lea.vmem %s7, %s537
      $region60: #{bertlm_forward.7} parent=55 // pred_fallthru
        _
    $region56: #{bertlm_forward.7} parent=5 // pred_fallthru
      _
  $region6: #{bertlm_forward.7} parent=0 // loop_footer
    %s17 = sadd.s32 1, %s13
  $region7: #{bertlm_forward.7} parent=0 // loop_footer_branch
    %12 = sbr.rel target = $region3
  $region8: #{bertlm_forward.7} parent=0 // loop_exit
    _

// kernel: bertlm_forward.10
$region0: #{bertlm_forward.10}
  #allocation0 [shape = 'u32[]', space=smem, size = 0x4, offset = 0x4, fixed_abs, tag = 'smem constant byte address 0x4 - core index']
  #allocation1 [shape = 'u32[72,128]{1,0:T(1,128)}', space=vmem, size = 0x9000, scoped, tag = 'internal scratch']
  #allocation2 [shape = 'f32[8,1]{1,0:T(8,128)}', space=vmem, size = 0x1000, scoped, tag = 'scratch operand']
  #allocation3 [shape = 'f32[8,1]{1,0:T(8,128)}', space=vmem, size = 0x1000, scoped, tag = 'scratch operand']
  %s0 = inlined_call_operand.vmem [shape: bf16[2,8,32], index: 0, kind: input, shape index: {}]
  %s1 = inlined_call_operand.vmem [shape: bf16[32,512], index: 1, kind: input, shape index: {}]
  %s2 = inlined_call_operand.vmem [shape: f32[1,512], index: 2, kind: input, shape index: {}]
  %s3 = inlined_call_operand.vmem [shape: f32[2,8,1], index: 3, kind: output, shape index: {}]
  %s4 = sld [smem:[#allocation0]]
  $region94: #{bertlm_forward.10} parent=0
    _
  %s6 = ssub.s32 1, %s4
  %s7 = scalar_select 0, %s6, %s4
  $region1: #{bertlm_forward.10} parent=0
    #allocation4 [shape = 'u8[16384]{0}', space=vmem, size = 0x4000, scoped, tag = 'input window, operand 1']
    loop: start=0, step=1, limit=10
    $region2: #{bertlm_forward.10} parent=1 // loop_pre_header
      _
    $region3: #{bertlm_forward.10} parent=1 // loop_header
      %s9 = sphi 0, %s13
      %p10 = scmp.ge.s32.totalorder %s9, 10
      %s16 = sphi 0, %s28
      %s17 = sphi 0, %s24
      %s18 = sphi 0, %s16
      %s19 = sphi 0, %s17
      %s20 = sphi 0, %s18
      %s21 = sphi 0, %s19
      %s31 = sphi 0, %s33
      %s34 = sphi 0, %s31
      %s35 = sphi 0, %s34
      %s51 = sphi 0, %s35
      %s57 = sphi 0, %s59
      %s60 = sphi 0, %s57
      %s61 = sphi 0, %s60
      %s77 = sphi 0, %s61
      %s83 = sphi 0, %s85
      %s86 = sphi 0, %s83
      %s87 = sphi 0, %s86
      %s103 = sphi 0, %s87
      %s109 = sphi 0, %s111
      %s112 = sphi 0, %s109
      %s113 = sphi 0, %s112
      %s129 = sphi 0, %s113
    $region4: #{bertlm_forward.10} parent=1 // loop_header_branch
      %12 = sbr.rel (%p10) target = $region8
    $region5: #{bertlm_forward.10} parent=1 // loop_body
      %s14 = ssub.s32 %s9, 1
      %s15 = ssub.s32 %s9, 2
      %s22 = sadd.s32 1, %s17
      %p23 = scmp.ge.s32.totalorder %s22, 4
      %s24 = scalar_select %p23, 0, %s22
      %s25 = sadd.s32 1, %s16
      %s26 = scalar_select %p23, %s25, %s16
      %p27 = scmp.ge.s32.totalorder %s26, 2
      %s28 = scalar_select %p27, 0, %s26
      %s29 = ssub.s32 %s16, %s28
      %p30 = scmp.eq.s32.totalorder %s29, 0
      %s32 = sadd.s32 %s31, 1
      %s33 = scalar_select %p30, %s31, %s32
      %p36 = pneg %p30
      %p37 = scmp.eq.s32.totalorder %s9, 7
      %p38 = por %p36, %p37
      %p39 = scmp.ne.s32.totalorder %s31, %s34
      %p40 = scmp.eq.s32.totalorder %s9, 0
      %p41 = por %p39, %p40
      %p42 = scmp.ne.s32.totalorder %s31, %s34
      %p43 = scmp.eq.s32.totalorder %s14, 7
      %p44 = por %p42, %p43
      %p45 = scmp.ne.s32.totalorder %s34, %s35
      %p46 = scmp.eq.s32.totalorder %s14, 0
      %p47 = por %p45, %p46
      %p48 = scmp.ne.s32.totalorder %s34, %s35
      %p49 = scmp.eq.s32.totalorder %s15, 7
      %p50 = por %p48, %p49
      %p52 = scmp.ne.s32.totalorder %s35, %s51
      %p53 = scmp.eq.s32.totalorder %s15, 0
      %p54 = por %p52, %p53
      %s55 = ssub.s32 %s17, %s24
      %p56 = scmp.eq.s32.totalorder %s55, 0
      %s58 = sadd.s32 %s57, 1
      %s59 = scalar_select %p56, %s57, %s58
      %p62 = pneg %p56
      %p63 = scmp.eq.s32.totalorder %s9, 7
      %p64 = por %p62, %p63
      %p65 = scmp.ne.s32.totalorder %s57, %s60
      %p66 = scmp.eq.s32.totalorder %s9, 0
      %p67 = por %p65, %p66
      %p68 = scmp.ne.s32.totalorder %s57, %s60
      %p69 = scmp.eq.s32.totalorder %s14, 7
      %p70 = por %p68, %p69
      %p71 = scmp.ne.s32.totalorder %s60, %s61
      %p72 = scmp.eq.s32.totalorder %s14, 0
      %p73 = por %p71, %p72
      %p74 = scmp.ne.s32.totalorder %s60, %s61
      %p75 = scmp.eq.s32.totalorder %s15, 7
      %p76 = por %p74, %p75
      %p78 = scmp.ne.s32.totalorder %s61, %s77
      %p79 = scmp.eq.s32.totalorder %s15, 0
      %p80 = por %p78, %p79
      %s81 = ssub.s32 %s17, %s24
      %p82 = scmp.eq.s32.totalorder %s81, 0
      %s84 = sadd.s32 %s83, 1
      %s85 = scalar_select %p82, %s83, %s84
      %p88 = pneg %p82
      %p89 = scmp.eq.s32.totalorder %s9, 7
      %p90 = por %p88, %p89
      %p91 = scmp.ne.s32.totalorder %s83, %s86
      %p92 = scmp.eq.s32.totalorder %s9, 0
      %p93 = por %p91, %p92
      %p94 = scmp.ne.s32.totalorder %s83, %s86
      %p95 = scmp.eq.s32.totalorder %s14, 7
      %p96 = por %p94, %p95
      %p97 = scmp.ne.s32.totalorder %s86, %s87
      %p98 = scmp.eq.s32.totalorder %s14, 0
      %p99 = por %p97, %p98
      %p100 = scmp.ne.s32.totalorder %s86, %s87
      %p101 = scmp.eq.s32.totalorder %s15, 7
      %p102 = por %p100, %p101
      %p104 = scmp.ne.s32.totalorder %s87, %s103
      %p105 = scmp.eq.s32.totalorder %s15, 0
      %p106 = por %p104, %p105
      %s107 = ssub.s32 %s16, %s28
      %p108 = scmp.eq.s32.totalorder %s107, 0
      %s110 = sadd.s32 %s109, 1
      %s111 = scalar_select %p108, %s109, %s110
      %p114 = pneg %p108
      %p115 = scmp.eq.s32.totalorder %s9, 7
      %p116 = por %p114, %p115
      %p117 = scmp.ne.s32.totalorder %s109, %s112
      %p118 = scmp.eq.s32.totalorder %s9, 0
      %p119 = por %p117, %p118
      %p120 = scmp.ne.s32.totalorder %s109, %s112
      %p121 = scmp.eq.s32.totalorder %s14, 7
      %p122 = por %p120, %p121
      %p123 = scmp.ne.s32.totalorder %s112, %s113
      %p124 = scmp.eq.s32.totalorder %s14, 0
      %p125 = por %p123, %p124
      %p126 = scmp.ne.s32.totalorder %s112, %s113
      %p127 = scmp.eq.s32.totalorder %s15, 7
      %p128 = por %p126, %p127
      %p130 = scmp.ne.s32.totalorder %s113, %s129
      %p131 = scmp.eq.s32.totalorder %s15, 0
      %p132 = por %p130, %p131
      %p133 = scmp.le.s32.totalorder 1, %s9
      %p134 = scmp.lt.s32.totalorder %s9, 9
      %p135 = pnand %p133, %p134
      %p136 = pneg %p135
      // Predicated region
      $region9: #{bertlm_forward.10} parent=5 // pred_check
        _
      $region10: #{bertlm_forward.10} parent=5 // pred_check_branch
        %138 = sbr.rel (%p135) target = $region12
      $region11: #{bertlm_forward.10} parent=5 // pred_region
        %s139 = ssub.s32 %s9, 1
      $region12: #{bertlm_forward.10} parent=5 // pred_fallthru
        _
      %p140 = scmp.lt.s32.totalorder %s9, 8
      // Predicated region
      $region13: #{bertlm_forward.10} parent=5 // pred_check
        %p141 = pneg %p140
      $region14: #{bertlm_forward.10} parent=5 // pred_check_branch
        %143 = sbr.rel (%p141) target = $region16
      $region15: #{bertlm_forward.10} parent=5 // pred_region
        // Predicated region
        $region17: #{bertlm_forward.10} parent=15 // pred_check
          %p144 = pneg %p41
        $region18: #{bertlm_forward.10} parent=15 // pred_check_branch
          %146 = sbr.rel (%p144) target = $region20
        $region19: #{bertlm_forward.10} parent=15 // pred_region
          %p147 = scmp.lt.s32.totalorder %s16, 1
          %s148 = scalar_select %p147, %s16, 1
          %s149 = smul.addr %s148, 4
          %s150 = scalar_lea.vmem %s0, %s149
        $region20: #{bertlm_forward.10} parent=15 // pred_fallthru
          _
        // Predicated region
        $region21: #{bertlm_forward.10} parent=15 // pred_check
          %p151 = pneg %p67
        $region22: #{bertlm_forward.10} parent=15 // pred_check_branch
          %153 = sbr.rel (%p151) target = $region24
        $region23: #{bertlm_forward.10} parent=15 // pred_region
          %s154 = sand.u32 %s57, 1
          %s155 = sand.u32 %s57, 1
          %s156 = smul.addr %s155, 16
          %s157 = scalar_lea.vmem [#allocation4], %s156
          %s158 = smul.addr %s17, 4
          %s159 = scalar_lea.vmem %s1, %s158
          // Predicated region
          $region25: #{bertlm_forward.10} parent=23 // pred_check
            _
          $region26: #{bertlm_forward.10} parent=23 // pred_check_branch
            %161 = sbr.rel (0) target = $region28
          $region27: #{bertlm_forward.10} parent=23 // pred_region
            // Predicated region
            $region29: #{bertlm_forward.10} parent=27 // pred_check
              _
            $region30: #{bertlm_forward.10} parent=27 // pred_check_branch
              %163 = sbr.rel target = $region32
            $region31: #{bertlm_forward.10} parent=27 // pred_region
              // Predicated region
              $region44: #{bertlm_forward.10} parent=31 // pred_check
                _
              $region45: #{bertlm_forward.10} parent=31 // pred_check_branch
                %185 = sbr.rel (0) target = $region47
              $region46: #{bertlm_forward.10} parent=31 // pred_region
                loop: start=0, step=1, limit=1
                $region48: #{bertlm_forward.10} parent=46 // loop_pre_header
                  _
                $region49: #{bertlm_forward.10} parent=46 // loop_header
                  %s187 = sphi 0, %s191
                  %p188 = scmp.ge.s32.totalorder %s187, 1
                  %s192 = sphi %s159, %s159
                  %s193 = sphi %s157, %s157
                $region50: #{bertlm_forward.10} parent=46 // loop_header_branch
                  %190 = sbr.rel (%p188) target = $region54
                $region51: #{bertlm_forward.10} parent=46 // loop_body
                  _
                $region52: #{bertlm_forward.10} parent=46 // loop_footer
                  %s191 = sadd.s32 1, %s187
                $region53: #{bertlm_forward.10} parent=46 // loop_footer_branch
                  %186 = sbr.rel target = $region49
                $region54: #{bertlm_forward.10} parent=46 // loop_exit
                  _
                %s195 = ssub.s32 16, 1
                loop: start=0, step=1, limit=1
                $region55: #{bertlm_forward.10} parent=46 // loop_pre_header
                  _
                $region56: #{bertlm_forward.10} parent=46 // loop_header
                  %s197 = sphi 0, %s201
                  %p198 = scmp.ge.s32.totalorder %s197, 1
                  %s202 = sphi %s159, %s159
                  %s203 = sphi %s157, %s157
                $region57: #{bertlm_forward.10} parent=46 // loop_header_branch
                  %200 = sbr.rel (%p198) target = $region61
                $region58: #{bertlm_forward.10} parent=46 // loop_body
                  %v204 = vld [vmem:[%s202] sm:%s195]
                  %205 = vst [vmem:[%s203] sm:%s195] %v204
                  %v206 = vld [vmem:[%s202 + $0x10] sm:%s195]
                  %207 = vst [vmem:[%s203 + $0x4] sm:%s195] %v206
                  %v208 = vld [vmem:[%s202 + $0x20] sm:%s195]
                  %209 = vst [vmem:[%s203 + $0x8] sm:%s195] %v208
                  %v210 = vld [vmem:[%s202 + $0x30] sm:%s195]
                  %211 = vst [vmem:[%s203 + $0xc] sm:%s195] %v210
                $region59: #{bertlm_forward.10} parent=46 // loop_footer
                  %s201 = sadd.s32 1, %s197
                $region60: #{bertlm_forward.10} parent=46 // loop_footer_branch
                  %196 = sbr.rel target = $region56
                $region61: #{bertlm_forward.10} parent=46 // loop_exit
                  _
              $region47: #{bertlm_forward.10} parent=31 // pred_fallthru
                _
            $region32: #{bertlm_forward.10} parent=27 // pred_fallthru
              _
            // Predicated region
            $region33: #{bertlm_forward.10} parent=27 // pred_check
              _
            $region34: #{bertlm_forward.10} parent=27 // pred_check_branch
              %165 = sbr.rel (0) target = $region36
            $region35: #{bertlm_forward.10} parent=27 // pred_region
              %s167 = ssub.s32 16, 1
              loop: start=0, step=1, limit=1
              $region37: #{bertlm_forward.10} parent=35 // loop_pre_header
                _
              $region38: #{bertlm_forward.10} parent=35 // loop_header
                %s169 = sphi 0, %s173
                %p170 = scmp.ge.s32.totalorder %s169, 1
                %s174 = sphi %s159, %s159
                %s175 = sphi %s157, %s157
              $region39: #{bertlm_forward.10} parent=35 // loop_header_branch
                %172 = sbr.rel (%p170) target = $region43
              $region40: #{bertlm_forward.10} parent=35 // loop_body
                %v176 = vld [vmem:[%s174] sm:%s167]
                %177 = vst [vmem:[%s175] sm:%s167] %v176
                %v178 = vld [vmem:[%s174 + $0x10] sm:%s167]
                %179 = vst [vmem:[%s175 + $0x4] sm:%s167] %v178
                %v180 = vld [vmem:[%s174 + $0x20] sm:%s167]
                %181 = vst [vmem:[%s175 + $0x8] sm:%s167] %v180
                %v182 = vld [vmem:[%s174 + $0x30] sm:%s167]
                %183 = vst [vmem:[%s175 + $0xc] sm:%s167] %v182
              $region41: #{bertlm_forward.10} parent=35 // loop_footer
                %s173 = sadd.s32 1, %s169
              $region42: #{bertlm_forward.10} parent=35 // loop_footer_branch
                %168 = sbr.rel target = $region38
              $region43: #{bertlm_forward.10} parent=35 // loop_exit
                _
            $region36: #{bertlm_forward.10} parent=27 // pred_fallthru
              _
          $region28: #{bertlm_forward.10} parent=23 // pred_fallthru
            _
          %212 = vnop
        $region24: #{bertlm_forward.10} parent=15 // pred_fallthru
          _
        // Predicated region
        $region62: #{bertlm_forward.10} parent=15 // pred_check
          %p213 = pneg %p93
        $region63: #{bertlm_forward.10} parent=15 // pred_check_branch
          %215 = sbr.rel (%p213) target = $region65
        $region64: #{bertlm_forward.10} parent=15 // pred_region
          %p216 = scmp.lt.s32.totalorder %s17, 3
          %s217 = scalar_select %p216, %s17, 3
          %s218 = scalar_lea.vmem %s2, %s217
        $region65: #{bertlm_forward.10} parent=15 // pred_fallthru
          _
      $region16: #{bertlm_forward.10} parent=5 // pred_fallthru
        _
      %p219 = scmp.le.s32.totalorder 1, %s9
      %p220 = scmp.lt.s32.totalorder %s9, 9
      %p221 = pnand %p219, %p220
      %p222 = pneg %p221
      // Predicated region
      $region66: #{bertlm_forward.10} parent=5 // pred_check
        _
      $region67: #{bertlm_forward.10} parent=5 // pred_check_branch
        %224 = sbr.rel (%p221) target = $region69
      $region68: #{bertlm_forward.10} parent=5 // pred_region
        %s225 = ssub.s32 %s9, 1
        %s226 = sand.u32 %s60, 1
        %s227 = sand.u32 %s60, 1
        %s228 = smul.addr %s227, 16
        %s229 = scalar_lea.vmem [#allocation4], %s228
        // Predicated region
        $region70: #{bertlm_forward.10} parent=68 // pred_check
          %p230 = pneg %p73
        $region71: #{bertlm_forward.10} parent=68 // pred_check_branch
          %232 = sbr.rel (%p230) target = $region73
        $region72: #{bertlm_forward.10} parent=68 // pred_region
          _
        $region73: #{bertlm_forward.10} parent=68 // pred_fallthru
          _
        %p233 = scmp.lt.s32.totalorder %s18, 1
        %s234 = scalar_select %p233, %s18, 1
        %s235 = smul.addr %s234, 4
        %s236 = scalar_lea.vmem %s0, %s235
        %p237 = pneg %p47
        %p238 = pneg %p44
        %s239 = sand.u32 %s60, 1
        %s240 = sand.u32 %s60, 1
        %s241 = smul.addr %s240, 16
        %s242 = scalar_lea.vmem [#allocation4], %s241
        %p243 = pneg %p73
        %p244 = pneg %p70
        %p245 = scmp.lt.s32.totalorder %s19, 3
        %s246 = scalar_select %p245, %s19, 3
        %s247 = scalar_lea.vmem %s2, %s246
        %p248 = pneg %p99
        %p249 = pneg %p96
        %p250 = pneg %p125
        %p251 = pneg %p122
        %p252 = scmp.lt.s32.totalorder %s18, 1
        %s253 = scalar_select %p252, %s18, 1
        %s254 = smul.addr %s253, 8
        %s255 = scalar_lea.vmem %s3, %s254
        %p256 = scmp.lt.s32.totalorder %s18, 1
        %s257 = scalar_select %p256, %s18, 1
        %s258 = smul.addr %s257, 4
        %s259 = scalar_lea.vmem %s0, %s258
        %p260 = scmp.lt.s32.totalorder %s19, 3
        %s261 = scalar_select %p260, %s19, 3
        %s262 = scalar_lea.vmem %s2, %s261
        %p263 = scmp.lt.s32.totalorder %s18, 1
        %s264 = scalar_select %p263, %s18, 1
        %s265 = smul.addr %s264, 8
        %s266 = scalar_lea.vmem %s3, %s265
        %p268 = scmp.eq.s32.totalorder %s19, 0
        // Predicated region
        $region74: #{bertlm_forward.10} parent=68 // pred_check
          %p269 = pneg %p268
        $region75: #{bertlm_forward.10} parent=68 // pred_check_branch
          %271 = sbr.rel (%p269) target = $region77
        $region76: #{bertlm_forward.10} parent=68 // pred_region
          %vm272 = vcmask 7168
          %273 = vst.msk [vmem:[#allocation2] sm:$0xff] %vm272, -inf
          %274 = vst.msk [vmem:[#allocation3] sm:$0xff] %vm272, 0.0
        $region77: #{bertlm_forward.10} parent=68 // pred_fallthru
          _
        %v275 = vld [vmem:[%s259] sm:$0xf]
        %v276 = vld [vmem:[%s229] sm:$0xf]
        %v277 = vld [vmem:[%s229 + $0x4] sm:$0xf]
        %v278 = vld [vmem:[%s229 + $0x8] sm:$0xf]
        %v279 = vld [vmem:[%s229 + $0xc] sm:$0xf]
        %v280 = vld [vmem:[%s262] sm:$0x1]
        %v282 = vperm.slane %v280, 0
        %v288 = vunpack.c.l.b16 %v276
        %v289 = vunpack.c.l.b16 %v277
        %v290 = vunpack.c.l.b16 %v278
        %v291 = vunpack.c.l.b16 %v279
        %v292 = vpack.c.b16 %v289, %v288
        %v293 = vpack.c.b16 %v291, %v290
        %vm296 = vcmask 261120
        %v298 = vsel %vm296, %v275, 0
        %300 = vmatpush.bf16.msra.mxu0 0
        %301 = vmatpush.bf16.msra.mxu0 0
        %302 = vmatpush.bf16.msra.mxu0 0
        %303 = vmatpush.bf16.msra.mxu0 0
        %304 = vmatpush.bf16.msra.mxu0 0
        %305 = vmatpush.bf16.msra.mxu0 0
        %306 = vmatpush.bf16.msra.mxu0 %v293
        %307 = vmatpush.bf16.msra.mxu0 %v292
        %308 = vmatmul.bf16.gmra.mxu0 %v298
        %v309 = vpop.f32.mrf.mxu0
        %v310 = vadd.f32 %v282, %v309
        %v311 = vpop.f32.mrf.mxu0
        %312 = vdwg.mxu0
        %v313 = vld [vmem:[#allocation2] sm:$0xff]
        %314 = vmax.xlane.f32.xlu0 %v310
        %v315 = vpop.xlane.xlu0 %314
        %v316 = vmax.f32 %v313, %v315
        %v317 = vld [vmem:[#allocation3] sm:$0xff]
        %v318 = vsub.f32 %v313, %v316
        %v319 = vmul.f32 %v318, 1.442695
        %v320 = vpow.pop %v319
        %v321 = vmul.f32 %v317, %v320
        %323 = vset.pattern.permute.xlu0 0
        %324 = vperm.xlu0 %323, %v316
        %v325 = vpop.permute.xlu0 %324
        %v327 = vsub.f32 %v310, %v325
        %v328 = vmul.f32 %v327, 1.442695
        %v329 = vpow.pop %v328
        %330 = vadd.xlane.f32.xlu0 %v329
        %v331 = vpop.xlane.xlu0 %330
        %v332 = vadd.f32 %v321, %v331
        %vm333 = vcmask 7168
        %334 = vst.msk [vmem:[#allocation3] sm:$0xff] %vm333, %v332
        %335 = vst.msk [vmem:[#allocation2] sm:$0xff] %vm333, %v316
        %p336 = scmp.eq.s32.totalorder %s19, 3
        // Predicated region
        $region78: #{bertlm_forward.10} parent=68 // pred_check
          %p337 = pneg %p336
        $region79: #{bertlm_forward.10} parent=68 // pred_check_branch
          %339 = sbr.rel (%p337) target = $region81
        $region80: #{bertlm_forward.10} parent=68 // pred_region
          %v340 = vld [vmem:[#allocation2] sm:$0xff]
          %v341 = vld [vmem:[#allocation3] sm:$0xff]
          %v342 = vlog2.pop %v341
          %v343 = vmul.f32 %v342, 0.6931472
          %v344 = vadd.f32 %v340, %v343
          %345 = vst.msk [vmem:[%s266] sm:$0xff] %vm333, %v344
        $region81: #{bertlm_forward.10} parent=68 // pred_fallthru
          _
        %p346 = scmp.lt.s32.totalorder %s18, 1
        %s347 = scalar_select %p346, %s18, 1
        %s348 = smul.addr %s347, 8
        %s349 = scalar_lea.vmem %s3, %s348
        // Predicated region
        $region82: #{bertlm_forward.10} parent=68 // pred_check
          %p350 = pneg %p122
        $region83: #{bertlm_forward.10} parent=68 // pred_check_branch
          %352 = sbr.rel (%p350) target = $region85
        $region84: #{bertlm_forward.10} parent=68 // pred_region
          _
        $region85: #{bertlm_forward.10} parent=68 // pred_fallthru
          _
      $region69: #{bertlm_forward.10} parent=5 // pred_fallthru
        _
      %p353 = scmp.le.s32.totalorder 2, %s9
      // Predicated region
      $region86: #{bertlm_forward.10} parent=5 // pred_check
        %p354 = pneg %p353
      $region87: #{bertlm_forward.10} parent=5 // pred_check_branch
        %356 = sbr.rel (%p354) target = $region89
      $region88: #{bertlm_forward.10} parent=5 // pred_region
        %s357 = ssub.s32 %s9, 2
        // Predicated region
        $region90: #{bertlm_forward.10} parent=88 // pred_check
          %p358 = pneg %p128
        $region91: #{bertlm_forward.10} parent=88 // pred_check_branch
          %360 = sbr.rel (%p358) target = $region93
        $region92: #{bertlm_forward.10} parent=88 // pred_region
          %p361 = scmp.lt.s32.totalorder %s20, 1
          %s362 = scalar_select %p361, %s20, 1
          %s363 = smul.addr %s362, 8
          %s364 = scalar_lea.vmem %s3, %s363
        $region93: #{bertlm_forward.10} parent=88 // pred_fallthru
          _
      $region89: #{bertlm_forward.10} parent=5 // pred_fallthru
        _
    $region6: #{bertlm_forward.10} parent=1 // loop_footer
      %s13 = sadd.s32 1, %s9
    $region7: #{bertlm_forward.10} parent=1 // loop_footer_branch
      %8 = sbr.rel target = $region3
    $region8: #{bertlm_forward.10} parent=1 // loop_exit
      _

// kernel: bertlm_forward.6
$region0: #{bertlm_forward.6}
  #allocation0 [shape = 'u32[]', space=smem, size = 0x4, offset = 0x4, fixed_abs, tag = 'smem constant byte address 0x4 - core index']
  #allocation1 [shape = 'u32[72,128]{1,0:T(1,128)}', space=vmem, size = 0x9000, scoped, tag = 'internal scratch']
  #allocation2 [shape = 'f32[8,32]{1,0:T(8,128)}', space=vmem, size = 0x1000, scoped, tag = 'scratch operand']
  %s0 = inlined_call_operand.vmem [shape: bf16[2,8,32], index: 0, kind: input, shape index: {}]
  %s1 = inlined_call_operand.vmem [shape: f32[2,1,8], index: 1, kind: input, shape index: {}]
  %s2 = inlined_call_operand.vmem [shape: bf16[32,32], index: 2, kind: input, shape index: {}]
  %s3 = inlined_call_operand.vmem [shape: f32[1,32], index: 3, kind: input, shape index: {}]
  %s4 = inlined_call_operand.vmem [shape: bf16[32,32], index: 4, kind: input, shape index: {}]
  %s5 = inlined_call_operand.vmem [shape: f32[1,32], index: 5, kind: input, shape index: {}]
  %s6 = inlined_call_operand.vmem [shape: bf16[32,32], index: 6, kind: input, shape index: {}]
  %s7 = inlined_call_operand.vmem [shape: f32[1,32], index: 7, kind: input, shape index: {}]
  %s8 = inlined_call_operand.vmem [shape: bf16[32,32], index: 8, kind: input, shape index: {}]
  %s9 = inlined_call_operand.vmem [shape: f32[1,32], index: 9, kind: input, shape index: {}]
  %s10 = inlined_call_operand.vmem [shape: f32[1,32], index: 10, kind: input, shape index: {}]
  %s11 = inlined_call_operand.vmem [shape: f32[1,32], index: 11, kind: input, shape index: {}]
  %s12 = inlined_call_operand.vmem [shape: bf16[2,8,32], index: 12, kind: output, shape index: {}]
  %s13 = sld [smem:[#allocation0]]
  $region89: #{bertlm_forward.6} parent=0
    _
  %s15 = ssub.s32 1, %s13
  %s16 = scalar_select 0, %s15, %s13
  loop: start=0, step=1, limit=4
  $region2: #{bertlm_forward.6} parent=0 // loop_pre_header
    _
  $region3: #{bertlm_forward.6} parent=0 // loop_header
    %s18 = sphi 0, %s22
    %p19 = scmp.ge.s32.totalorder %s18, 4
    %s25 = sphi 0, %s37
    %s26 = sphi 0, %s33
    %s27 = sphi 0, %s25
    %s28 = sphi 0, %s26
    %s29 = sphi 0, %s27
    %s30 = sphi 0, %s28
    %s40 = sphi 0, %s42
    %s43 = sphi 0, %s40
    %s44 = sphi 0, %s43
    %s60 = sphi 0, %s44
    %s66 = sphi 0, %s68
    %s69 = sphi 0, %s66
    %s70 = sphi 0, %s69
    %s86 = sphi 0, %s70
    %s92 = sphi 0, %s94
    %s95 = sphi 0, %s92
    %s96 = sphi 0, %s95
    %s112 = sphi 0, %s96
    %s118 = sphi 0, %s120
    %s121 = sphi 0, %s118
    %s122 = sphi 0, %s121
    %s138 = sphi 0, %s122
    %s144 = sphi 0, %s146
    %s147 = sphi 0, %s144
    %s148 = sphi 0, %s147
    %s164 = sphi 0, %s148
    %s170 = sphi 0, %s172
    %s173 = sphi 0, %s170
    %s174 = sphi 0, %s173
    %s190 = sphi 0, %s174
    %s196 = sphi 0, %s198
    %s199 = sphi 0, %s196
    %s200 = sphi 0, %s199
    %s216 = sphi 0, %s200
    %s222 = sphi 0, %s224
    %s225 = sphi 0, %s222
    %s226 = sphi 0, %s225
    %s242 = sphi 0, %s226
    %s248 = sphi 0, %s250
    %s251 = sphi 0, %s248
    %s252 = sphi 0, %s251
    %s268 = sphi 0, %s252
    %s272 = sphi 0, %s272
    %s274 = sphi 0, %s272
    %s275 = sphi 0, %s274
    %s289 = sphi 0, %s275
    %s293 = sphi 0, %s293
    %s295 = sphi 0, %s293
    %s296 = sphi 0, %s295
    %s310 = sphi 0, %s296
    %s314 = sphi 0, %s314
    %s316 = sphi 0, %s314
    %s317 = sphi 0, %s316
    %s331 = sphi 0, %s317
    %s337 = sphi 0, %s339
    %s340 = sphi 0, %s337
    %s341 = sphi 0, %s340
    %s357 = sphi 0, %s341
  $region4: #{bertlm_forward.6} parent=0 // loop_header_branch
    %21 = sbr.rel (%p19) target = $region8
  $region5: #{bertlm_forward.6} parent=0 // loop_body
    %s23 = ssub.s32 %s18, 1
    %s24 = ssub.s32 %s18, 2
    %s31 = sadd.s32 1, %s26
    %p32 = scmp.ge.s32.totalorder %s31, 1
    %s33 = scalar_select %p32, 0, %s31
    %s34 = sadd.s32 1, %s25
    %s35 = scalar_select %p32, %s34, %s25
    %p36 = scmp.ge.s32.totalorder %s35, 2
    %s37 = scalar_select %p36, 0, %s35
    %s38 = ssub.s32 %s25, %s37
    %p39 = scmp.eq.s32.totalorder %s38, 0
    %s41 = sadd.s32 %s40, 1
    %s42 = scalar_select %p39, %s40, %s41
    %p45 = pneg %p39
    %p46 = scmp.eq.s32.totalorder %s18, 1
    %p47 = por %p45, %p46
    %p48 = scmp.ne.s32.totalorder %s40, %s43
    %p49 = scmp.eq.s32.totalorder %s18, 0
    %p50 = por %p48, %p49
    %p51 = scmp.ne.s32.totalorder %s40, %s43
    %p52 = scmp.eq.s32.totalorder %s23, 1
    %p53 = por %p51, %p52
    %p54 = scmp.ne.s32.totalorder %s43, %s44
    %p55 = scmp.eq.s32.totalorder %s23, 0
    %p56 = por %p54, %p55
    %p57 = scmp.ne.s32.totalorder %s43, %s44
    %p58 = scmp.eq.s32.totalorder %s24, 1
    %p59 = por %p57, %p58
    %p61 = scmp.ne.s32.totalorder %s44, %s60
    %p62 = scmp.eq.s32.totalorder %s24, 0
    %p63 = por %p61, %p62
    %s64 = ssub.s32 %s25, %s37
    %p65 = scmp.eq.s32.totalorder %s64, 0
    %s67 = sadd.s32 %s66, 1
    %s68 = scalar_select %p65, %s66, %s67
    %p71 = pneg %p65
    %p72 = scmp.eq.s32.totalorder %s18, 1
    %p73 = por %p71, %p72
    %p74 = scmp.ne.s32.totalorder %s66, %s69
    %p75 = scmp.eq.s32.totalorder %s18, 0
    %p76 = por %p74, %p75
    %p77 = scmp.ne.s32.totalorder %s66, %s69
    %p78 = scmp.eq.s32.totalorder %s23, 1
    %p79 = por %p77, %p78
    %p80 = scmp.ne.s32.totalorder %s69, %s70
    %p81 = scmp.eq.s32.totalorder %s23, 0
    %p82 = por %p80, %p81
    %p83 = scmp.ne.s32.totalorder %s69, %s70
    %p84 = scmp.eq.s32.totalorder %s24, 1
    %p85 = por %p83, %p84
    %p87 = scmp.ne.s32.totalorder %s70, %s86
    %p88 = scmp.eq.s32.totalorder %s24, 0
    %p89 = por %p87, %p88
    %s90 = ssub.s32 %s26, %s33
    %p91 = scmp.eq.s32.totalorder %s90, 0
    %s93 = sadd.s32 %s92, 1
    %s94 = scalar_select %p91, %s92, %s93
    %p97 = pneg %p91
    %p98 = scmp.eq.s32.totalorder %s18, 1
    %p99 = por %p97, %p98
    %p100 = scmp.ne.s32.totalorder %s92, %s95
    %p101 = scmp.eq.s32.totalorder %s18, 0
    %p102 = por %p100, %p101
    %p103 = scmp.ne.s32.totalorder %s92, %s95
    %p104 = scmp.eq.s32.totalorder %s23, 1
    %p105 = por %p103, %p104
    %p106 = scmp.ne.s32.totalorder %s95, %s96
    %p107 = scmp.eq.s32.totalorder %s23, 0
    %p108 = por %p106, %p107
    %p109 = scmp.ne.s32.totalorder %s95, %s96
    %p110 = scmp.eq.s32.totalorder %s24, 1
    %p111 = por %p109, %p110
    %p113 = scmp.ne.s32.totalorder %s96, %s112
    %p114 = scmp.eq.s32.totalorder %s24, 0
    %p115 = por %p113, %p114
    %s116 = ssub.s32 %s26, %s33
    %p117 = scmp.eq.s32.totalorder %s116, 0
    %s119 = sadd.s32 %s118, 1
    %s120 = scalar_select %p117, %s118, %s119
    %p123 = pneg %p117
    %p124 = scmp.eq.s32.totalorder %s18, 1
    %p125 = por %p123, %p124
    %p126 = scmp.ne.s32.totalorder %s118, %s121
    %p127 = scmp.eq.s32.totalorder %s18, 0
    %p128 = por %p126, %p127
    %p129 = scmp.ne.s32.totalorder %s118, %s121
    %p130 = scmp.eq.s32.totalorder %s23, 1
    %p131 = por %p129, %p130
    %p132 = scmp.ne.s32.totalorder %s121, %s122
    %p133 = scmp.eq.s32.totalorder %s23, 0
    %p134 = por %p132, %p133
    %p135 = scmp.ne.s32.totalorder %s121, %s122
    %p136 = scmp.eq.s32.totalorder %s24, 1
    %p137 = por %p135, %p136
    %p139 = scmp.ne.s32.totalorder %s122, %s138
    %p140 = scmp.eq.s32.totalorder %s24, 0
    %p141 = por %p139, %p140
    %s142 = ssub.s32 %s26, %s33
    %p143 = scmp.eq.s32.totalorder %s142, 0
    %s145 = sadd.s32 %s144, 1
    %s146 = scalar_select %p143, %s144, %s145
    %p149 = pneg %p143
    %p150 = scmp.eq.s32.totalorder %s18, 1
    %p151 = por %p149, %p150
    %p152 = scmp.ne.s32.totalorder %s144, %s147
    %p153 = scmp.eq.s32.totalorder %s18, 0
    %p154 = por %p152, %p153
    %p155 = scmp.ne.s32.totalorder %s144, %s147
    %p156 = scmp.eq.s32.totalorder %s23, 1
    %p157 = por %p155, %p156
    %p158 = scmp.ne.s32.totalorder %s147, %s148
    %p159 = scmp.eq.s32.totalorder %s23, 0
    %p160 = por %p158, %p159
    %p161 = scmp.ne.s32.totalorder %s147, %s148
    %p162 = scmp.eq.s32.totalorder %s24, 1
    %p163 = por %p161, %p162
    %p165 = scmp.ne.s32.totalorder %s148, %s164
    %p166 = scmp.eq.s32.totalorder %s24, 0
    %p167 = por %p165, %p166
    %s168 = ssub.s32 %s26, %s33
    %p169 = scmp.eq.s32.totalorder %s168, 0
    %s171 = sadd.s32 %s170, 1
    %s172 = scalar_select %p169, %s170, %s171
    %p175 = pneg %p169
    %p176 = scmp.eq.s32.totalorder %s18, 1
    %p177 = por %p175, %p176
    %p178 = scmp.ne.s32.totalorder %s170, %s173
    %p179 = scmp.eq.s32.totalorder %s18, 0
    %p180 = por %p178, %p179
    %p181 = scmp.ne.s32.totalorder %s170, %s173
    %p182 = scmp.eq.s32.totalorder %s23, 1
    %p183 = por %p181, %p182
    %p184 = scmp.ne.s32.totalorder %s173, %s174
    %p185 = scmp.eq.s32.totalorder %s23, 0
    %p186 = por %p184, %p185
    %p187 = scmp.ne.s32.totalorder %s173, %s174
    %p188 = scmp.eq.s32.totalorder %s24, 1
    %p189 = por %p187, %p188
    %p191 = scmp.ne.s32.totalorder %s174, %s190
    %p192 = scmp.eq.s32.totalorder %s24, 0
    %p193 = por %p191, %p192
    %s194 = ssub.s32 %s26, %s33
    %p195 = scmp.eq.s32.totalorder %s194, 0
    %s197 = sadd.s32 %s196, 1
    %s198 = scalar_select %p195, %s196, %s197
    %p201 = pneg %p195
    %p202 = scmp.eq.s32.totalorder %s18, 1
    %p203 = por %p201, %p202
    %p204 = scmp.ne.s32.totalorder %s196, %s199
    %p205 = scmp.eq.s32.totalorder %s18, 0
    %p206 = por %p204, %p205
    %p207 = scmp.ne.s32.totalorder %s196, %s199
    %p208 = scmp.eq.s32.totalorder %s23, 1
    %p209 = por %p207, %p208
    %p210 = scmp.ne.s32.totalorder %s199, %s200
    %p211 = scmp.eq.s32.totalorder %s23, 0
    %p212 = por %p210, %p211
    %p213 = scmp.ne.s32.totalorder %s199, %s200
    %p214 = scmp.eq.s32.totalorder %s24, 1
    %p215 = por %p213, %p214
    %p217 = scmp.ne.s32.totalorder %s200, %s216
    %p218 = scmp.eq.s32.totalorder %s24, 0
    %p219 = por %p217, %p218
    %s220 = ssub.s32 %s26, %s33
    %p221 = scmp.eq.s32.totalorder %s220, 0
    %s223 = sadd.s32 %s222, 1
    %s224 = scalar_select %p221, %s222, %s223
    %p227 = pneg %p221
    %p228 = scmp.eq.s32.totalorder %s18, 1
    %p229 = por %p227, %p228
    %p230 = scmp.ne.s32.totalorder %s222, %s225
    %p231 = scmp.eq.s32.totalorder %s18, 0
    %p232 = por %p230, %p231
    %p233 = scmp.ne.s32.totalorder %s222, %s225
    %p234 = scmp.eq.s32.totalorder %s23, 1
    %p235 = por %p233, %p234
    %p236 = scmp.ne.s32.totalorder %s225, %s226
    %p237 = scmp.eq.s32.totalorder %s23, 0
    %p238 = por %p236, %p237
    %p239 = scmp.ne.s32.totalorder %s225, %s226
    %p240 = scmp.eq.s32.totalorder %s24, 1
    %p241 = por %p239, %p240
    %p243 = scmp.ne.s32.totalorder %s226, %s242
    %p244 = scmp.eq.s32.totalorder %s24, 0
    %p245 = por %p243, %p244
    %s246 = ssub.s32 %s26, %s33
    %p247 = scmp.eq.s32.totalorder %s246, 0
    %s249 = sadd.s32 %s248, 1
    %s250 = scalar_select %p247, %s248, %s249
    %p253 = pneg %p247
    %p254 = scmp.eq.s32.totalorder %s18, 1
    %p255 = por %p253, %p254
    %p256 = scmp.ne.s32.totalorder %s248, %s251
    %p257 = scmp.eq.s32.totalorder %s18, 0
    %p258 = por %p256, %p257
    %p259 = scmp.ne.s32.totalorder %s248, %s251
    %p260 = scmp.eq.s32.totalorder %s23, 1
    %p261 = por %p259, %p260
    %p262 = scmp.ne.s32.totalorder %s251, %s252
    %p263 = scmp.eq.s32.totalorder %s23, 0
    %p264 = por %p262, %p263
    %p265 = scmp.ne.s32.totalorder %s251, %s252
    %p266 = scmp.eq.s32.totalorder %s24, 1
    %p267 = por %p265, %p266
    %p269 = scmp.ne.s32.totalorder %s252, %s268
    %p270 = scmp.eq.s32.totalorder %s24, 0
    %p271 = por %p269, %p270
    %s273 = sadd.s32 %s272, 1
    %p276 = scmp.eq.s32.totalorder %s18, 1
    %p277 = scmp.ne.s32.totalorder %s272, %s274
    %p278 = scmp.eq.s32.totalorder %s18, 0
    %p279 = por %p277, %p278
    %p280 = scmp.ne.s32.totalorder %s272, %s274
    %p281 = scmp.eq.s32.totalorder %s23, 1
    %p282 = por %p280, %p281
    %p283 = scmp.ne.s32.totalorder %s274, %s275
    %p284 = scmp.eq.s32.totalorder %s23, 0
    %p285 = por %p283, %p284
    %p286 = scmp.ne.s32.totalorder %s274, %s275
    %p287 = scmp.eq.s32.totalorder %s24, 1
    %p288 = por %p286, %p287
    %p290 = scmp.ne.s32.totalorder %s275, %s289
    %p291 = scmp.eq.s32.totalorder %s24, 0
    %p292 = por %p290, %p291
    %s294 = sadd.s32 %s293, 1
    %p297 = scmp.eq.s32.totalorder %s18, 1
    %p298 = scmp.ne.s32.totalorder %s293, %s295
    %p299 = scmp.eq.s32.totalorder %s18, 0
    %p300 = por %p298, %p299
    %p301 = scmp.ne.s32.totalorder %s293, %s295
    %p302 = scmp.eq.s32.totalorder %s23, 1
    %p303 = por %p301, %p302
    %p304 = scmp.ne.s32.totalorder %s295, %s296
    %p305 = scmp.eq.s32.totalorder %s23, 0
    %p306 = por %p304, %p305
    %p307 = scmp.ne.s32.totalorder %s295, %s296
    %p308 = scmp.eq.s32.totalorder %s24, 1
    %p309 = por %p307, %p308
    %p311 = scmp.ne.s32.totalorder %s296, %s310
    %p312 = scmp.eq.s32.totalorder %s24, 0
    %p313 = por %p311, %p312
    %s315 = sadd.s32 %s314, 1
    %p318 = scmp.eq.s32.totalorder %s18, 1
    %p319 = scmp.ne.s32.totalorder %s314, %s316
    %p320 = scmp.eq.s32.totalorder %s18, 0
    %p321 = por %p319, %p320
    %p322 = scmp.ne.s32.totalorder %s314, %s316
    %p323 = scmp.eq.s32.totalorder %s23, 1
    %p324 = por %p322, %p323
    %p325 = scmp.ne.s32.totalorder %s316, %s317
    %p326 = scmp.eq.s32.totalorder %s23, 0
    %p327 = por %p325, %p326
    %p328 = scmp.ne.s32.totalorder %s316, %s317
    %p329 = scmp.eq.s32.totalorder %s24, 1
    %p330 = por %p328, %p329
    %p332 = scmp.ne.s32.totalorder %s317, %s331
    %p333 = scmp.eq.s32.totalorder %s24, 0
    %p334 = por %p332, %p333
    %s335 = ssub.s32 %s25, %s37
    %p336 = scmp.eq.s32.totalorder %s335, 0
    %s338 = sadd.s32 %s337, 1
    %s339 = scalar_select %p336, %s337, %s338
    %p342 = pneg %p336
    %p343 = scmp.eq.s32.totalorder %s18, 1
    %p344 = por %p342, %p343
    %p345 = scmp.ne.s32.totalorder %s337, %s340
    %p346 = scmp.eq.s32.totalorder %s18, 0
    %p347 = por %p345, %p346
    %p348 = scmp.ne.s32.totalorder %s337, %s340
    %p349 = scmp.eq.s32.totalorder %s23, 1
    %p350 = por %p348, %p349
    %p351 = scmp.ne.s32.totalorder %s340, %s341
    %p352 = scmp.eq.s32.totalorder %s23, 0
    %p353 = por %p351, %p352
    %p354 = scmp.ne.s32.totalorder %s340, %s341
    %p355 = scmp.eq.s32.totalorder %s24, 1
    %p356 = por %p354, %p355
    %p358 = scmp.ne.s32.totalorder %s341, %s357
    %p359 = scmp.eq.s32.totalorder %s24, 0
    %p360 = por %p358, %p359
    %p361 = scmp.le.s32.totalorder 1, %s18
    %p362 = scmp.lt.s32.totalorder %s18, 3
    %p363 = pnand %p361, %p362
    %p364 = pneg %p363
    // Predicated region
    $region9: #{bertlm_forward.6} parent=5 // pred_check
      _
    $region10: #{bertlm_forward.6} parent=5 // pred_check_branch
      %366 = sbr.rel (%p363) target = $region12
    $region11: #{bertlm_forward.6} parent=5 // pred_region
      %s367 = ssub.s32 %s18, 1
      // Predicated region
      $region13: #{bertlm_forward.6} parent=11 // pred_check
        %p368 = pneg %p108
      $region14: #{bertlm_forward.6} parent=11 // pred_check_branch
        %370 = sbr.rel (%p368) target = $region16
      $region15: #{bertlm_forward.6} parent=11 // pred_region
        %p371 = scmp.lt.s32.totalorder %s28, 0
        %s372 = scalar_select %p371, %s28, 0
        %s373 = smul.addr %s372, 4
        %s374 = scalar_lea.vmem %s2, %s373
      $region16: #{bertlm_forward.6} parent=11 // pred_fallthru
        _
      // Predicated region
      $region17: #{bertlm_forward.6} parent=11 // pred_check
        %p375 = pneg %p134
      $region18: #{bertlm_forward.6} parent=11 // pred_check_branch
        %377 = sbr.rel (%p375) target = $region20
      $region19: #{bertlm_forward.6} parent=11 // pred_region
        %p378 = scmp.lt.s32.totalorder %s28, 0
        %s379 = scalar_select %p378, %s28, 0
        %s380 = scalar_lea.vmem %s3, %s379
      $region20: #{bertlm_forward.6} parent=11 // pred_fallthru
        _
      // Predicated region
      $region21: #{bertlm_forward.6} parent=11 // pred_check
        %p381 = pneg %p160
      $region22: #{bertlm_forward.6} parent=11 // pred_check_branch
        %383 = sbr.rel (%p381) target = $region24
      $region23: #{bertlm_forward.6} parent=11 // pred_region
        %p384 = scmp.lt.s32.totalorder %s28, 0
        %s385 = scalar_select %p384, %s28, 0
        %s386 = smul.addr %s385, 4
        %s387 = scalar_lea.vmem %s4, %s386
      $region24: #{bertlm_forward.6} parent=11 // pred_fallthru
        _
      // Predicated region
      $region25: #{bertlm_forward.6} parent=11 // pred_check
        %p388 = pneg %p186
      $region26: #{bertlm_forward.6} parent=11 // pred_check_branch
        %390 = sbr.rel (%p388) target = $region28
      $region27: #{bertlm_forward.6} parent=11 // pred_region
        %p391 = scmp.lt.s32.totalorder %s28, 0
        %s392 = scalar_select %p391, %s28, 0
        %s393 = scalar_lea.vmem %s5, %s392
      $region28: #{bertlm_forward.6} parent=11 // pred_fallthru
        _
      // Predicated region
      $region29: #{bertlm_forward.6} parent=11 // pred_check
        %p394 = pneg %p212
      $region30: #{bertlm_forward.6} parent=11 // pred_check_branch
        %396 = sbr.rel (%p394) target = $region32
      $region31: #{bertlm_forward.6} parent=11 // pred_region
        %p397 = scmp.lt.s32.totalorder %s28, 0
        %s398 = scalar_select %p397, %s28, 0
        %s399 = smul.addr %s398, 4
        %s400 = scalar_lea.vmem %s6, %s399
      $region32: #{bertlm_forward.6} parent=11 // pred_fallthru
        _
      // Predicated region
      $region33: #{bertlm_forward.6} parent=11 // pred_check
        %p401 = pneg %p238
      $region34: #{bertlm_forward.6} parent=11 // pred_check_branch
        %403 = sbr.rel (%p401) target = $region36
      $region35: #{bertlm_forward.6} parent=11 // pred_region
        %p404 = scmp.lt.s32.totalorder %s28, 0
        %s405 = scalar_select %p404, %s28, 0
        %s406 = scalar_lea.vmem %s7, %s405
      $region36: #{bertlm_forward.6} parent=11 // pred_fallthru
        _
      // Predicated region
      $region37: #{bertlm_forward.6} parent=11 // pred_check
        %p407 = pneg %p264
      $region38: #{bertlm_forward.6} parent=11 // pred_check_branch
        %409 = sbr.rel (%p407) target = $region40
      $region39: #{bertlm_forward.6} parent=11 // pred_region
        %s410 = smul.u32 4, %s28
        %p411 = scmp.lt.s32.totalorder %s410, 3
        %s412 = scalar_select %p411, %s410, 3
        %s413 = smul.addr %s412, 4
        %s414 = scalar_lea.vmem %s8, %s413
        %s415 = smul.u32 4, %s28
      $region40: #{bertlm_forward.6} parent=11 // pred_fallthru
        _
      // Predicated region
      $region41: #{bertlm_forward.6} parent=11 // pred_check
        %p416 = pneg %p285
      $region42: #{bertlm_forward.6} parent=11 // pred_check_branch
        %418 = sbr.rel (%p416) target = $region44
      $region43: #{bertlm_forward.6} parent=11 // pred_region
        _
      $region44: #{bertlm_forward.6} parent=11 // pred_fallthru
        _
      // Predicated region
      $region45: #{bertlm_forward.6} parent=11 // pred_check
        %p419 = pneg %p306
      $region46: #{bertlm_forward.6} parent=11 // pred_check_branch
        %421 = sbr.rel (%p419) target = $region48
      $region47: #{bertlm_forward.6} parent=11 // pred_region
        _
      $region48: #{bertlm_forward.6} parent=11 // pred_fallthru
        _
      // Predicated region
      $region49: #{bertlm_forward.6} parent=11 // pred_check
        %p422 = pneg %p327
      $region50: #{bertlm_forward.6} parent=11 // pred_check_branch
        %424 = sbr.rel (%p422) target = $region52
      $region51: #{bertlm_forward.6} parent=11 // pred_region
        _
      $region52: #{bertlm_forward.6} parent=11 // pred_fallthru
        _
    $region12: #{bertlm_forward.6} parent=5 // pred_fallthru
      _
    %p425 = scmp.lt.s32.totalorder %s18, 2
    // Predicated region
    $region53: #{bertlm_forward.6} parent=5 // pred_check
      %p426 = pneg %p425
    $region54: #{bertlm_forward.6} parent=5 // pred_check_branch
      %428 = sbr.rel (%p426) target = $region56
    $region55: #{bertlm_forward.6} parent=5 // pred_region
      // Predicated region
      $region57: #{bertlm_forward.6} parent=55 // pred_check
        %p429 = pneg %p50
      $region58: #{bertlm_forward.6} parent=55 // pred_check_branch
        %431 = sbr.rel (%p429) target = $region60
      $region59: #{bertlm_forward.6} parent=55 // pred_region
        %p432 = scmp.lt.s32.totalorder %s25, 1
        %s433 = scalar_select %p432, %s25, 1
        %s434 = smul.addr %s433, 4
        %s435 = scalar_lea.vmem %s0, %s434
      $region60: #{bertlm_forward.6} parent=55 // pred_fallthru
        _
      // Predicated region
      $region61: #{bertlm_forward.6} parent=55 // pred_check
        %p436 = pneg %p76
      $region62: #{bertlm_forward.6} parent=55 // pred_check_branch
        %438 = sbr.rel (%p436) target = $region64
      $region63: #{bertlm_forward.6} parent=55 // pred_region
        %p439 = scmp.lt.s32.totalorder %s25, 1
        %s440 = scalar_select %p439, %s25, 1
        %s441 = scalar_lea.vmem %s1, %s440
      $region64: #{bertlm_forward.6} parent=55 // pred_fallthru
        _
    $region56: #{bertlm_forward.6} parent=5 // pred_fallthru
      _
    %p442 = scmp.le.s32.totalorder 1, %s18
    %p443 = scmp.lt.s32.totalorder %s18, 3
    %p444 = pnand %p442, %p443
    %p445 = pneg %p444
    // Predicated region
    $region65: #{bertlm_forward.6} parent=5 // pred_check
      _
    $region66: #{bertlm_forward.6} parent=5 // pred_check_branch
      %447 = sbr.rel (%p444) target = $region68
    $region67: #{bertlm_forward.6} parent=5 // pred_region
      %s448 = ssub.s32 %s18, 1
      %p449 = scmp.lt.s32.totalorder %s27, 1
      %s450 = scalar_select %p449, %s27, 1
      %s451 = smul.addr %s450, 4
      %s452 = scalar_lea.vmem %s0, %s451
      %p453 = pneg %p56
      %p454 = pneg %p53
      %p455 = scmp.lt.s32.totalorder %s27, 1
      %s456 = scalar_select %p455, %s27, 1
      %s457 = scalar_lea.vmem %s1, %s456
      %p458 = pneg %p82
      %p459 = pneg %p79
      %p460 = scmp.lt.s32.totalorder %s28, 0
      %s461 = scalar_select %p460, %s28, 0
      %s462 = smul.addr %s461, 4
      %s463 = scalar_lea.vmem %s2, %s462
      %p464 = pneg %p108
      %p465 = pneg %p105
      %p466 = scmp.lt.s32.totalorder %s28, 0
      %s467 = scalar_select %p466, %s28, 0
      %s468 = scalar_lea.vmem %s3, %s467
      %p469 = pneg %p134
      %p470 = pneg %p131
      %p471 = scmp.lt.s32.totalorder %s28, 0
      %s472 = scalar_select %p471, %s28, 0
      %s473 = smul.addr %s472, 4
      %s474 = scalar_lea.vmem %s4, %s473
      %p475 = pneg %p160
      %p476 = pneg %p157
      %p477 = scmp.lt.s32.totalorder %s28, 0
      %s478 = scalar_select %p477, %s28, 0
      %s479 = scalar_lea.vmem %s5, %s478
      %p480 = pneg %p186
      %p481 = pneg %p183
      %p482 = scmp.lt.s32.totalorder %s28, 0
      %s483 = scalar_select %p482, %s28, 0
      %s484 = smul.addr %s483, 4
      %s485 = scalar_lea.vmem %s6, %s484
      %p486 = pneg %p212
      %p487 = pneg %p209
      %p488 = scmp.lt.s32.totalorder %s28, 0
      %s489 = scalar_select %p488, %s28, 0
      %s490 = scalar_lea.vmem %s7, %s489
      %p491 = pneg %p238
      %p492 = pneg %p235
      %s493 = smul.u32 4, %s28
      %p494 = scmp.lt.s32.totalorder %s493, 3
      %s495 = scalar_select %p494, %s493, 3
      %s496 = smul.addr %s495, 4
      %s497 = scalar_lea.vmem %s8, %s496
      %p498 = pneg %p264
      %p499 = pneg %p261
      %p500 = pneg %p285
      %p501 = pneg %p282
      %p502 = pneg %p306
      %p503 = pneg %p303
      %p504 = pneg %p327
      %p505 = pneg %p324
      %p506 = pneg %p353
      %p507 = pneg %p350
      %p508 = scmp.lt.s32.totalorder %s27, 1
      %s509 = scalar_select %p508, %s27, 1
      %s510 = smul.addr %s509, 4
      %s511 = scalar_lea.vmem %s12, %s510
      %p512 = scmp.lt.s32.totalorder %s27, 1
      %s513 = scalar_select %p512, %s27, 1
      %s514 = smul.addr %s513, 4
      %s515 = scalar_lea.vmem %s0, %s514
      %p516 = scmp.lt.s32.totalorder %s27, 1
      %s517 = scalar_select %p516, %s27, 1
      %s518 = scalar_lea.vmem %s1, %s517
      %p519 = scmp.lt.s32.totalorder %s28, 0
      %s520 = scalar_select %p519, %s28, 0
      %s521 = smul.addr %s520, 4
      %s522 = scalar_lea.vmem %s2, %s521
      %p523 = scmp.lt.s32.totalorder %s28, 0
      %s524 = scalar_select %p523, %s28, 0
      %s525 = scalar_lea.vmem %s3, %s524
      %p526 = scmp.lt.s32.totalorder %s28, 0
      %s527 = scalar_select %p526, %s28, 0
      %s528 = smul.addr %s527, 4
      %s529 = scalar_lea.vmem %s4, %s528
      %p530 = scmp.lt.s32.totalorder %s28, 0
      %s531 = scalar_select %p530, %s28, 0
      %s532 = scalar_lea.vmem %s5, %s531
      %p533 = scmp.lt.s32.totalorder %s28, 0
      %s534 = scalar_select %p533, %s28, 0
      %s535 = smul.addr %s534, 4
      %s536 = scalar_lea.vmem %s6, %s535
      %p537 = scmp.lt.s32.totalorder %s28, 0
      %s538 = scalar_select %p537, %s28, 0
      %s539 = scalar_lea.vmem %s7, %s538
      %s540 = smul.u32 4, %s28
      %p541 = scmp.lt.s32.totalorder %s540, 3
      %s542 = scalar_select %p541, %s540, 3
      %s543 = smul.addr %s542, 4
      %s544 = scalar_lea.vmem %s8, %s543
      %s545 = smul.u32 4, %s28
      %p546 = scmp.lt.s32.totalorder %s27, 1
      %s547 = scalar_select %p546, %s27, 1
      %s548 = smul.addr %s547, 4
      %s549 = scalar_lea.vmem %s12, %s548
      %p551 = scmp.eq.s32.totalorder %s28, 0
      // Predicated region
      $region69: #{bertlm_forward.6} parent=67 // pred_check
        %p552 = pneg %p551
      $region70: #{bertlm_forward.6} parent=67 // pred_check_branch
        %554 = sbr.rel (%p552) target = $region72
      $region71: #{bertlm_forward.6} parent=67 // pred_region
        %vm555 = vcmask 261120
        %556 = vst.msk [vmem:[#allocation2] sm:$0xff] %vm555, 0.0
      $region72: #{bertlm_forward.6} parent=67 // pred_fallthru
        _
      %v557 = vld [vmem:[%s515] sm:$0xf]
      %v558 = vld [vmem:[%s518] sm:$0x1]
      %v559 = vld [vmem:[%s522] sm:$0xf]
      %v560 = vld [vmem:[%s522 + $0x4] sm:$0xf]
      %v561 = vld [vmem:[%s522 + $0x8] sm:$0xf]
      %v562 = vld [vmem:[%s522 + $0xc] sm:$0xf]
      %v563 = vld [vmem:[%s525] sm:$0x1]
      %v565 = vperm.slane %v563, 0
      %v571 = vunpack.c.l.b16 %v559
      %v572 = vunpack.c.l.b16 %v560
      %v573 = vunpack.c.l.b16 %v561
      %v574 = vunpack.c.l.b16 %v562
      %v575 = vpack.c.b16 %v572, %v571
      %v576 = vpack.c.b16 %v574, %v573
      %vm579 = vcmask 261120
      %v581 = vsel %vm579, %v557, 0
      %583 = vmatpush.bf16.msra.mxu0 0
      %584 = vmatpush.bf16.msra.mxu0 0
      %585 = vmatpush.bf16.msra.mxu0 0
      %586 = vmatpush.bf16.msra.mxu0 0
      %587 = vmatpush.bf16.msra.mxu0 0
      %588 = vmatpush.bf16.msra.mxu0 0
      %589 = vmatpush.bf16.msra.mxu0 %v576
      %590 = vmatpush.bf16.msra.mxu0 %v575
      %591 = vmatmul.bf16.gmra.mxu0 %v581
      %v592 = vpop.f32.mrf.mxu0
      %v593 = vadd.f32 %v565, %v592
      %v594 = vpop.f32.mrf.mxu0
      %595 = vdwg.mxu0
      %v596 = vld [vmem:[%s529] sm:$0xf]
      %v597 = vld [vmem:[%s529 + $0x4] sm:$0xf]
      %v598 = vld [vmem:[%s529 + $0x8] sm:$0xf]
      %v599 = vld [vmem:[%s529 + $0xc] sm:$0xf]
      %v600 = vld [vmem:[%s532] sm:$0x1]
      %v602 = vperm.slane %v600, 0
      %v608 = vunpack.c.l.b16 %v596
      %v609 = vunpack.c.l.b16 %v597
      %v610 = vunpack.c.l.b16 %v598
      %v611 = vunpack.c.l.b16 %v599
      %v612 = vpack.c.b16 %v609, %v608
      %v613 = vpack.c.b16 %v611, %v610
      %616 = vmatpush.bf16.msra.mxu0 0
      %617 = vmatpush.bf16.msra.mxu0 0
      %618 = vmatpush.bf16.msra.mxu0 0
      %619 = vmatpush.bf16.msra.mxu0 0
      %620 = vmatpush.bf16.msra.mxu0 0
      %621 = vmatpush.bf16.msra.mxu0 0
      %622 = vmatpush.bf16.msra.mxu0 %v613
      %623 = vmatpush.bf16.msra.mxu0 %v612
      %624 = vmatmul.bf16.gmra.mxu0 %v581
      %v625 = vpop.f32.mrf.mxu0
      %v626 = vadd.f32 %v602, %v625
      %v627 = vpop.f32.mrf.mxu0
      %628 = vdwg.mxu0
      %v629 = vld [vmem:[%s536] sm:$0xf]
      %v630 = vld [vmem:[%s536 + $0x4] sm:$0xf]
      %v631 = vld [vmem:[%s536 + $0x8] sm:$0xf]
      %v632 = vld [vmem:[%s536 + $0xc] sm:$0xf]
      %v633 = vld [vmem:[%s539] sm:$0x1]
      %v635 = vperm.slane %v633, 0
      %v641 = vunpack.c.l.b16 %v629
      %v642 = vunpack.c.l.b16 %v630
      %v643 = vunpack.c.l.b16 %v631
      %v644 = vunpack.c.l.b16 %v632
      %v645 = vpack.c.b16 %v642, %v641
      %v646 = vpack.c.b16 %v644, %v643
      %649 = vmatpush.bf16.msra.mxu0 0
      %650 = vmatpush.bf16.msra.mxu0 0
      %651 = vmatpush.bf16.msra.mxu0 0
      %652 = vmatpush.bf16.msra.mxu0 0
      %653 = vmatpush.bf16.msra.mxu0 0
      %654 = vmatpush.bf16.msra.mxu0 0
      %655 = vmatpush.bf16.msra.mxu0 %v646
      %656 = vmatpush.bf16.msra.mxu0 %v645
      %657 = vmatmul.bf16.gmra.mxu0 %v581
      %v658 = vpop.f32.mrf.mxu0
      %v659 = vadd.f32 %v635, %v658
      %v660 = vpop.f32.mrf.mxu0
      %661 = vdwg.mxu0
      %v662 = vmul.f32 %v593, 0.35355338
      %v663 = vpack.c.bf16 %v662, %v662
      %v664 = vpack.c.bf16 %v626, %v626
      %v665 = vpack.c.bf16 %v659, %v659
      %v667 = vperm.slane %v558, 0
      %vm669 = vcmask 64512
      %v671 = vsel %vm669, %v663, 0
      %v674 = vsel %vm669, %v664, 0
      %676 = vmatpush.bf16.xpose.msra.mxu0 0
      %677 = vmatpush.bf16.xpose.msra.mxu0 0
      %678 = vmatpush.bf16.xpose.msra.mxu0 0
      %679 = vmatpush.bf16.xpose.msra.mxu0 0
      %680 = vmatpush.bf16.xpose.msra.mxu0 0
      %681 = vmatpush.bf16.xpose.msra.mxu0 0
      %682 = vmatpush.bf16.xpose.msra.mxu0 0
      %683 = vmatpush.bf16.xpose.msra.mxu0 %v674
      %684 = vmatmul.bf16.gmra.mxu0 %v671
      %v685 = vpop.f32.mrf.mxu0
      %v686 = vadd.f32 %v667, %v685
      %v687 = vpop.f32.mrf.mxu0
      %688 = vdwg.mxu0
      %v689 = vsel %vm669, %v686, -inf
      %690 = vmax.xlane.f32.xlu0 %v689
      %v691 = vpop.xlane.xlu0 %690
      %v692 = vsub.f32 %v686, %v691
      %v693 = vmul.f32 %v692, 1.442695
      %v694 = vpow.pop %v693
      %v695 = vsel %vm669, %v694, 0.0
      %696 = vadd.xlane.f32.xlu0 %v695
      %v697 = vpop.xlane.xlu0 %696
      %v698 = vrcp.pop %v697
      %v699 = vmul.f32 %v694, %v698
      %v700 = vpack.c.bf16 %v699, %v699
      %v702 = vsel %vm669, %v700, 0
      %vm704 = vcmask 1043456
      %v706 = vsel %vm704, %v665, 0
      %708 = vmatpush.bf16.msra.mxu0 0
      %709 = vmatpush.bf16.msra.mxu0 0
      %710 = vmatpush.bf16.msra.mxu0 0
      %711 = vmatpush.bf16.msra.mxu0 0
      %712 = vmatpush.bf16.msra.mxu0 0
      %713 = vmatpush.bf16.msra.mxu0 0
      %714 = vmatpush.bf16.msra.mxu0 0
      %715 = vmatpush.bf16.msra.mxu0 %v706
      %716 = vmatmul.bf16.gmra.mxu0 %v702
      %v717 = vpop.f32.mrf.mxu0
      %v718 = vadd.f32 0.0, %v717
      %v719 = vpop.f32.mrf.mxu0
      %720 = vdwg.mxu0
      %v722 = vunpack.c.l.b16 %v663
      %v723 = vpack.c.b16 %v722, %v722
      %724 = vrot.lane.b32.xlu0 %v723, 120
      %v725 = vpop.permute.xlu0 %724
      %v727 = vunpack.c.l.b16 %v664
      %v728 = vpack.c.b16 %v727, %v727
      %729 = vrot.lane.b32.xlu0 %v728, 120
      %v730 = vpop.permute.xlu0 %729
      %v732 = vsel %vm669, %v725, 0
      %v735 = vsel %vm669, %v730, 0
      %737 = vmatpush.bf16.xpose.msra.mxu0 0
      %738 = vmatpush.bf16.xpose.msra.mxu0 0
      %739 = vmatpush.bf16.xpose.msra.mxu0 0
      %740 = vmatpush.bf16.xpose.msra.mxu0 0
      %741 = vmatpush.bf16.xpose.msra.mxu0 0
      %742 = vmatpush.bf16.xpose.msra.mxu0 0
      %743 = vmatpush.bf16.xpose.msra.mxu0 0
      %744 = vmatpush.bf16.xpose.msra.mxu0 %v735
      %745 = vmatmul.bf16.gmra.mxu0 %v732
      %v746 = vpop.f32.mrf.mxu0
      %v747 = vadd.f32 %v667, %v746
      %v748 = vpop.f32.mrf.mxu0
      %749 = vdwg.mxu0
      %v750 = vsel %vm669, %v747, -inf
      %751 = vmax.xlane.f32.xlu0 %v750
      %v752 = vpop.xlane.xlu0 %751
      %v753 = vsub.f32 %v747, %v752
      %v754 = vmul.f32 %v753, 1.442695
      %v755 = vpow.pop %v754
      %v756 = vsel %vm669, %v755, 0.0
      %757 = vadd.xlane.f32.xlu0 %v756
      %v758 = vpop.xlane.xlu0 %757
      %v759 = vrcp.pop %v758
      %v760 = vmul.f32 %v755, %v759
      %v761 = vpack.c.bf16 %v760, %v760
      %v763 = vunpack.c.l.b16 %v665
      %v764 = vpack.c.b16 %v763, %v763
      %765 = vrot.lane.b32.xlu0 %v764, 120
      %v766 = vpop.permute.xlu0 %765
      %v768 = vsel %vm669, %v761, 0
      %v771 = vsel %vm704, %v766, 0
      %773 = vmatpush.bf16.msra.mxu0 0
      %774 = vmatpush.bf16.msra.mxu0 0
      %775 = vmatpush.bf16.msra.mxu0 0
      %776 = vmatpush.bf16.msra.mxu0 0
      %777 = vmatpush.bf16.msra.mxu0 0
      %778 = vmatpush.bf16.msra.mxu0 0
      %779 = vmatpush.bf16.msra.mxu0 0
      %780 = vmatpush.bf16.msra.mxu0 %v771
      %781 = vmatmul.bf16.gmra.mxu0 %v768
      %v782 = vpop.f32.mrf.mxu0
      %v783 = vadd.f32 0.0, %v782
      %v784 = vpop.f32.mrf.mxu0
      %785 = vdwg.mxu0
      %786 = vrot.lane.b32.xlu0 %v723, 112
      %v787 = vpop.permute.xlu0 %786
      %788 = vrot.lane.b32.xlu0 %v728, 112
      %v789 = vpop.permute.xlu0 %788
      %v791 = vsel %vm669, %v787, 0
      %v794 = vsel %vm669, %v789, 0
      %796 = vmatpush.bf16.xpose.msra.mxu0 0
      %797 = vmatpush.bf16.xpose.msra.mxu0 0
      %798 = vmatpush.bf16.xpose.msra.mxu0 0
      %799 = vmatpush.bf16.xpose.msra.mxu0 0
      %800 = vmatpush.bf16.xpose.msra.mxu0 0
      %801 = vmatpush.bf16.xpose.msra.mxu0 0
      %802 = vmatpush.bf16.xpose.msra.mxu0 0
      %803 = vmatpush.bf16.xpose.msra.mxu0 %v794
      %804 = vmatmul.bf16.gmra.mxu0 %v791
      %v805 = vpop.f32.mrf.mxu0
      %v806 = vadd.f32 %v667, %v805
      %v807 = vpop.f32.mrf.mxu0
      %808 = vdwg.mxu0
      %v809 = vsel %vm669, %v806, -inf
      %810 = vmax.xlane.f32.xlu0 %v809
      %v811 = vpop.xlane.xlu0 %810
      %v812 = vsub.f32 %v806, %v811
      %v813 = vmul.f32 %v812, 1.442695
      %v814 = vpow.pop %v813
      %v815 = vsel %vm669, %v814, 0.0
      %816 = vadd.xlane.f32.xlu0 %v815
      %v817 = vpop.xlane.xlu0 %816
      %v818 = vrcp.pop %v817
      %v819 = vmul.f32 %v814, %v818
      %v820 = vpack.c.bf16 %v819, %v819
      %821 = vrot.lane.b32.xlu0 %v764, 112
      %v822 = vpop.permute.xlu0 %821
      %v824 = vsel %vm669, %v820, 0
      %v827 = vsel %vm704, %v822, 0
      %829 = vmatpush.bf16.msra.mxu0 0
      %830 = vmatpush.bf16.msra.mxu0 0
      %831 = vmatpush.bf16.msra.mxu0 0
      %832 = vmatpush.bf16.msra.mxu0 0
      %833 = vmatpush.bf16.msra.mxu0 0
      %834 = vmatpush.bf16.msra.mxu0 0
      %835 = vmatpush.bf16.msra.mxu0 0
      %836 = vmatpush.bf16.msra.mxu0 %v827
      %837 = vmatmul.bf16.gmra.mxu0 %v824
      %v838 = vpop.f32.mrf.mxu0
      %v839 = vadd.f32 0.0, %v838
      %v840 = vpop.f32.mrf.mxu0
      %841 = vdwg.mxu0
      %842 = vrot.lane.b32.xlu0 %v723, 104
      %v843 = vpop.permute.xlu0 %842
      %844 = vrot.lane.b32.xlu0 %v728, 104
      %v845 = vpop.permute.xlu0 %844
      %v847 = vsel %vm669, %v843, 0
      %v850 = vsel %vm669, %v845, 0
      %852 = vmatpush.bf16.xpose.msra.mxu0 0
      %853 = vmatpush.bf16.xpose.msra.mxu0 0
      %854 = vmatpush.bf16.xpose.msra.mxu0 0
      %855 = vmatpush.bf16.xpose.msra.mxu0 0
      %856 = vmatpush.bf16.xpose.msra.mxu0 0
      %857 = vmatpush.bf16.xpose.msra.mxu0 0
      %858 = vmatpush.bf16.xpose.msra.mxu0 0
      %859 = vmatpush.bf16.xpose.msra.mxu0 %v850
      %860 = vmatmul.bf16.gmra.mxu0 %v847
      %v861 = vpop.f32.mrf.mxu0
      %v862 = vadd.f32 %v667, %v861
      %v863 = vpop.f32.mrf.mxu0
      %864 = vdwg.mxu0
      %v865 = vsel %vm669, %v862, -inf
      %866 = vmax.xlane.f32.xlu0 %v865
      %v867 = vpop.xlane.xlu0 %866
      %v868 = vsub.f32 %v862, %v867
      %v869 = vmul.f32 %v868, 1.442695
      %v870 = vpow.pop %v869
      %v871 = vsel %vm669, %v870, 0.0
      %872 = vadd.xlane.f32.xlu0 %v871
      %v873 = vpop.xlane.xlu0 %872
      %v874 = vrcp.pop %v873
      %v875 = vmul.f32 %v870, %v874
      %v876 = vpack.c.bf16 %v875, %v875
      %877 = vrot.lane.b32.xlu0 %v764, 104
      %v878 = vpop.permute.xlu0 %877
      %v880 = vsel %vm669, %v876, 0
      %v883 = vsel %vm704, %v878, 0
      %885 = vmatpush.bf16.msra.mxu0 0
      %886 = vmatpush.bf16.msra.mxu0 0
      %887 = vmatpush.bf16.msra.mxu0 0
      %888 = vmatpush.bf16.msra.mxu0 0
      %889 = vmatpush.bf16.msra.mxu0 0
      %890 = vmatpush.bf16.msra.mxu0 0
      %891 = vmatpush.bf16.msra.mxu0 0
      %892 = vmatpush.bf16.msra.mxu0 %v883
      %893 = vmatmul.bf16.gmra.mxu0 %v880
      %v894 = vpop.f32.mrf.mxu0
      %v895 = vadd.f32 0.0, %v894
      %v896 = vpop.f32.mrf.mxu0
      %897 = vdwg.mxu0
      %899 = vrot.lane.b32.xlu0 %v783, 8
      %v900 = vpop.permute.xlu0 %899
      %903 = vrot.lane.b32.xlu0 %v839, 16
      %v904 = vpop.permute.xlu0 %903
      %907 = vrot.lane.b32.xlu0 %v895, 24
      %v908 = vpop.permute.xlu0 %907
      %v910 = vsel %vm669, %v718, %v900
      %vm911 = vcmask 130048
      %v912 = vsel %vm911, %v910, %v904
      %vm913 = vcmask 195584
      %v914 = vsel %vm913, %v912, %v908
      %v915 = vld [vmem:[#allocation2] sm:$0xff]
      %v916 = vpack.c.bf16 %v914, %v914
      %v917 = vld [vmem:[%s544] sm:$0xf]
      %v918 = vld [vmem:[%s544 + $0x4] sm:$0xf]
      %v919 = vld [vmem:[%s544 + $0x8] sm:$0xf]
      %v920 = vld [vmem:[%s544 + $0xc] sm:$0xf]
      %v925 = vunpack.c.l.b16 %v917
      %v926 = vunpack.c.l.b16 %v918
      %v927 = vunpack.c.l.b16 %v919
      %v928 = vunpack.c.l.b16 %v920
      %v929 = vpack.c.b16 %v926, %v925
      %v930 = vpack.c.b16 %v928, %v927
      %v934 = vsel %vm579, %v916, 0
      %936 = vmatpush.bf16.msra.mxu0 0
      %937 = vmatpush.bf16.msra.mxu0 0
      %938 = vmatpush.bf16.msra.mxu0 0
      %939 = vmatpush.bf16.msra.mxu0 0
      %940 = vmatpush.bf16.msra.mxu0 0
      %941 = vmatpush.bf16.msra.mxu0 0
      %942 = vmatpush.bf16.msra.mxu0 %v930
      %943 = vmatpush.bf16.msra.mxu0 %v929
      %944 = vmatmul.bf16.gmra.mxu0 %v934
      %v945 = vpop.f32.mrf.mxu0
      %v946 = vadd.f32 0.0, %v945
      %v947 = vpop.f32.mrf.mxu0
      %948 = vdwg.mxu0
      %v949 = vadd.f32 %v915, %v946
      %950 = vst.msk [vmem:[#allocation2] sm:$0xff] %vm579, %v949
      // Predicated region
      $region73: #{bertlm_forward.6} parent=67 // pred_check
        %p951 = pneg %p551
      $region74: #{bertlm_forward.6} parent=67 // pred_check_branch
        %953 = sbr.rel (%p951) target = $region76
      $region75: #{bertlm_forward.6} parent=67 // pred_region
        %v954 = vld [vmem:[#allocation2] sm:$0xff]
        %v955 = vld [vmem:[%s9] sm:$0x1]
        %v957 = vperm.slane %v955, 0
        %v959 = vadd.f32 %v954, %v957
        %v960 = vunpack.c.l.bf16 %v557
        %v961 = vadd.f32 %v959, %v960
        %v962 = vld [vmem:[%s10] sm:$0x1]
        %v963 = vld [vmem:[%s11] sm:$0x1]
        %v964 = vsel %vm579, %v961, 0.0
        %965 = vadd.xlane.f32.xlu0 %v964
        %v966 = vpop.xlane.xlu0 %965
        %v967 = vrcp.pop 32.0
        %v968 = vmul.f32 32.0, %v967
        %v969 = vsub.f32 1.0, %v968
        %v970 = vmul.f32 %v967, %v969
        %v971 = vadd.f32 %v967, %v970
        %vm972 = vweird.f32 %v967
        %v973 = vsel %vm972, %v967, %v971
        %v974 = vmul.f32 %v966, %v973
        %v975 = vsub.f32 %v961, %v974
        %v976 = vmul.f32 %v975, %v975
        %v977 = vsel %vm579, %v976, 0.0
        %978 = vadd.xlane.f32.xlu0 %v977
        %v979 = vpop.xlane.xlu0 %978
        %v980 = vmul.f32 %v979, %v973
        %v981 = vadd.f32 %v980, 1e-05
        %v982 = vrsqrt.pop %v981
        %v983 = vmul.f32 %v982, %v981
        %v984 = vmul.f32 %v983, %v982
        %v985 = vmul.f32 0.5, %v984
        %v986 = vsub.f32 1.5, %v985
        %v987 = vmul.f32 %v982, %v986
        %vm988 = vweird.f32 %v981
        %vm989 = vweird.f32 %v982
        %vm990 = vmor %vm988, %vm989
        %v991 = vsel %vm990, %v982, %v987
        %v992 = vmul.f32 %v975, %v991
        %v994 = vperm.slane %v962, 0
        %v996 = vmul.f32 %v992, %v994
        %v998 = vperm.slane %v963, 0
        %v1000 = vadd.f32 %v996, %v998
        %v1001 = vpack.c.bf16 %v1000, %v1000
        %vm1002 = vcmask 257024
        %1003 = vst.msk [vmem:[%s549] sm:$0xf] %vm1002, %v1001
      $region76: #{bertlm_forward.6} parent=67 // pred_fallthru
        _
      %p1004 = scmp.lt.s32.totalorder %s27, 1
      %s1005 = scalar_select %p1004, %s27, 1
      %s1006 = smul.addr %s1005, 4
      %s1007 = scalar_lea.vmem %s12, %s1006
      // Predicated region
      $region77: #{bertlm_forward.6} parent=67 // pred_check
        %p1008 = pneg %p350
      $region78: #{bertlm_forward.6} parent=67 // pred_check_branch
        %1010 = sbr.rel (%p1008) target = $region80
      $region79: #{bertlm_forward.6} parent=67 // pred_region
        _
      $region80: #{bertlm_forward.6} parent=67 // pred_fallthru
        _
    $region68: #{bertlm_forward.6} parent=5 // pred_fallthru
      _
    %p1011 = scmp.le.s32.totalorder 2, %s18
    // Predicated region
    $region81: #{bertlm_forward.6} parent=5 // pred_check
      %p1012 = pneg %p1011
    $region82: #{bertlm_forward.6} parent=5 // pred_check_branch
      %1014 = sbr.rel (%p1012) target = $region84
    $region83: #{bertlm_forward.6} parent=5 // pred_region
      %s1015 = ssub.s32 %s18, 2
      // Predicated region
      $region85: #{bertlm_forward.6} parent=83 // pred_check
        %p1016 = pneg %p356
      $region86: #{bertlm_forward.6} parent=83 // pred_check_branch
        %1018 = sbr.rel (%p1016) target = $region88
      $region87: #{bertlm_forward.6} parent=83 // pred_region
        %p1019 = scmp.lt.s32.totalorder %s29, 1
        %s1020 = scalar_select %p1019, %s29, 1
        %s1021 = smul.addr %s1020, 4
        %s1022 = scalar_lea.vmem %s12, %s1021
      $region88: #{bertlm_forward.6} parent=83 // pred_fallthru
        _
    $region84: #{bertlm_forward.6} parent=5 // pred_fallthru
      _
  $region6: #{bertlm_forward.6} parent=0 // loop_footer
    %s22 = sadd.s32 1, %s18
  $region7: #{bertlm_forward.6} parent=0 // loop_footer_branch
    %17 = sbr.rel target = $region3
  $region8: #{bertlm_forward.6} parent=0 // loop_exit
    _

</llo_original>
